<compile_context>
chip_gen: v5e
topology: v5e:2x2
jax: 0.10.0
libtpu: 0.0.40
codegen_flags: <defaults>
</compile_context>

<pallas_src>
import functools

import jax
import jax.numpy as jnp
from jax import lax
from jax.experimental import pallas as pl
from jax.experimental.pallas import tpu as pltpu


_PAD_ROWS = 8   # top/bottom halo rows in the conv2 scratch (keeps stores 8-aligned)


def _round_up(v, m):
    return ((v + m - 1) // m) * m


def _bottleneck_kernel(x_ref, w1_ref, w2_ref, w3_ref,
                       s1_ref, b1_ref, b2_ref, b3_ref,
                       o_ref, rs_ref, *, width):
    HW = x_ref.shape[1]
    Pp = w1_ref.shape[1]
    f32 = jnp.float32
    bf16 = jnp.bfloat16

    # bn1 + relu (f32 VPU), then conv1 (1x1) with bn2's scale folded into w1.
    x = x_ref[0]                                                   # (HW, Cp) f32
    h = jnp.maximum(x * s1_ref[...] + b1_ref[...], 0.0)
    h = jnp.dot(h.astype(bf16), w1_ref[...],
                preferred_element_type=f32)                        # (HW, Pp) f32
    h = jnp.maximum(h + b2_ref[...], 0.0)                          # bn2 bias + relu
    h_bf = h.astype(bf16)                                          # MXU operand dtype

    # conv2 staging: write the three dy-shifted copies of `h` into a bf16
    # row-padded VMEM scratch as three adjacent 128-lane blocks.  Only the
    # boundary strips need zero-fill (the interior is overwritten below);
    # zero stores must precede the data stores.
    top_rows = _PAD_ROWS + width
    rs_ref[pl.ds(0, top_rows), :] = jnp.zeros((top_rows, 3 * Pp), bf16)
    rs_ref[pl.ds(_PAD_ROWS + HW - width, top_rows), :] = (
        jnp.zeros((top_rows, 3 * Pp), bf16))

    # Data stores (block b holds h shifted by dy = b-1 rows).
    if HW > width:
        rs_ref[pl.ds(_PAD_ROWS + width, HW - width), pl.ds(0 * Pp, Pp)] = (
            h_bf[:HW - width, :])                                  # dy = -1
    rs_ref[pl.ds(_PAD_ROWS, HW), pl.ds(1 * Pp, Pp)] = h_bf         # dy =  0
    if HW > width:
        rs_ref[pl.ds(_PAD_ROWS, HW - width), pl.ds(2 * Pp, Pp)] = (
            h_bf[width:, :])                                       # dy = +1

    col = lax.broadcasted_iota(jnp.int32, (HW, 1), 0) % width
    not_first_col = col > 0
    not_last_col = col < (width - 1)

    # Each kx tap: one fat K = 3*Pp matmul (3 dots total instead of 9 thin ones).
    acc = jnp.zeros((HW, Pp), f32)
    for kx, dx in enumerate((-1, 0, 1)):
        r = rs_ref[pl.ds(_PAD_ROWS + dx, HW), :]                   # (HW, 3*Pp) bf16
        if dx == -1:
            r = jnp.where(not_first_col, r, 0.0)                   # x-1 out of image
        elif dx == 1:
            r = jnp.where(not_last_col, r, 0.0)                    # x+1 out of image
        acc = acc + jnp.dot(r, w2_ref[kx], preferred_element_type=f32)

    h = jnp.maximum(acc + b3_ref[...], 0.0)                        # bn3 bias + relu

    # conv3 (1x1, Pp -> Cp) + residual add (f32).
    out = jnp.dot(h.astype(bf16), w3_ref[...], preferred_element_type=f32)
    o_ref[0] = out + x_ref[0]


def _prep_params(w1_oihw, w2_oihw, w3_oihw, s1, b1, s2, b2, s3, b3):
    """Fold BN scales into conv weights, pad channels to a multiple of 128,
    pack the 3x3 taps per kx, and cast weights to bf16."""
    P = w1_oihw.shape[0]
    C = w1_oihw.shape[1]
    C_out = w3_oihw.shape[0]
    assert C_out == 4 * P and C == C_out, \
        "residual add requires inplanes == planes * expansion"
    Cp = _round_up(C, 128)
    Pp = _round_up(P, 128)
    f32 = jnp.float32

    w1 = w1_oihw[:, :, 0, 0].T.astype(f32) * s2[None, :]               # (C, P), bn2 scale folded
    w2 = jnp.transpose(w2_oihw, (2, 3, 1, 0)).astype(f32)               # (ky, kx, in, out)
    w2 = w2 * s3[None, None, None, :]                                   # bn3 scale folded
    w3 = w3_oihw[:, :, 0, 0].T.astype(f32)                              # (P, C)

    w1p = jnp.zeros((Cp, Pp), f32).at[:C, :P].set(w1).astype(jnp.bfloat16)
    w2p = jnp.zeros((3, 3, Pp, Pp), f32).at[:, :, :P, :P].set(w2)
    # Pack: for each kx, stack the three ky blocks along the contraction axis.
    w2p = jnp.transpose(w2p, (1, 0, 2, 3)).reshape(3, 3 * Pp, Pp).astype(jnp.bfloat16)
    w3p = jnp.zeros((Pp, Cp), f32).at[:P, :C].set(w3).astype(jnp.bfloat16)

    def vec(v, n):
        return jnp.zeros((1, n), f32).at[0, :v.shape[0]].set(v.astype(f32))

    return (w1p, w2p, w3p, vec(s1, Cp), vec(b1, Cp), vec(b2, Pp), vec(b3, Pp))


@jax.jit
def bottleneck_pallas_nhwc(x_nhwc, w1p, w2p, w3p, s1p, b1p, b2p, b3p):
    """Primary entry point: NHWC in / NHWC out (TPU-native; no HBM transposes)."""
    N, H, W, C = x_nhwc.shape
    Cp, Pp = w1p.shape
    HW = H * W

    x = x_nhwc.reshape(N, HW, C).astype(jnp.float32)
    if Cp != C:
        x = jnp.pad(x, ((0, 0), (0, 0), (0, Cp - C)))      # lane-dense channels

    kernel = functools.partial(_bottleneck_kernel, width=W)
    out = pl.pallas_call(
        kernel,
        out_shape=jax.ShapeDtypeStruct((N, HW, Cp), jnp.float32),
        grid_spec=pltpu.PrefetchScalarGridSpec(
            num_scalar_prefetch=0,
            grid=(N,),
            in_specs=[
                pl.BlockSpec((1, HW, Cp), lambda n: (n, 0, 0)),        # x (f32)
                pl.BlockSpec((Cp, Pp), lambda n: (0, 0)),              # w1*s2 (bf16)
                pl.BlockSpec((3, 3 * Pp, Pp), lambda n: (0, 0, 0)),    # packed w2*s3 (bf16)
                pl.BlockSpec((Pp, Cp), lambda n: (0, 0)),              # w3 (bf16)
                pl.BlockSpec((1, Cp), lambda n: (0, 0)),               # bn1 scale
                pl.BlockSpec((1, Cp), lambda n: (0, 0)),               # bn1 bias
                pl.BlockSpec((1, Pp), lambda n: (0, 0)),               # bn2 bias
                pl.BlockSpec((1, Pp), lambda n: (0, 0)),               # bn3 bias
            ],
            out_specs=pl.BlockSpec((1, HW, Cp), lambda n: (n, 0, 0)),  # lane-dense output
            scratch_shapes=[pltpu.VMEM((HW + 2 * _PAD_ROWS, 3 * Pp), jnp.bfloat16)],
        ),
        compiler_params=pltpu.CompilerParams(dimension_semantics=("parallel",)),
    )(x, w1p, w2p, w3p, s1p, b1p, b2p, b3p)

    return out[:, :, :C].reshape(N, H, W, C)


@jax.jit
def bottleneck_pallas_nchw(x_nchw, w1p, w2p, w3p, s1p, b1p, b2p, b3p):
    """PyTorch-layout (NCHW) compatibility wrapper.  Prefer the NHWC entry
    point: these two transposes each cost a full HBM read+write pass."""
    x_nhwc = jnp.transpose(x_nchw, (0, 2, 3, 1))
    out = bottleneck_pallas_nhwc(x_nhwc, w1p, w2p, w3p, s1p, b1p, b2p, b3p)
    return jnp.transpose(out, (0, 3, 1, 2))


# ---------------------------------------------------------------------------
# Pure-JAX f32 reference (NCHW, lax.conv) implementing the module exactly.
# ---------------------------------------------------------------------------
def bottleneck_reference_nchw(x, w1_oihw, w2_oihw, w3_oihw, s1, b1, s2, b2, s3, b3):
    def bn(h, s, b):
        return h * s[None, :, None, None] + b[None, :, None, None]

    dn = ("NCHW", "OIHW", "NCHW")
    h = jnp.maximum(bn(x, s1, b1), 0.0)
    h = lax.conv_general_dilated(h, w1_oihw, (1, 1), "VALID", dimension_numbers=dn)
    h = jnp.maximum(bn(h, s2, b2), 0.0)
    h = lax.conv_general_dilated(h, w2_oihw, (1, 1), ((1, 1), (1, 1)),
                                 dimension_numbers=dn)
    h = jnp.maximum(bn(h, s3, b3), 0.0)
    h = lax.conv_general_dilated(h, w3_oihw, (1, 1), "VALID", dimension_numbers=dn)
    return h + x


if __name__ == "__main__":
    inplanes, planes = 16, 4        # expansion = 4 -> out channels = 16 = inplanes
    N, H, W = 2, 16, 16
    eps = 1e-5

    key = jax.random.PRNGKey(0)
    keys = jax.random.split(key, 16)

    x_nchw = jax.random.normal(keys[0], (N, inplanes, H, W), jnp.float32)

    # Conv weights in PyTorch OIHW layout (bias=False in the module).
    w1_oihw = jax.random.normal(keys[1], (planes, inplanes, 1, 1), jnp.float32) * 0.2
    w2_oihw = jax.random.normal(keys[2], (planes, planes, 3, 3), jnp.float32) * 0.2
    w3_oihw = jax.random.normal(keys[3], (planes * 4, planes, 1, 1), jnp.float32) * 0.2

    # BatchNorm params (inference mode): gamma, beta, running_mean, running_var.
    def bn_params(kg, kb, km, kv, c):
        gamma = 1.0 + 0.1 * jax.random.normal(kg, (c,), jnp.float32)
        beta = 0.1 * jax.random.normal(kb, (c,), jnp.float32)
        mean = 0.1 * jax.random.normal(km, (c,), jnp.float32)
        var = jnp.abs(jax.random.normal(kv, (c,), jnp.float32)) + 0.5
        scale = gamma / jnp.sqrt(var + eps)
        bias = beta - mean * scale
        return scale, bias

    s1, b1 = bn_params(keys[4], keys[5], keys[6], keys[7], inplanes)
    s2, b2 = bn_params(keys[8], keys[9], keys[10], keys[11], planes)
    s3, b3 = bn_params(keys[12], keys[13], keys[14], keys[15], planes)

    params = _prep_params(w1_oihw, w2_oihw, w3_oihw, s1, b1, s2, b2, s3, b3)

    ref = jax.block_until_ready(
        bottleneck_reference_nchw(x_nchw, w1_oihw, w2_oihw, w3_oihw,
                                  s1, b1, s2, b2, s3, b3))
    ref_nhwc = jnp.transpose(ref, (0, 2, 3, 1))

    # Primary path: NHWC end-to-end (no layout transposes around the kernel).
    x_nhwc = jnp.transpose(x_nchw, (0, 2, 3, 1))
    out_nhwc = jax.block_until_ready(bottleneck_pallas_nhwc(x_nhwc, *params))

    # PyTorch-layout parity path (NCHW in / NCHW out).
    out_nchw = jax.block_until_ready(bottleneck_pallas_nchw(x_nchw, *params))

    err_nhwc = jnp.max(jnp.abs(out_nhwc - ref_nhwc))
    err_nchw = jnp.max(jnp.abs(out_nchw - ref))

    assert out_nhwc.shape == (N, H, W, inplanes)
    assert out_nchw.shape == (N, inplanes, H, W)
    # bf16 matmul operands (f32 accumulation) vs a pure-f32 reference: expected
    # absolute error is a few 1e-3; 3e-2 leaves comfortable margin.
    assert jnp.allclose(out_nhwc, ref_nhwc, atol=3e-2, rtol=3e-2), \
        f"NHWC max abs err {err_nhwc}"
    assert jnp.allclose(out_nchw, ref, atol=3e-2, rtol=3e-2), \
        f"NCHW max abs err {err_nchw}"

    print("KERNEL_OK")
</pallas_src>

<mosaic_0001>
module attributes {stable_mosaic.version = 11 : i64} {
  func.func @_bottleneck_kernel(%arg0: i32, %arg1: memref<1x256x128xf32, #tpu.memory_space<vmem>>, %arg2: memref<128x128xbf16, #tpu.memory_space<vmem>>, %arg3: memref<3x384x128xbf16, #tpu.memory_space<vmem>>, %arg4: memref<128x128xbf16, #tpu.memory_space<vmem>>, %arg5: memref<1x128xf32, #tpu.memory_space<vmem>>, %arg6: memref<1x128xf32, #tpu.memory_space<vmem>>, %arg7: memref<1x128xf32, #tpu.memory_space<vmem>>, %arg8: memref<1x128xf32, #tpu.memory_space<vmem>>, %arg9: memref<1x256x128xf32, #tpu.memory_space<vmem>>, %arg10: memref<272x384xbf16, #tpu.memory_space<vmem>>) attributes {dimension_semantics = [#tpu.dimension_semantics<parallel>], iteration_bounds = array<i64: 2>, scalar_prefetch = 0 : i64, scratch_operands = 1 : i64, tpu.core_type = #tpu.core_type<tc>, window_params = [{transform_indices = @transform_0, window_bounds = array<i64: 1, 256, 128>}, {pipeline_mode = #tpu.pipeline_mode<synchronous>, transform_indices = @transform_1, window_bounds = array<i64: 128, 128>}, {pipeline_mode = #tpu.pipeline_mode<synchronous>, transform_indices = @transform_2, window_bounds = array<i64: 3, 384, 128>}, {pipeline_mode = #tpu.pipeline_mode<synchronous>, transform_indices = @transform_3, window_bounds = array<i64: 128, 128>}, {pipeline_mode = #tpu.pipeline_mode<synchronous>, transform_indices = @transform_4, window_bounds = array<i64: 1, 128>}, {pipeline_mode = #tpu.pipeline_mode<synchronous>, transform_indices = @transform_5, window_bounds = array<i64: 1, 128>}, {pipeline_mode = #tpu.pipeline_mode<synchronous>, transform_indices = @transform_6, window_bounds = array<i64: 1, 128>}, {pipeline_mode = #tpu.pipeline_mode<synchronous>, transform_indices = @transform_7, window_bounds = array<i64: 1, 128>}, {transform_indices = @transform_8, window_bounds = array<i64: 1, 256, 128>}]} {
    %c0 = arith.constant 0 : index
    %c0_0 = arith.constant 0 : index
    %c0_1 = arith.constant 0 : index
    %0 = vector.load %arg1[%c0, %c0_0, %c0_1] : memref<1x256x128xf32, #tpu.memory_space<vmem>>, vector<1x256x128xf32>
    %1 = vector.shape_cast %0 : vector<1x256x128xf32> to vector<256x128xf32>
    %c0_2 = arith.constant 0 : index
    %c0_3 = arith.constant 0 : index
    %2 = vector.load %arg5[%c0_2, %c0_3] : memref<1x128xf32, #tpu.memory_space<vmem>>, vector<1x128xf32>
    %3 = vector.broadcast %2 : vector<1x128xf32> to vector<256x128xf32>
    %4 = arith.mulf %1, %3 : vector<256x128xf32>
    %c0_4 = arith.constant 0 : index
    %c0_5 = arith.constant 0 : index
    %5 = vector.load %arg6[%c0_4, %c0_5] : memref<1x128xf32, #tpu.memory_space<vmem>>, vector<1x128xf32>
    %6 = vector.broadcast %5 : vector<1x128xf32> to vector<256x128xf32>
    %7 = arith.addf %4, %6 : vector<256x128xf32>
    %cst = arith.constant 0.000000e+00 : f32
    %8 = vector.broadcast %cst : f32 to vector<256x128xf32>
    %9 = arith.maximumf %7, %8 : vector<256x128xf32>
    %10 = arith.truncf %9 : vector<256x128xf32> to vector<256x128xbf16>
    %c0_6 = arith.constant 0 : index
    %c0_7 = arith.constant 0 : index
    %11 = vector.load %arg2[%c0_6, %c0_7] : memref<128x128xbf16, #tpu.memory_space<vmem>>, vector<128x128xbf16>
    %cst_8 = arith.constant dense<0.000000e+00> : vector<256x128xf32>
    %12 = tpu.matmul %10, %11, %cst_8 {dimension_numbers = #tpu.dot_dimension_numbers<[1], [0], [0], [1], [0, 0, 1, 1], [], []>} : vector<256x128xbf16>, vector<128x128xbf16>, vector<256x128xf32> -> vector<256x128xf32>
    %c0_9 = arith.constant 0 : index
    %c0_10 = arith.constant 0 : index
    %13 = vector.load %arg7[%c0_9, %c0_10] : memref<1x128xf32, #tpu.memory_space<vmem>>, vector<1x128xf32>
    %14 = vector.broadcast %13 : vector<1x128xf32> to vector<256x128xf32>
    %15 = arith.addf %12, %14 : vector<256x128xf32>
    %cst_11 = arith.constant 0.000000e+00 : f32
    %16 = vector.broadcast %cst_11 : f32 to vector<256x128xf32>
    %17 = arith.maximumf %15, %16 : vector<256x128xf32>
    %18 = arith.truncf %17 : vector<256x128xf32> to vector<256x128xbf16>
    %cst_12 = arith.constant 0.000000e+00 : bf16
    %19 = vector.broadcast %cst_12 : bf16 to vector<24x384xbf16>
    %c0_13 = arith.constant 0 : index
    %c0_14 = arith.constant 0 : index
    %20 = vector.load %arg10[%c0_13, %c0_14] : memref<272x384xbf16, #tpu.memory_space<vmem>>, vector<24x384xbf16>
    tpu.vector_store %arg10[%c0_13, %c0_14], %19 {strides = array<i32>} : memref<272x384xbf16, #tpu.memory_space<vmem>>, vector<24x384xbf16>,
    %cst_15 = arith.constant 0.000000e+00 : bf16
    %21 = vector.broadcast %cst_15 : bf16 to vector<24x384xbf16>
    %c248 = arith.constant 248 : index
    %c0_16 = arith.constant 0 : index
    %22 = vector.load %arg10[%c248, %c0_16] : memref<272x384xbf16, #tpu.memory_space<vmem>>, vector<24x384xbf16>
    tpu.vector_store %arg10[%c248, %c0_16], %21 {strides = array<i32>} : memref<272x384xbf16, #tpu.memory_space<vmem>>, vector<24x384xbf16>,
    %23 = vector.extract_strided_slice %18 {offsets = [0, 0], sizes = [240, 128], strides = [1, 1]} : vector<256x128xbf16> to vector<240x128xbf16>
    %c24 = arith.constant 24 : index
    %c0_17 = arith.constant 0 : index
    %24 = vector.load %arg10[%c24, %c0_17] : memref<272x384xbf16, #tpu.memory_space<vmem>>, vector<240x128xbf16>
    tpu.vector_store %arg10[%c24, %c0_17], %23 {strides = array<i32>} : memref<272x384xbf16, #tpu.memory_space<vmem>>, vector<240x128xbf16>,
    %c8 = arith.constant 8 : index
    %c128 = arith.constant 128 : index
    %25 = vector.load %arg10[%c8, %c128] : memref<272x384xbf16, #tpu.memory_space<vmem>>, vector<256x128xbf16>
    tpu.vector_store %arg10[%c8, %c128], %18 {strides = array<i32>} : memref<272x384xbf16, #tpu.memory_space<vmem>>, vector<256x128xbf16>,
    %26 = vector.extract_strided_slice %18 {offsets = [16, 0], sizes = [240, 128], strides = [1, 1]} : vector<256x128xbf16> to vector<240x128xbf16>
    %c8_18 = arith.constant 8 : index
    %c256 = arith.constant 256 : index
    %27 = vector.load %arg10[%c8_18, %c256] : memref<272x384xbf16, #tpu.memory_space<vmem>>, vector<240x128xbf16>
    tpu.vector_store %arg10[%c8_18, %c256], %26 {strides = array<i32>} : memref<272x384xbf16, #tpu.memory_space<vmem>>, vector<240x128xbf16>,
    %28 = tpu.iota {dimensions = array<i32: 0>} : vector<256x1xi32>
    %c16_i32 = arith.constant 16 : i32
    %c0_i32 = arith.constant 0 : i32
    %29 = arith.cmpi eq, %c16_i32, %c0_i32 : i32
    %c1_i32 = arith.constant 1 : i32
    %30 = arith.select %29, %c1_i32, %c16_i32 : i32
    %31 = vector.broadcast %30 : i32 to vector<256x1xi32>
    %32 = arith.remsi %28, %31 : vector<256x1xi32>
    %c0_i32_19 = arith.constant 0 : i32
    %33 = vector.broadcast %c0_i32_19 : i32 to vector<256x1xi32>
    %34 = arith.cmpi ne, %32, %33 : vector<256x1xi32>
    %c0_i32_20 = arith.constant 0 : i32
    %35 = vector.broadcast %c0_i32_20 : i32 to vector<256x1xi32>
    %36 = arith.cmpi slt, %32, %35 : vector<256x1xi32>
    %c0_i32_21 = arith.constant 0 : i32
    %37 = arith.cmpi slt, %30, %c0_i32_21 : i32
    %38 = vector.broadcast %37 : i1 to vector<256x1xi1>
    %39 = vector.broadcast %38 : vector<256x1xi1> to vector<256x1xi1>
    %40 = arith.xori %36, %39 : vector<256x1xi1>
    %41 = arith.andi %40, %34 : vector<256x1xi1>
    %42 = vector.broadcast %30 : i32 to vector<256x1xi32>
    %43 = arith.addi %32, %42 : vector<256x1xi32>
    %44 = arith.select %41, %43, %32 : vector<256x1xi1>, vector<256x1xi32>
    %c0_i32_22 = arith.constant 0 : i32
    %45 = vector.broadcast %c0_i32_22 : i32 to vector<256x1xi32>
    %46 = arith.cmpi sgt, %44, %45 : vector<256x1xi32>
    %c15_i32 = arith.constant 15 : i32
    %47 = vector.broadcast %c15_i32 : i32 to vector<256x1xi32>
    %48 = arith.cmpi slt, %44, %47 : vector<256x1xi32>
    %cst_23 = arith.constant 0.000000e+00 : f32
    %49 = vector.broadcast %cst_23 : f32 to vector<256x128xf32>
    %c7 = arith.constant 7 : index
    %c0_24 = arith.constant 0 : index
    %50 = vector.load %arg10[%c7, %c0_24] : memref<272x384xbf16, #tpu.memory_space<vmem>>, vector<256x384xbf16>
    %cst_25 = arith.constant 0.000000e+00 : f32
    %51 = arith.truncf %cst_25 : f32 to bf16
    %52 = vector.shape_cast %46 : vector<256x1xi1> to vector<256x1xi1>
    %53 = vector.broadcast %52 : vector<256x1xi1> to vector<256x384xi1>
    %54 = vector.broadcast %51 : bf16 to vector<256x384xbf16>
    %55 = arith.select %53, %50, %54 : vector<256x384xi1>, vector<256x384xbf16>
    %c0_26 = arith.constant 0 : index
    %c0_27 = arith.constant 0 : index
    %c0_28 = arith.constant 0 : index
    %56 = vector.load %arg3[%c0_26, %c0_27, %c0_28] : memref<3x384x128xbf16, #tpu.memory_space<vmem>>, vector<1x384x128xbf16>
    %57 = vector.shape_cast %56 : vector<1x384x128xbf16> to vector<384x128xbf16>
    %cst_29 = arith.constant dense<0.000000e+00> : vector<256x128xf32>
    %58 = tpu.matmul %55, %57, %cst_29 {dimension_numbers = #tpu.dot_dimension_numbers<[1], [0], [0], [1], [0, 0, 1, 1], [], []>} : vector<256x384xbf16>, vector<384x128xbf16>, vector<256x128xf32> -> vector<256x128xf32>
    %59 = arith.addf %49, %58 : vector<256x128xf32>
    %c8_30 = arith.constant 8 : index
    %c0_31 = arith.constant 0 : index
    %60 = vector.load %arg10[%c8_30, %c0_31] : memref<272x384xbf16, #tpu.memory_space<vmem>>, vector<256x384xbf16>
    %c1 = arith.constant 1 : index
    %c0_32 = arith.constant 0 : index
    %c0_33 = arith.constant 0 : index
    %61 = vector.load %arg3[%c1, %c0_32, %c0_33] : memref<3x384x128xbf16, #tpu.memory_space<vmem>>, vector<1x384x128xbf16>
    %62 = vector.shape_cast %61 : vector<1x384x128xbf16> to vector<384x128xbf16>
    %cst_34 = arith.constant dense<0.000000e+00> : vector<256x128xf32>
    %63 = tpu.matmul %60, %62, %cst_34 {dimension_numbers = #tpu.dot_dimension_numbers<[1], [0], [0], [1], [0, 0, 1, 1], [], []>} : vector<256x384xbf16>, vector<384x128xbf16>, vector<256x128xf32> -> vector<256x128xf32>
    %64 = arith.addf %59, %63 : vector<256x128xf32>
    %c9 = arith.constant 9 : index
    %c0_35 = arith.constant 0 : index
    %65 = vector.load %arg10[%c9, %c0_35] : memref<272x384xbf16, #tpu.memory_space<vmem>>, vector<256x384xbf16>
    %cst_36 = arith.constant 0.000000e+00 : f32
    %66 = arith.truncf %cst_36 : f32 to bf16
    %67 = vector.shape_cast %48 : vector<256x1xi1> to vector<256x1xi1>
    %68 = vector.broadcast %67 : vector<256x1xi1> to vector<256x384xi1>
    %69 = vector.broadcast %66 : bf16 to vector<256x384xbf16>
    %70 = arith.select %68, %65, %69 : vector<256x384xi1>, vector<256x384xbf16>
    %c2 = arith.constant 2 : index
    %c0_37 = arith.constant 0 : index
    %c0_38 = arith.constant 0 : index
    %71 = vector.load %arg3[%c2, %c0_37, %c0_38] : memref<3x384x128xbf16, #tpu.memory_space<vmem>>, vector<1x384x128xbf16>
    %72 = vector.shape_cast %71 : vector<1x384x128xbf16> to vector<384x128xbf16>
    %cst_39 = arith.constant dense<0.000000e+00> : vector<256x128xf32>
    %73 = tpu.matmul %70, %72, %cst_39 {dimension_numbers = #tpu.dot_dimension_numbers<[1], [0], [0], [1], [0, 0, 1, 1], [], []>} : vector<256x384xbf16>, vector<384x128xbf16>, vector<256x128xf32> -> vector<256x128xf32>
    %74 = arith.addf %64, %73 : vector<256x128xf32>
    %c0_40 = arith.constant 0 : index
    %c0_41 = arith.constant 0 : index
    %75 = vector.load %arg8[%c0_40, %c0_41] : memref<1x128xf32, #tpu.memory_space<vmem>>, vector<1x128xf32>
    %76 = vector.broadcast %75 : vector<1x128xf32> to vector<256x128xf32>
    %77 = arith.addf %74, %76 : vector<256x128xf32>
    %cst_42 = arith.constant 0.000000e+00 : f32
    %78 = vector.broadcast %cst_42 : f32 to vector<256x128xf32>
    %79 = arith.maximumf %77, %78 : vector<256x128xf32>
    %80 = arith.truncf %79 : vector<256x128xf32> to vector<256x128xbf16>
    %c0_43 = arith.constant 0 : index
    %c0_44 = arith.constant 0 : index
    %81 = vector.load %arg4[%c0_43, %c0_44] : memref<128x128xbf16, #tpu.memory_space<vmem>>, vector<128x128xbf16>
    %cst_45 = arith.constant dense<0.000000e+00> : vector<256x128xf32>
    %82 = tpu.matmul %80, %81, %cst_45 {dimension_numbers = #tpu.dot_dimension_numbers<[1], [0], [0], [1], [0, 0, 1, 1], [], []>} : vector<256x128xbf16>, vector<128x128xbf16>, vector<256x128xf32> -> vector<256x128xf32>
    %c0_46 = arith.constant 0 : index
    %c0_47 = arith.constant 0 : index
    %c0_48 = arith.constant 0 : index
    %83 = vector.load %arg1[%c0_46, %c0_47, %c0_48] : memref<1x256x128xf32, #tpu.memory_space<vmem>>, vector<1x256x128xf32>
    %84 = vector.shape_cast %83 : vector<1x256x128xf32> to vector<256x128xf32>
    %85 = arith.addf %82, %84 : vector<256x128xf32>
    %c0_49 = arith.constant 0 : index
    %c0_50 = arith.constant 0 : index
    %c0_51 = arith.constant 0 : index
    %86 = vector.load %arg9[%c0_49, %c0_50, %c0_51] : memref<1x256x128xf32, #tpu.memory_space<vmem>>, vector<1x256x128xf32>
    %87 = vector.shape_cast %86 : vector<1x256x128xf32> to vector<256x128xf32>
    %88 = vector.shape_cast %85 : vector<256x128xf32> to vector<1x256x128xf32>
    tpu.vector_store %arg9[%c0_49, %c0_50, %c0_51], %88 {strides = array<i32>} : memref<1x256x128xf32, #tpu.memory_space<vmem>>, vector<1x256x128xf32>,
    return
  }
  func.func @transform_0(%arg0: i32) -> (i32, i32, i32) {
    %c0_i32 = arith.constant 0 : i32
    %c0_i32_0 = arith.constant 0 : i32
    %c0_i32_1 = arith.constant 0 : i32
    return %arg0, %c0_i32, %c0_i32_0 : i32, i32, i32
  }
  func.func @transform_1(%arg0: i32) -> (i32, i32) {
    %c0_i32 = arith.constant 0 : i32
    %c0_i32_0 = arith.constant 0 : i32
    %c0_i32_1 = arith.constant 0 : i32
    return %c0_i32, %c0_i32_0 : i32, i32
  }
  func.func @transform_2(%arg0: i32) -> (i32, i32, i32) {
    %c0_i32 = arith.constant 0 : i32
    %c0_i32_0 = arith.constant 0 : i32
    %c0_i32_1 = arith.constant 0 : i32
    %c0_i32_2 = arith.constant 0 : i32
    return %c0_i32, %c0_i32_0, %c0_i32_1 : i32, i32, i32
  }
  func.func @transform_3(%arg0: i32) -> (i32, i32) {
    %c0_i32 = arith.constant 0 : i32
    %c0_i32_0 = arith.constant 0 : i32
    %c0_i32_1 = arith.constant 0 : i32
    return %c0_i32, %c0_i32_0 : i32, i32
  }
  func.func @transform_4(%arg0: i32) -> (i32, i32) {
    %c0_i32 = arith.constant 0 : i32
    %c0_i32_0 = arith.constant 0 : i32
    %c0_i32_1 = arith.constant 0 : i32
    return %c0_i32, %c0_i32_0 : i32, i32
  }
  func.func @transform_5(%arg0: i32) -> (i32, i32) {
    %c0_i32 = arith.constant 0 : i32
    %c0_i32_0 = arith.constant 0 : i32
    %c0_i32_1 = arith.constant 0 : i32
    return %c0_i32, %c0_i32_0 : i32, i32
  }
  func.func @transform_6(%arg0: i32) -> (i32, i32) {
    %c0_i32 = arith.constant 0 : i32
    %c0_i32_0 = arith.constant 0 : i32
    %c0_i32_1 = arith.constant 0 : i32
    return %c0_i32, %c0_i32_0 : i32, i32
  }
  func.func @transform_7(%arg0: i32) -> (i32, i32) {
    %c0_i32 = arith.constant 0 : i32
    %c0_i32_0 = arith.constant 0 : i32
    %c0_i32_1 = arith.constant 0 : i32
    return %c0_i32, %c0_i32_0 : i32, i32
  }
  func.func @transform_8(%arg0: i32) -> (i32, i32, i32) {
    %c0_i32 = arith.constant 0 : i32
    %c0_i32_0 = arith.constant 0 : i32
    %c0_i32_1 = arith.constant 0 : i32
    return %arg0, %c0_i32, %c0_i32_0 : i32, i32, i32
  }
}

</mosaic_0001>

<llo_original>
// kernel: bottleneck_pallas_nhwc.1
$region0: #{bottleneck_pallas_nhwc.1}
  #allocation0 [shape = 'u32[]', space=smem, size = 0x4, offset = 0x4, fixed_abs, tag = 'smem constant byte address 0x4 - core index']
  #allocation1 [shape = 'u32[72,128]{1,0:T(1,128)}', space=vmem, size = 0x9000, scoped, tag = 'internal scratch']
  #allocation2 [shape = 'bf16[272,384]{1,0:T(8,128)(2,1)}', space=vmem, size = 0x33000, scoped, tag = 'scratch operand']
  %s0 = inlined_call_operand.vmem [shape: f32[2,256,128], index: 0, kind: input, shape index: {}]
  %s1 = inlined_call_operand.vmem [shape: bf16[128,128], index: 1, kind: input, shape index: {}]
  %s2 = inlined_call_operand.vmem [shape: bf16[3,384,128], index: 2, kind: input, shape index: {}]
  %s3 = inlined_call_operand.vmem [shape: bf16[128,128], index: 3, kind: input, shape index: {}]
  %s4 = inlined_call_operand.vmem [shape: f32[1,128], index: 4, kind: input, shape index: {}]
  %s5 = inlined_call_operand.vmem [shape: f32[1,128], index: 5, kind: input, shape index: {}]
  %s6 = inlined_call_operand.vmem [shape: f32[1,128], index: 6, kind: input, shape index: {}]
  %s7 = inlined_call_operand.vmem [shape: f32[1,128], index: 7, kind: input, shape index: {}]
  %s8 = inlined_call_operand.hbm [shape: f32[2,256,128], index: 8, kind: output, shape index: {}]
  %s9 = sld [smem:[#allocation0]]
  $region65: #{bottleneck_pallas_nhwc.1} parent=0
    _
  %s11 = ssub.s32 1, %s9
  %s12 = scalar_select 0, %s11, %s9
  $region1: #{bottleneck_pallas_nhwc.1} parent=0
    #allocation3 [shape = 'u8[262144]{0}', space=vmem, size = 0x40000, scoped, tag = 'output window, operand 0']
    #allocation4 [shape = 's32[2]{0}', space=sflag, size = 0x8, scoped, tag = 'scoped memory for bottleneck_pallas_nhwc.1']
    %13 = vsyncpa [#allocation4], 0
    %s14 = scalar_lea.sflag [#allocation4], 1
    %15 = vsyncpa %s14, 0
    loop: start=0, step=1, limit=4
    $region2: #{bottleneck_pallas_nhwc.1} parent=1 // loop_pre_header
      _
    $region3: #{bottleneck_pallas_nhwc.1} parent=1 // loop_header
      %s17 = sphi 0, %s21
      %p18 = scmp.ge.s32.totalorder %s17, 4
      %s27 = sphi 0, %s29
      %s30 = sphi 0, %s27
      %s31 = sphi 0, %s30
      %s47 = sphi 0, %s31
      %s51 = sphi 0, %s51
      %s53 = sphi 0, %s51
      %s54 = sphi 0, %s53
      %s68 = sphi 0, %s54
      %s72 = sphi 0, %s72
      %s74 = sphi 0, %s72
      %s75 = sphi 0, %s74
      %s89 = sphi 0, %s75
      %s93 = sphi 0, %s93
      %s95 = sphi 0, %s93
      %s96 = sphi 0, %s95
      %s110 = sphi 0, %s96
      %s114 = sphi 0, %s114
      %s116 = sphi 0, %s114
      %s117 = sphi 0, %s116
      %s131 = sphi 0, %s117
      %s135 = sphi 0, %s135
      %s137 = sphi 0, %s135
      %s138 = sphi 0, %s137
      %s152 = sphi 0, %s138
      %s156 = sphi 0, %s156
      %s158 = sphi 0, %s156
      %s159 = sphi 0, %s158
      %s173 = sphi 0, %s159
      %s177 = sphi 0, %s177
      %s179 = sphi 0, %s177
      %s180 = sphi 0, %s179
      %s194 = sphi 0, %s180
      %s200 = sphi 0, %s202
      %s203 = sphi 0, %s200
      %s204 = sphi 0, %s203
      %s220 = sphi 0, %s204
    $region4: #{bottleneck_pallas_nhwc.1} parent=1 // loop_header_branch
      %20 = sbr.rel (%p18) target = $region8
    $region5: #{bottleneck_pallas_nhwc.1} parent=1 // loop_body
      %s22 = ssub.s32 %s17, 1
      %s23 = ssub.s32 %s17, 2
      %s24 = sadd.s32 %s17, 1
      %s25 = ssub.s32 %s17, %s24
      %p26 = scmp.eq.s32.totalorder %s25, 0
      %s28 = sadd.s32 %s27, 1
      %s29 = scalar_select %p26, %s27, %s28
      %p32 = pneg %p26
      %p33 = scmp.eq.s32.totalorder %s17, 1
      %p34 = por %p32, %p33
      %p35 = scmp.ne.s32.totalorder %s27, %s30
      %p36 = scmp.eq.s32.totalorder %s17, 0
      %p37 = por %p35, %p36
      %p38 = scmp.ne.s32.totalorder %s27, %s30
      %p39 = scmp.eq.s32.totalorder %s22, 1
      %p40 = por %p38, %p39
      %p41 = scmp.ne.s32.totalorder %s30, %s31
      %p42 = scmp.eq.s32.totalorder %s22, 0
      %p43 = por %p41, %p42
      %p44 = scmp.ne.s32.totalorder %s30, %s31
      %p45 = scmp.eq.s32.totalorder %s23, 1
      %p46 = por %p44, %p45
      %p48 = scmp.ne.s32.totalorder %s31, %s47
      %p49 = scmp.eq.s32.totalorder %s23, 0
      %p50 = por %p48, %p49
      %s52 = sadd.s32 %s51, 1
      %p55 = scmp.eq.s32.totalorder %s17, 1
      %p56 = scmp.ne.s32.totalorder %s51, %s53
      %p57 = scmp.eq.s32.totalorder %s17, 0
      %p58 = por %p56, %p57
      %p59 = scmp.ne.s32.totalorder %s51, %s53
      %p60 = scmp.eq.s32.totalorder %s22, 1
      %p61 = por %p59, %p60
      %p62 = scmp.ne.s32.totalorder %s53, %s54
      %p63 = scmp.eq.s32.totalorder %s22, 0
      %p64 = por %p62, %p63
      %p65 = scmp.ne.s32.totalorder %s53, %s54
      %p66 = scmp.eq.s32.totalorder %s23, 1
      %p67 = por %p65, %p66
      %p69 = scmp.ne.s32.totalorder %s54, %s68
      %p70 = scmp.eq.s32.totalorder %s23, 0
      %p71 = por %p69, %p70
      %s73 = sadd.s32 %s72, 1
      %p76 = scmp.eq.s32.totalorder %s17, 1
      %p77 = scmp.ne.s32.totalorder %s72, %s74
      %p78 = scmp.eq.s32.totalorder %s17, 0
      %p79 = por %p77, %p78
      %p80 = scmp.ne.s32.totalorder %s72, %s74
      %p81 = scmp.eq.s32.totalorder %s22, 1
      %p82 = por %p80, %p81
      %p83 = scmp.ne.s32.totalorder %s74, %s75
      %p84 = scmp.eq.s32.totalorder %s22, 0
      %p85 = por %p83, %p84
      %p86 = scmp.ne.s32.totalorder %s74, %s75
      %p87 = scmp.eq.s32.totalorder %s23, 1
      %p88 = por %p86, %p87
      %p90 = scmp.ne.s32.totalorder %s75, %s89
      %p91 = scmp.eq.s32.totalorder %s23, 0
      %p92 = por %p90, %p91
      %s94 = sadd.s32 %s93, 1
      %p97 = scmp.eq.s32.totalorder %s17, 1
      %p98 = scmp.ne.s32.totalorder %s93, %s95
      %p99 = scmp.eq.s32.totalorder %s17, 0
      %p100 = por %p98, %p99
      %p101 = scmp.ne.s32.totalorder %s93, %s95
      %p102 = scmp.eq.s32.totalorder %s22, 1
      %p103 = por %p101, %p102
      %p104 = scmp.ne.s32.totalorder %s95, %s96
      %p105 = scmp.eq.s32.totalorder %s22, 0
      %p106 = por %p104, %p105
      %p107 = scmp.ne.s32.totalorder %s95, %s96
      %p108 = scmp.eq.s32.totalorder %s23, 1
      %p109 = por %p107, %p108
      %p111 = scmp.ne.s32.totalorder %s96, %s110
      %p112 = scmp.eq.s32.totalorder %s23, 0
      %p113 = por %p111, %p112
      %s115 = sadd.s32 %s114, 1
      %p118 = scmp.eq.s32.totalorder %s17, 1
      %p119 = scmp.ne.s32.totalorder %s114, %s116
      %p120 = scmp.eq.s32.totalorder %s17, 0
      %p121 = por %p119, %p120
      %p122 = scmp.ne.s32.totalorder %s114, %s116
      %p123 = scmp.eq.s32.totalorder %s22, 1
      %p124 = por %p122, %p123
      %p125 = scmp.ne.s32.totalorder %s116, %s117
      %p126 = scmp.eq.s32.totalorder %s22, 0
      %p127 = por %p125, %p126
      %p128 = scmp.ne.s32.totalorder %s116, %s117
      %p129 = scmp.eq.s32.totalorder %s23, 1
      %p130 = por %p128, %p129
      %p132 = scmp.ne.s32.totalorder %s117, %s131
      %p133 = scmp.eq.s32.totalorder %s23, 0
      %p134 = por %p132, %p133
      %s136 = sadd.s32 %s135, 1
      %p139 = scmp.eq.s32.totalorder %s17, 1
      %p140 = scmp.ne.s32.totalorder %s135, %s137
      %p141 = scmp.eq.s32.totalorder %s17, 0
      %p142 = por %p140, %p141
      %p143 = scmp.ne.s32.totalorder %s135, %s137
      %p144 = scmp.eq.s32.totalorder %s22, 1
      %p145 = por %p143, %p144
      %p146 = scmp.ne.s32.totalorder %s137, %s138
      %p147 = scmp.eq.s32.totalorder %s22, 0
      %p148 = por %p146, %p147
      %p149 = scmp.ne.s32.totalorder %s137, %s138
      %p150 = scmp.eq.s32.totalorder %s23, 1
      %p151 = por %p149, %p150
      %p153 = scmp.ne.s32.totalorder %s138, %s152
      %p154 = scmp.eq.s32.totalorder %s23, 0
      %p155 = por %p153, %p154
      %s157 = sadd.s32 %s156, 1
      %p160 = scmp.eq.s32.totalorder %s17, 1
      %p161 = scmp.ne.s32.totalorder %s156, %s158
      %p162 = scmp.eq.s32.totalorder %s17, 0
      %p163 = por %p161, %p162
      %p164 = scmp.ne.s32.totalorder %s156, %s158
      %p165 = scmp.eq.s32.totalorder %s22, 1
      %p166 = por %p164, %p165
      %p167 = scmp.ne.s32.totalorder %s158, %s159
      %p168 = scmp.eq.s32.totalorder %s22, 0
      %p169 = por %p167, %p168
      %p170 = scmp.ne.s32.totalorder %s158, %s159
      %p171 = scmp.eq.s32.totalorder %s23, 1
      %p172 = por %p170, %p171
      %p174 = scmp.ne.s32.totalorder %s159, %s173
      %p175 = scmp.eq.s32.totalorder %s23, 0
      %p176 = por %p174, %p175
      %s178 = sadd.s32 %s177, 1
      %p181 = scmp.eq.s32.totalorder %s17, 1
      %p182 = scmp.ne.s32.totalorder %s177, %s179
      %p183 = scmp.eq.s32.totalorder %s17, 0
      %p184 = por %p182, %p183
      %p185 = scmp.ne.s32.totalorder %s177, %s179
      %p186 = scmp.eq.s32.totalorder %s22, 1
      %p187 = por %p185, %p186
      %p188 = scmp.ne.s32.totalorder %s179, %s180
      %p189 = scmp.eq.s32.totalorder %s22, 0
      %p190 = por %p188, %p189
      %p191 = scmp.ne.s32.totalorder %s179, %s180
      %p192 = scmp.eq.s32.totalorder %s23, 1
      %p193 = por %p191, %p192
      %p195 = scmp.ne.s32.totalorder %s180, %s194
      %p196 = scmp.eq.s32.totalorder %s23, 0
      %p197 = por %p195, %p196
      %s198 = ssub.s32 %s17, %s24
      %p199 = scmp.eq.s32.totalorder %s198, 0
      %s201 = sadd.s32 %s200, 1
      %s202 = scalar_select %p199, %s200, %s201
      %p205 = pneg %p199
      %p206 = scmp.eq.s32.totalorder %s17, 1
      %p207 = por %p205, %p206
      %p208 = scmp.ne.s32.totalorder %s200, %s203
      %p209 = scmp.eq.s32.totalorder %s17, 0
      %p210 = por %p208, %p209
      %p211 = scmp.ne.s32.totalorder %s200, %s203
      %p212 = scmp.eq.s32.totalorder %s22, 1
      %p213 = por %p211, %p212
      %p214 = scmp.ne.s32.totalorder %s203, %s204
      %p215 = scmp.eq.s32.totalorder %s22, 0
      %p216 = por %p214, %p215
      %p217 = scmp.ne.s32.totalorder %s203, %s204
      %p218 = scmp.eq.s32.totalorder %s23, 1
      %p219 = por %p217, %p218
      %p221 = scmp.ne.s32.totalorder %s204, %s220
      %p222 = scmp.eq.s32.totalorder %s23, 0
      %p223 = por %p221, %p222
      %p224 = scmp.le.s32.totalorder 1, %s17
      %p225 = scmp.lt.s32.totalorder %s17, 3
      %p226 = pnand %p224, %p225
      %p227 = pneg %p226
      // Predicated region
      $region9: #{bottleneck_pallas_nhwc.1} parent=5 // pred_check
        _
      $region10: #{bottleneck_pallas_nhwc.1} parent=5 // pred_check_branch
        %229 = sbr.rel (%p226) target = $region12
      $region11: #{bottleneck_pallas_nhwc.1} parent=5 // pred_region
        %s230 = ssub.s32 %s17, 1
        // Predicated region
        $region13: #{bottleneck_pallas_nhwc.1} parent=11 // pred_check
          %p231 = pneg %p64
        $region14: #{bottleneck_pallas_nhwc.1} parent=11 // pred_check_branch
          %233 = sbr.rel (%p231) target = $region16
        $region15: #{bottleneck_pallas_nhwc.1} parent=11 // pred_region
          _
        $region16: #{bottleneck_pallas_nhwc.1} parent=11 // pred_fallthru
          _
        // Predicated region
        $region17: #{bottleneck_pallas_nhwc.1} parent=11 // pred_check
          %p234 = pneg %p85
        $region18: #{bottleneck_pallas_nhwc.1} parent=11 // pred_check_branch
          %236 = sbr.rel (%p234) target = $region20
        $region19: #{bottleneck_pallas_nhwc.1} parent=11 // pred_region
          _
        $region20: #{bottleneck_pallas_nhwc.1} parent=11 // pred_fallthru
          _
        // Predicated region
        $region21: #{bottleneck_pallas_nhwc.1} parent=11 // pred_check
          %p237 = pneg %p106
        $region22: #{bottleneck_pallas_nhwc.1} parent=11 // pred_check_branch
          %239 = sbr.rel (%p237) target = $region24
        $region23: #{bottleneck_pallas_nhwc.1} parent=11 // pred_region
          _
        $region24: #{bottleneck_pallas_nhwc.1} parent=11 // pred_fallthru
          _
        // Predicated region
        $region25: #{bottleneck_pallas_nhwc.1} parent=11 // pred_check
          %p240 = pneg %p127
        $region26: #{bottleneck_pallas_nhwc.1} parent=11 // pred_check_branch
          %242 = sbr.rel (%p240) target = $region28
        $region27: #{bottleneck_pallas_nhwc.1} parent=11 // pred_region
          _
        $region28: #{bottleneck_pallas_nhwc.1} parent=11 // pred_fallthru
          _
        // Predicated region
        $region29: #{bottleneck_pallas_nhwc.1} parent=11 // pred_check
          %p243 = pneg %p148
        $region30: #{bottleneck_pallas_nhwc.1} parent=11 // pred_check_branch
          %245 = sbr.rel (%p243) target = $region32
        $region31: #{bottleneck_pallas_nhwc.1} parent=11 // pred_region
          _
        $region32: #{bottleneck_pallas_nhwc.1} parent=11 // pred_fallthru
          _
        // Predicated region
        $region33: #{bottleneck_pallas_nhwc.1} parent=11 // pred_check
          %p246 = pneg %p169
        $region34: #{bottleneck_pallas_nhwc.1} parent=11 // pred_check_branch
          %248 = sbr.rel (%p246) target = $region36
        $region35: #{bottleneck_pallas_nhwc.1} parent=11 // pred_region
          _
        $region36: #{bottleneck_pallas_nhwc.1} parent=11 // pred_fallthru
          _
        // Predicated region
        $region37: #{bottleneck_pallas_nhwc.1} parent=11 // pred_check
          %p249 = pneg %p190
        $region38: #{bottleneck_pallas_nhwc.1} parent=11 // pred_check_branch
          %251 = sbr.rel (%p249) target = $region40
        $region39: #{bottleneck_pallas_nhwc.1} parent=11 // pred_region
          _
        $region40: #{bottleneck_pallas_nhwc.1} parent=11 // pred_fallthru
          _
      $region12: #{bottleneck_pallas_nhwc.1} parent=5 // pred_fallthru
        _
      %p252 = scmp.lt.s32.totalorder %s17, 2
      // Predicated region
      $region41: #{bottleneck_pallas_nhwc.1} parent=5 // pred_check
        %p253 = pneg %p252
      $region42: #{bottleneck_pallas_nhwc.1} parent=5 // pred_check_branch
        %255 = sbr.rel (%p253) target = $region44
      $region43: #{bottleneck_pallas_nhwc.1} parent=5 // pred_region
        // Predicated region
        $region45: #{bottleneck_pallas_nhwc.1} parent=43 // pred_check
          %p256 = pneg %p37
        $region46: #{bottleneck_pallas_nhwc.1} parent=43 // pred_check_branch
          %258 = sbr.rel (%p256) target = $region48
        $region47: #{bottleneck_pallas_nhwc.1} parent=43 // pred_region
          %p259 = scmp.lt.s32.totalorder %s17, 1
          %s260 = scalar_select %p259, %s17, 1
          %s261 = smul.addr %s260, 32
          %s262 = smul.addr %s261, 8
          %s263 = scalar_lea.vmem %s0, %s262
        $region48: #{bottleneck_pallas_nhwc.1} parent=43 // pred_fallthru
          _
      $region44: #{bottleneck_pallas_nhwc.1} parent=5 // pred_fallthru
        _
      %p264 = scmp.le.s32.totalorder 1, %s17
      %p265 = scmp.lt.s32.totalorder %s17, 3
      %p266 = pnand %p264, %p265
      %p267 = pneg %p266
      // Predicated region
      $region49: #{bottleneck_pallas_nhwc.1} parent=5 // pred_check
        _
      $region50: #{bottleneck_pallas_nhwc.1} parent=5 // pred_check_branch
        %269 = sbr.rel (%p266) target = $region52
      $region51: #{bottleneck_pallas_nhwc.1} parent=5 // pred_region
        %s270 = ssub.s32 %s17, 1
        %p271 = scmp.lt.s32.totalorder %s22, 1
        %s272 = scalar_select %p271, %s22, 1
        %s273 = smul.addr %s272, 32
        %s274 = smul.addr %s273, 8
        %s275 = scalar_lea.vmem %s0, %s274
        %p276 = pneg %p43
        %p277 = pneg %p40
        %p278 = pneg %p64
        %p279 = pneg %p61
        %p280 = pneg %p85
        %p281 = pneg %p82
        %p282 = pneg %p106
        %p283 = pneg %p103
        %p284 = pneg %p127
        %p285 = pneg %p124
        %p286 = pneg %p148
        %p287 = pneg %p145
        %p288 = pneg %p169
        %p289 = pneg %p166
        %p290 = pneg %p190
        %p291 = pneg %p187
        %p292 = pneg %p216
        %p293 = pneg %p213
        %s294 = sand.u32 %s203, 1
        %s295 = scalar_lea.sflag [#allocation4], %s294
        %s296 = sand.u32 %s203, 1
        %s297 = smul.addr %s296, 256
        %s298 = scalar_lea.vmem [#allocation3], %s297
        %p299 = scmp.lt.s32.totalorder %s22, 1
        %s300 = scalar_select %p299, %s22, 1
        %s301 = smul.addr %s300, 32
        %s302 = smul.addr %s301, 8
        %s303 = scalar_lea.vmem %s0, %s302
        %v307 = vld [vmem:[%s303] sm:$0xff]
        %v308 = vld [vmem:[%s303 + $0x8] sm:$0xff]
        %v309 = vld [vmem:[%s303 + $0x10] sm:$0xff]
        %v310 = vld [vmem:[%s303 + $0x18] sm:$0xff]
        %v311 = vld [vmem:[%s303 + $0x20] sm:$0xff]
        %v312 = vld [vmem:[%s303 + $0x28] sm:$0xff]
        %v313 = vld [vmem:[%s303 + $0x30] sm:$0xff]
        %v314 = vld [vmem:[%s303 + $0x38] sm:$0xff]
        %v315 = vld [vmem:[%s303 + $0x40] sm:$0xff]
        %v316 = vld [vmem:[%s303 + $0x48] sm:$0xff]
        %v317 = vld [vmem:[%s303 + $0x50] sm:$0xff]
        %v318 = vld [vmem:[%s303 + $0x58] sm:$0xff]
        %v319 = vld [vmem:[%s303 + $0x60] sm:$0xff]
        %v320 = vld [vmem:[%s303 + $0x68] sm:$0xff]
        %v321 = vld [vmem:[%s303 + $0x70] sm:$0xff]
        %v322 = vld [vmem:[%s303 + $0x78] sm:$0xff]
        %v323 = vld [vmem:[%s303 + $0x80] sm:$0xff]
        %v324 = vld [vmem:[%s303 + $0x88] sm:$0xff]
        %v325 = vld [vmem:[%s303 + $0x90] sm:$0xff]
        %v326 = vld [vmem:[%s303 + $0x98] sm:$0xff]
        %v327 = vld [vmem:[%s303 + $0xa0] sm:$0xff]
        %v328 = vld [vmem:[%s303 + $0xa8] sm:$0xff]
        %v329 = vld [vmem:[%s303 + $0xb0] sm:$0xff]
        %v330 = vld [vmem:[%s303 + $0xb8] sm:$0xff]
        %v331 = vld [vmem:[%s303 + $0xc0] sm:$0xff]
        %v332 = vld [vmem:[%s303 + $0xc8] sm:$0xff]
        %v333 = vld [vmem:[%s303 + $0xd0] sm:$0xff]
        %v334 = vld [vmem:[%s303 + $0xd8] sm:$0xff]
        %v335 = vld [vmem:[%s303 + $0xe0] sm:$0xff]
        %v336 = vld [vmem:[%s303 + $0xe8] sm:$0xff]
        %v337 = vld [vmem:[%s303 + $0xf0] sm:$0xff]
        %v338 = vld [vmem:[%s303 + $0xf8] sm:$0xff]
        %v339 = vld [vmem:[%s4] sm:$0x1]
        %v341 = vperm.slane %v339, 0
        %v343 = vmul.f32 %v307, %v341
        %v344 = vmul.f32 %v308, %v341
        %v345 = vmul.f32 %v309, %v341
        %v346 = vmul.f32 %v310, %v341
        %v347 = vmul.f32 %v311, %v341
        %v348 = vmul.f32 %v312, %v341
        %v349 = vmul.f32 %v313, %v341
        %v350 = vmul.f32 %v314, %v341
        %v351 = vmul.f32 %v315, %v341
        %v352 = vmul.f32 %v316, %v341
        %v353 = vmul.f32 %v317, %v341
        %v354 = vmul.f32 %v318, %v341
        %v355 = vmul.f32 %v319, %v341
        %v356 = vmul.f32 %v320, %v341
        %v357 = vmul.f32 %v321, %v341
        %v358 = vmul.f32 %v322, %v341
        %v359 = vmul.f32 %v323, %v341
        %v360 = vmul.f32 %v324, %v341
        %v361 = vmul.f32 %v325, %v341
        %v362 = vmul.f32 %v326, %v341
        %v363 = vmul.f32 %v327, %v341
        %v364 = vmul.f32 %v328, %v341
        %v365 = vmul.f32 %v329, %v341
        %v366 = vmul.f32 %v330, %v341
        %v367 = vmul.f32 %v331, %v341
        %v368 = vmul.f32 %v332, %v341
        %v369 = vmul.f32 %v333, %v341
        %v370 = vmul.f32 %v334, %v341
        %v371 = vmul.f32 %v335, %v341
        %v372 = vmul.f32 %v336, %v341
        %v373 = vmul.f32 %v337, %v341
        %v374 = vmul.f32 %v338, %v341
        %v375 = vld [vmem:[%s5] sm:$0x1]
        %v377 = vperm.slane %v375, 0
        %v379 = vadd.f32 %v343, %v377
        %v380 = vadd.f32 %v344, %v377
        %v381 = vadd.f32 %v345, %v377
        %v382 = vadd.f32 %v346, %v377
        %v383 = vadd.f32 %v347, %v377
        %v384 = vadd.f32 %v348, %v377
        %v385 = vadd.f32 %v349, %v377
        %v386 = vadd.f32 %v350, %v377
        %v387 = vadd.f32 %v351, %v377
        %v388 = vadd.f32 %v352, %v377
        %v389 = vadd.f32 %v353, %v377
        %v390 = vadd.f32 %v354, %v377
        %v391 = vadd.f32 %v355, %v377
        %v392 = vadd.f32 %v356, %v377
        %v393 = vadd.f32 %v357, %v377
        %v394 = vadd.f32 %v358, %v377
        %v395 = vadd.f32 %v359, %v377
        %v396 = vadd.f32 %v360, %v377
        %v397 = vadd.f32 %v361, %v377
        %v398 = vadd.f32 %v362, %v377
        %v399 = vadd.f32 %v363, %v377
        %v400 = vadd.f32 %v364, %v377
        %v401 = vadd.f32 %v365, %v377
        %v402 = vadd.f32 %v366, %v377
        %v403 = vadd.f32 %v367, %v377
        %v404 = vadd.f32 %v368, %v377
        %v405 = vadd.f32 %v369, %v377
        %v406 = vadd.f32 %v370, %v377
        %v407 = vadd.f32 %v371, %v377
        %v408 = vadd.f32 %v372, %v377
        %v409 = vadd.f32 %v373, %v377
        %v410 = vadd.f32 %v374, %v377
        %v411 = vmax.f32 %v379, 0.0
        %v412 = vmax.f32 %v380, 0.0
        %v413 = vmax.f32 %v381, 0.0
        %v414 = vmax.f32 %v382, 0.0
        %v415 = vmax.f32 %v383, 0.0
        %v416 = vmax.f32 %v384, 0.0
        %v417 = vmax.f32 %v385, 0.0
        %v418 = vmax.f32 %v386, 0.0
        %v419 = vmax.f32 %v387, 0.0
        %v420 = vmax.f32 %v388, 0.0
        %v421 = vmax.f32 %v389, 0.0
        %v422 = vmax.f32 %v390, 0.0
        %v423 = vmax.f32 %v391, 0.0
        %v424 = vmax.f32 %v392, 0.0
        %v425 = vmax.f32 %v393, 0.0
        %v426 = vmax.f32 %v394, 0.0
        %v427 = vmax.f32 %v395, 0.0
        %v428 = vmax.f32 %v396, 0.0
        %v429 = vmax.f32 %v397, 0.0
        %v430 = vmax.f32 %v398, 0.0
        %v431 = vmax.f32 %v399, 0.0
        %v432 = vmax.f32 %v400, 0.0
        %v433 = vmax.f32 %v401, 0.0
        %v434 = vmax.f32 %v402, 0.0
        %v435 = vmax.f32 %v403, 0.0
        %v436 = vmax.f32 %v404, 0.0
        %v437 = vmax.f32 %v405, 0.0
        %v438 = vmax.f32 %v406, 0.0
        %v439 = vmax.f32 %v407, 0.0
        %v440 = vmax.f32 %v408, 0.0
        %v441 = vmax.f32 %v409, 0.0
        %v442 = vmax.f32 %v410, 0.0
        %v443 = vpack.c.bf16 %v412, %v411
        %v444 = vpack.c.bf16 %v414, %v413
        %v445 = vpack.c.bf16 %v416, %v415
        %v446 = vpack.c.bf16 %v418, %v417
        %v447 = vpack.c.bf16 %v420, %v419
        %v448 = vpack.c.bf16 %v422, %v421
        %v449 = vpack.c.bf16 %v424, %v423
        %v450 = vpack.c.bf16 %v426, %v425
        %v451 = vpack.c.bf16 %v428, %v427
        %v452 = vpack.c.bf16 %v430, %v429
        %v453 = vpack.c.bf16 %v432, %v431
        %v454 = vpack.c.bf16 %v434, %v433
        %v455 = vpack.c.bf16 %v436, %v435
        %v456 = vpack.c.bf16 %v438, %v437
        %v457 = vpack.c.bf16 %v440, %v439
        %v458 = vpack.c.bf16 %v442, %v441
        %v459 = vld [vmem:[%s1] sm:$0xf]
        %v460 = vld [vmem:[%s1 + $0x4] sm:$0xf]
        %v461 = vld [vmem:[%s1 + $0x8] sm:$0xf]
        %v462 = vld [vmem:[%s1 + $0xc] sm:$0xf]
        %v463 = vld [vmem:[%s1 + $0x10] sm:$0xf]
        %v464 = vld [vmem:[%s1 + $0x14] sm:$0xf]
        %v465 = vld [vmem:[%s1 + $0x18] sm:$0xf]
        %v466 = vld [vmem:[%s1 + $0x1c] sm:$0xf]
        %v467 = vld [vmem:[%s1 + $0x20] sm:$0xf]
        %v468 = vld [vmem:[%s1 + $0x24] sm:$0xf]
        %v469 = vld [vmem:[%s1 + $0x28] sm:$0xf]
        %v470 = vld [vmem:[%s1 + $0x2c] sm:$0xf]
        %v471 = vld [vmem:[%s1 + $0x30] sm:$0xf]
        %v472 = vld [vmem:[%s1 + $0x34] sm:$0xf]
        %v473 = vld [vmem:[%s1 + $0x38] sm:$0xf]
        %v474 = vld [vmem:[%s1 + $0x3c] sm:$0xf]
        %v475 = vld [vmem:[%s6] sm:$0x1]
        %v477 = vperm.slane %v475, 0
        %v495 = vunpack.c.l.b16 %v459
        %v496 = vunpack.c.l.b16 %v460
        %v497 = vunpack.c.l.b16 %v461
        %v498 = vunpack.c.l.b16 %v462
        %v499 = vunpack.c.l.b16 %v463
        %v500 = vunpack.c.l.b16 %v464
        %v501 = vunpack.c.l.b16 %v465
        %v502 = vunpack.c.l.b16 %v466
        %v503 = vunpack.c.l.b16 %v467
        %v504 = vunpack.c.l.b16 %v468
        %v505 = vunpack.c.l.b16 %v469
        %v506 = vunpack.c.l.b16 %v470
        %v507 = vunpack.c.l.b16 %v471
        %v508 = vunpack.c.l.b16 %v472
        %v509 = vunpack.c.l.b16 %v473
        %v510 = vunpack.c.l.b16 %v474
        %v511 = vpack.c.b16 %v496, %v495
        %v512 = vpack.c.b16 %v498, %v497
        %v513 = vpack.c.b16 %v500, %v499
        %v514 = vpack.c.b16 %v502, %v501
        %v515 = vpack.c.b16 %v504, %v503
        %v516 = vpack.c.b16 %v506, %v505
        %v517 = vpack.c.b16 %v508, %v507
        %v518 = vpack.c.b16 %v510, %v509
        %527 = vmatpush.bf16.msra.mxu0 %v518
        %528 = vmatpush.bf16.msra.mxu0 %v517
        %529 = vmatpush.bf16.msra.mxu0 %v516
        %530 = vmatpush.bf16.msra.mxu0 %v515
        %531 = vmatpush.bf16.msra.mxu0 %v514
        %532 = vmatpush.bf16.msra.mxu0 %v513
        %533 = vmatpush.bf16.msra.mxu0 %v512
        %534 = vmatpush.bf16.msra.mxu0 %v511
        %535 = vmatmul.bf16.gmra.mxu0 %v443
        %v536 = vpop.f32.mrf.mxu0
        %v537 = vadd.f32 %v477, %v536
        %v538 = vpop.f32.mrf.mxu0
        %v539 = vadd.f32 %v477, %v538
        %540 = vmatmul.bf16.gmra.mxu0 %v444
        %v541 = vpop.f32.mrf.mxu0
        %v542 = vadd.f32 %v477, %v541
        %v543 = vpop.f32.mrf.mxu0
        %v544 = vadd.f32 %v477, %v543
        %545 = vmatmul.bf16.gmra.mxu0 %v445
        %v546 = vpop.f32.mrf.mxu0
        %v547 = vadd.f32 %v477, %v546
        %v548 = vpop.f32.mrf.mxu0
        %v549 = vadd.f32 %v477, %v548
        %550 = vmatmul.bf16.gmra.mxu0 %v446
        %v551 = vpop.f32.mrf.mxu0
        %v552 = vadd.f32 %v477, %v551
        %v553 = vpop.f32.mrf.mxu0
        %v554 = vadd.f32 %v477, %v553
        %555 = vmatmul.bf16.gmra.mxu0 %v447
        %v556 = vpop.f32.mrf.mxu0
        %v557 = vadd.f32 %v477, %v556
        %v558 = vpop.f32.mrf.mxu0
        %v559 = vadd.f32 %v477, %v558
        %560 = vmatmul.bf16.gmra.mxu0 %v448
        %v561 = vpop.f32.mrf.mxu0
        %v562 = vadd.f32 %v477, %v561
        %v563 = vpop.f32.mrf.mxu0
        %v564 = vadd.f32 %v477, %v563
        %565 = vmatmul.bf16.gmra.mxu0 %v449
        %v566 = vpop.f32.mrf.mxu0
        %v567 = vadd.f32 %v477, %v566
        %v568 = vpop.f32.mrf.mxu0
        %v569 = vadd.f32 %v477, %v568
        %570 = vmatmul.bf16.gmra.mxu0 %v450
        %v571 = vpop.f32.mrf.mxu0
        %v572 = vadd.f32 %v477, %v571
        %v573 = vpop.f32.mrf.mxu0
        %v574 = vadd.f32 %v477, %v573
        %575 = vmatmul.bf16.gmra.mxu0 %v451
        %v576 = vpop.f32.mrf.mxu0
        %v577 = vadd.f32 %v477, %v576
        %v578 = vpop.f32.mrf.mxu0
        %v579 = vadd.f32 %v477, %v578
        %580 = vmatmul.bf16.gmra.mxu0 %v452
        %v581 = vpop.f32.mrf.mxu0
        %v582 = vadd.f32 %v477, %v581
        %v583 = vpop.f32.mrf.mxu0
        %v584 = vadd.f32 %v477, %v583
        %585 = vmatmul.bf16.gmra.mxu0 %v453
        %v586 = vpop.f32.mrf.mxu0
        %v587 = vadd.f32 %v477, %v586
        %v588 = vpop.f32.mrf.mxu0
        %v589 = vadd.f32 %v477, %v588
        %590 = vmatmul.bf16.gmra.mxu0 %v454
        %v591 = vpop.f32.mrf.mxu0
        %v592 = vadd.f32 %v477, %v591
        %v593 = vpop.f32.mrf.mxu0
        %v594 = vadd.f32 %v477, %v593
        %595 = vmatmul.bf16.gmra.mxu0 %v455
        %v596 = vpop.f32.mrf.mxu0
        %v597 = vadd.f32 %v477, %v596
        %v598 = vpop.f32.mrf.mxu0
        %v599 = vadd.f32 %v477, %v598
        %600 = vmatmul.bf16.gmra.mxu0 %v456
        %v601 = vpop.f32.mrf.mxu0
        %v602 = vadd.f32 %v477, %v601
        %v603 = vpop.f32.mrf.mxu0
        %v604 = vadd.f32 %v477, %v603
        %605 = vmatmul.bf16.gmra.mxu0 %v457
        %v606 = vpop.f32.mrf.mxu0
        %v607 = vadd.f32 %v477, %v606
        %v608 = vpop.f32.mrf.mxu0
        %v609 = vadd.f32 %v477, %v608
        %610 = vmatmul.bf16.gmra.mxu0 %v458
        %v611 = vpop.f32.mrf.mxu0
        %v612 = vadd.f32 %v477, %v611
        %v613 = vpop.f32.mrf.mxu0
        %v614 = vadd.f32 %v477, %v613
        %615 = vdwg.mxu0
        %v616 = vmax.f32 %v537, 0.0
        %v617 = vmax.f32 %v539, 0.0
        %v618 = vmax.f32 %v542, 0.0
        %v619 = vmax.f32 %v544, 0.0
        %v620 = vmax.f32 %v547, 0.0
        %v621 = vmax.f32 %v549, 0.0
        %v622 = vmax.f32 %v552, 0.0
        %v623 = vmax.f32 %v554, 0.0
        %v624 = vmax.f32 %v557, 0.0
        %v625 = vmax.f32 %v559, 0.0
        %v626 = vmax.f32 %v562, 0.0
        %v627 = vmax.f32 %v564, 0.0
        %v628 = vmax.f32 %v567, 0.0
        %v629 = vmax.f32 %v569, 0.0
        %v630 = vmax.f32 %v572, 0.0
        %v631 = vmax.f32 %v574, 0.0
        %v632 = vmax.f32 %v577, 0.0
        %v633 = vmax.f32 %v579, 0.0
        %v634 = vmax.f32 %v582, 0.0
        %v635 = vmax.f32 %v584, 0.0
        %v636 = vmax.f32 %v587, 0.0
        %v637 = vmax.f32 %v589, 0.0
        %v638 = vmax.f32 %v592, 0.0
        %v639 = vmax.f32 %v594, 0.0
        %v640 = vmax.f32 %v597, 0.0
        %v641 = vmax.f32 %v599, 0.0
        %v642 = vmax.f32 %v602, 0.0
        %v643 = vmax.f32 %v604, 0.0
        %v644 = vmax.f32 %v607, 0.0
        %v645 = vmax.f32 %v609, 0.0
        %v646 = vmax.f32 %v612, 0.0
        %v647 = vmax.f32 %v614, 0.0
        %v648 = vpack.c.bf16 %v616, %v616
        %v649 = vpack.c.bf16 %v617, %v617
        %v650 = vpack.c.bf16 %v618, %v618
        %v651 = vpack.c.bf16 %v619, %v619
        %v652 = vpack.c.bf16 %v620, %v620
        %v653 = vpack.c.bf16 %v621, %v621
        %v654 = vpack.c.bf16 %v622, %v622
        %v655 = vpack.c.bf16 %v623, %v623
        %v656 = vpack.c.bf16 %v624, %v624
        %v657 = vpack.c.bf16 %v625, %v625
        %v658 = vpack.c.bf16 %v626, %v626
        %v659 = vpack.c.bf16 %v627, %v627
        %v660 = vpack.c.bf16 %v628, %v628
        %v661 = vpack.c.bf16 %v629, %v629
        %v662 = vpack.c.bf16 %v630, %v630
        %v663 = vpack.c.bf16 %v631, %v631
        %v664 = vpack.c.bf16 %v632, %v632
        %v665 = vpack.c.bf16 %v633, %v633
        %v666 = vpack.c.bf16 %v634, %v634
        %v667 = vpack.c.bf16 %v635, %v635
        %v668 = vpack.c.bf16 %v636, %v636
        %v669 = vpack.c.bf16 %v637, %v637
        %v670 = vpack.c.bf16 %v638, %v638
        %v671 = vpack.c.bf16 %v639, %v639
        %v672 = vpack.c.bf16 %v640, %v640
        %v673 = vpack.c.bf16 %v641, %v641
        %v674 = vpack.c.bf16 %v642, %v642
        %v675 = vpack.c.bf16 %v643, %v643
        %v676 = vpack.c.bf16 %v644, %v644
        %v677 = vpack.c.bf16 %v645, %v645
        %v678 = vpack.c.bf16 %v646, %v646
        %v679 = vpack.c.bf16 %v647, %v647
        %680 = vst [vmem:[#allocation2] sm:$0xff] 0
        %681 = vst [vmem:[#allocation2 + $0x8] sm:$0xf] 0
        %682 = vst [vmem:[#allocation2 + $0xc] sm:$0xff] 0
        %683 = vst [vmem:[#allocation2 + $0x14] sm:$0xf] 0
        %684 = vst [vmem:[#allocation2 + $0x18] sm:$0xff] 0
        %685 = vst [vmem:[#allocation2 + $0x20] sm:$0xf] 0
        %686 = vst [vmem:[#allocation2 + $0x174] sm:$0xff] 0
        %687 = vst [vmem:[#allocation2 + $0x17c] sm:$0xf] 0
        %688 = vst [vmem:[#allocation2 + $0x180] sm:$0xff] 0
        %689 = vst [vmem:[#allocation2 + $0x188] sm:$0xf] 0
        %690 = vst [vmem:[#allocation2 + $0x18c] sm:$0xff] 0
        %691 = vst [vmem:[#allocation2 + $0x194] sm:$0xf] 0
        %692 = vst [vmem:[#allocation2 + $0x24] sm:$0xf] %v648
        %693 = vst [vmem:[#allocation2 + $0x30] sm:$0xf] %v649
        %694 = vst [vmem:[#allocation2 + $0x3c] sm:$0xf] %v650
        %695 = vst [vmem:[#allocation2 + $0x48] sm:$0xf] %v651
        %696 = vst [vmem:[#allocation2 + $0x54] sm:$0xf] %v652
        %697 = vst [vmem:[#allocation2 + $0x60] sm:$0xf] %v653
        %698 = vst [vmem:[#allocation2 + $0x6c] sm:$0xf] %v654
        %699 = vst [vmem:[#allocation2 + $0x78] sm:$0xf] %v655
        %700 = vst [vmem:[#allocation2 + $0x84] sm:$0xf] %v656
        %701 = vst [vmem:[#allocation2 + $0x90] sm:$0xf] %v657
        %702 = vst [vmem:[#allocation2 + $0x9c] sm:$0xf] %v658
        %703 = vst [vmem:[#allocation2 + $0xa8] sm:$0xf] %v659
        %704 = vst [vmem:[#allocation2 + $0xb4] sm:$0xf] %v660
        %705 = vst [vmem:[#allocation2 + $0xc0] sm:$0xf] %v661
        %706 = vst [vmem:[#allocation2 + $0xcc] sm:$0xf] %v662
        %707 = vst [vmem:[#allocation2 + $0xd8] sm:$0xf] %v663
        %708 = vst [vmem:[#allocation2 + $0xe4] sm:$0xf] %v664
        %709 = vst [vmem:[#allocation2 + $0xf0] sm:$0xf] %v665
        %710 = vst [vmem:[#allocation2 + $0xfc] sm:$0xf] %v666
        %711 = vst [vmem:[#allocation2 + $0x108] sm:$0xf] %v667
        %712 = vst [vmem:[#allocation2 + $0x114] sm:$0xf] %v668
        %713 = vst [vmem:[#allocation2 + $0x120] sm:$0xf] %v669
        %714 = vst [vmem:[#allocation2 + $0x12c] sm:$0xf] %v670
        %715 = vst [vmem:[#allocation2 + $0x138] sm:$0xf] %v671
        %716 = vst [vmem:[#allocation2 + $0x144] sm:$0xf] %v672
        %717 = vst [vmem:[#allocation2 + $0x150] sm:$0xf] %v673
        %718 = vst [vmem:[#allocation2 + $0x15c] sm:$0xf] %v674
        %719 = vst [vmem:[#allocation2 + $0x168] sm:$0xf] %v675
        %720 = vst [vmem:[#allocation2 + $0x174] sm:$0xf] %v676
        %721 = vst [vmem:[#allocation2 + $0x180] sm:$0xf] %v677
        %722 = vst [vmem:[#allocation2 + $0x10] sm:$0xf] %v648
        %723 = vst [vmem:[#allocation2 + $0x1c] sm:$0xf] %v649
        %724 = vst [vmem:[#allocation2 + $0x28] sm:$0xf] %v650
        %725 = vst [vmem:[#allocation2 + $0x34] sm:$0xf] %v651
        %726 = vst [vmem:[#allocation2 + $0x40] sm:$0xf] %v652
        %727 = vst [vmem:[#allocation2 + $0x4c] sm:$0xf] %v653
        %728 = vst [vmem:[#allocation2 + $0x58] sm:$0xf] %v654
        %729 = vst [vmem:[#allocation2 + $0x64] sm:$0xf] %v655
        %730 = vst [vmem:[#allocation2 + $0x70] sm:$0xf] %v656
        %731 = vst [vmem:[#allocation2 + $0x7c] sm:$0xf] %v657
        %732 = vst [vmem:[#allocation2 + $0x88] sm:$0xf] %v658
        %733 = vst [vmem:[#allocation2 + $0x94] sm:$0xf] %v659
        %734 = vst [vmem:[#allocation2 + $0xa0] sm:$0xf] %v660
        %735 = vst [vmem:[#allocation2 + $0xac] sm:$0xf] %v661
        %736 = vst [vmem:[#allocation2 + $0xb8] sm:$0xf] %v662
        %737 = vst [vmem:[#allocation2 + $0xc4] sm:$0xf] %v663
        %738 = vst [vmem:[#allocation2 + $0xd0] sm:$0xf] %v664
        %739 = vst [vmem:[#allocation2 + $0xdc] sm:$0xf] %v665
        %740 = vst [vmem:[#allocation2 + $0xe8] sm:$0xf] %v666
        %741 = vst [vmem:[#allocation2 + $0xf4] sm:$0xf] %v667
        %742 = vst [vmem:[#allocation2 + $0x100] sm:$0xf] %v668
        %743 = vst [vmem:[#allocation2 + $0x10c] sm:$0xf] %v669
        %744 = vst [vmem:[#allocation2 + $0x118] sm:$0xf] %v670
        %745 = vst [vmem:[#allocation2 + $0x124] sm:$0xf] %v671
        %746 = vst [vmem:[#allocation2 + $0x130] sm:$0xf] %v672
        %747 = vst [vmem:[#allocation2 + $0x13c] sm:$0xf] %v673
        %748 = vst [vmem:[#allocation2 + $0x148] sm:$0xf] %v674
        %749 = vst [vmem:[#allocation2 + $0x154] sm:$0xf] %v675
        %750 = vst [vmem:[#allocation2 + $0x160] sm:$0xf] %v676
        %751 = vst [vmem:[#allocation2 + $0x16c] sm:$0xf] %v677
        %752 = vst [vmem:[#allocation2 + $0x178] sm:$0xf] %v678
        %753 = vst [vmem:[#allocation2 + $0x184] sm:$0xf] %v679
        %754 = vst [vmem:[#allocation2 + $0x14] sm:$0xf] %v650
        %755 = vst [vmem:[#allocation2 + $0x20] sm:$0xf] %v651
        %756 = vst [vmem:[#allocation2 + $0x2c] sm:$0xf] %v652
        %757 = vst [vmem:[#allocation2 + $0x38] sm:$0xf] %v653
        %758 = vst [vmem:[#allocation2 + $0x44] sm:$0xf] %v654
        %759 = vst [vmem:[#allocation2 + $0x50] sm:$0xf] %v655
        %760 = vst [vmem:[#allocation2 + $0x5c] sm:$0xf] %v656
        %761 = vst [vmem:[#allocation2 + $0x68] sm:$0xf] %v657
        %762 = vst [vmem:[#allocation2 + $0x74] sm:$0xf] %v658
        %763 = vst [vmem:[#allocation2 + $0x80] sm:$0xf] %v659
        %764 = vst [vmem:[#allocation2 + $0x8c] sm:$0xf] %v660
        %765 = vst [vmem:[#allocation2 + $0x98] sm:$0xf] %v661
        %766 = vst [vmem:[#allocation2 + $0xa4] sm:$0xf] %v662
        %767 = vst [vmem:[#allocation2 + $0xb0] sm:$0xf] %v663
        %768 = vst [vmem:[#allocation2 + $0xbc] sm:$0xf] %v664
        %769 = vst [vmem:[#allocation2 + $0xc8] sm:$0xf] %v665
        %770 = vst [vmem:[#allocation2 + $0xd4] sm:$0xf] %v666
        %771 = vst [vmem:[#allocation2 + $0xe0] sm:$0xf] %v667
        %772 = vst [vmem:[#allocation2 + $0xec] sm:$0xf] %v668
        %773 = vst [vmem:[#allocation2 + $0xf8] sm:$0xf] %v669
        %774 = vst [vmem:[#allocation2 + $0x104] sm:$0xf] %v670
        %775 = vst [vmem:[#allocation2 + $0x110] sm:$0xf] %v671
        %776 = vst [vmem:[#allocation2 + $0x11c] sm:$0xf] %v672
        %777 = vst [vmem:[#allocation2 + $0x128] sm:$0xf] %v673
        %778 = vst [vmem:[#allocation2 + $0x134] sm:$0xf] %v674
        %779 = vst [vmem:[#allocation2 + $0x140] sm:$0xf] %v675
        %780 = vst [vmem:[#allocation2 + $0x14c] sm:$0xf] %v676
        %781 = vst [vmem:[#allocation2 + $0x158] sm:$0xf] %v677
        %782 = vst [vmem:[#allocation2 + $0x164] sm:$0xf] %v678
        %783 = vst [vmem:[#allocation2 + $0x170] sm:$0xf] %v679
        %v784 = vlaneseq
        %v785 = vshrl.u32 %v784, 7
        %v786 = vadd.s32 %v785, 8
        %v787 = vadd.s32 %v785, 16
        %v788 = vadd.s32 %v785, 24
        %v789 = vadd.s32 %v785, 32
        %v790 = vadd.s32 %v785, 40
        %v791 = vadd.s32 %v785, 48
        %v792 = vadd.s32 %v785, 56
        %v793 = vadd.s32 %v785, 64
        %v794 = vadd.s32 %v785, 72
        %v795 = vadd.s32 %v785, 80
        %v796 = vadd.s32 %v785, 88
        %v797 = vadd.s32 %v785, 96
        %v798 = vadd.s32 %v785, 104
        %v799 = vadd.s32 %v785, 112
        %v800 = vadd.s32 %v785, 120
        %v801 = vadd.s32 %v785, 128
        %v802 = vadd.s32 %v785, 136
        %v803 = vadd.s32 %v785, 144
        %v804 = vadd.s32 %v785, 152
        %v805 = vadd.s32 %v785, 160
        %v806 = vadd.s32 %v785, 168
        %v807 = vadd.s32 %v785, 176
        %v808 = vadd.s32 %v785, 184
        %v809 = vadd.s32 %v785, 192
        %v810 = vadd.s32 %v785, 200
        %v811 = vadd.s32 %v785, 208
        %v812 = vadd.s32 %v785, 216
        %v813 = vadd.s32 %v785, 224
        %v814 = vadd.s32 %v785, 232
        %v815 = vadd.s32 %v785, 240
        %v816 = vadd.s32 %v785, 248
        %vm817 = vcmp.lt.s32.totalorder %v785, 0
        %v818 = vsub.s32 0, %v785
        %v819 = vsel %vm817, %v818, %v785
        %v820 = vshrl.u32 %v819, 4
        %v821 = vand.u32 %v819, 15
        %v822 = vsub.s32 0, %v821
        %v823 = vsel %vm817, %v822, %v821
        %vm824 = vcmp.lt.s32.totalorder %v786, 0
        %v825 = vsub.s32 0, %v786
        %v826 = vsel %vm824, %v825, %v786
        %v827 = vshrl.u32 %v826, 4
        %v828 = vand.u32 %v826, 15
        %v829 = vsub.s32 0, %v828
        %v830 = vsel %vm824, %v829, %v828
        %vm831 = vcmp.lt.s32.totalorder %v787, 0
        %v832 = vsub.s32 0, %v787
        %v833 = vsel %vm831, %v832, %v787
        %v834 = vshrl.u32 %v833, 4
        %v835 = vand.u32 %v833, 15
        %v836 = vsub.s32 0, %v835
        %v837 = vsel %vm831, %v836, %v835
        %vm838 = vcmp.lt.s32.totalorder %v788, 0
        %v839 = vsub.s32 0, %v788
        %v840 = vsel %vm838, %v839, %v788
        %v841 = vshrl.u32 %v840, 4
        %v842 = vand.u32 %v840, 15
        %v843 = vsub.s32 0, %v842
        %v844 = vsel %vm838, %v843, %v842
        %vm845 = vcmp.lt.s32.totalorder %v789, 0
        %v846 = vsub.s32 0, %v789
        %v847 = vsel %vm845, %v846, %v789
        %v848 = vshrl.u32 %v847, 4
        %v849 = vand.u32 %v847, 15
        %v850 = vsub.s32 0, %v849
        %v851 = vsel %vm845, %v850, %v849
        %vm852 = vcmp.lt.s32.totalorder %v790, 0
        %v853 = vsub.s32 0, %v790
        %v854 = vsel %vm852, %v853, %v790
        %v855 = vshrl.u32 %v854, 4
        %v856 = vand.u32 %v854, 15
        %v857 = vsub.s32 0, %v856
        %v858 = vsel %vm852, %v857, %v856
        %vm859 = vcmp.lt.s32.totalorder %v791, 0
        %v860 = vsub.s32 0, %v791
        %v861 = vsel %vm859, %v860, %v791
        %v862 = vshrl.u32 %v861, 4
        %v863 = vand.u32 %v861, 15
        %v864 = vsub.s32 0, %v863
        %v865 = vsel %vm859, %v864, %v863
        %vm866 = vcmp.lt.s32.totalorder %v792, 0
        %v867 = vsub.s32 0, %v792
        %v868 = vsel %vm866, %v867, %v792
        %v869 = vshrl.u32 %v868, 4
        %v870 = vand.u32 %v868, 15
        %v871 = vsub.s32 0, %v870
        %v872 = vsel %vm866, %v871, %v870
        %vm873 = vcmp.lt.s32.totalorder %v793, 0
        %v874 = vsub.s32 0, %v793
        %v875 = vsel %vm873, %v874, %v793
        %v876 = vshrl.u32 %v875, 4
        %v877 = vand.u32 %v875, 15
        %v878 = vsub.s32 0, %v877
        %v879 = vsel %vm873, %v878, %v877
        %vm880 = vcmp.lt.s32.totalorder %v794, 0
        %v881 = vsub.s32 0, %v794
        %v882 = vsel %vm880, %v881, %v794
        %v883 = vshrl.u32 %v882, 4
        %v884 = vand.u32 %v882, 15
        %v885 = vsub.s32 0, %v884
        %v886 = vsel %vm880, %v885, %v884
        %vm887 = vcmp.lt.s32.totalorder %v795, 0
        %v888 = vsub.s32 0, %v795
        %v889 = vsel %vm887, %v888, %v795
        %v890 = vshrl.u32 %v889, 4
        %v891 = vand.u32 %v889, 15
        %v892 = vsub.s32 0, %v891
        %v893 = vsel %vm887, %v892, %v891
        %vm894 = vcmp.lt.s32.totalorder %v796, 0
        %v895 = vsub.s32 0, %v796
        %v896 = vsel %vm894, %v895, %v796
        %v897 = vshrl.u32 %v896, 4
        %v898 = vand.u32 %v896, 15
        %v899 = vsub.s32 0, %v898
        %v900 = vsel %vm894, %v899, %v898
        %vm901 = vcmp.lt.s32.totalorder %v797, 0
        %v902 = vsub.s32 0, %v797
        %v903 = vsel %vm901, %v902, %v797
        %v904 = vshrl.u32 %v903, 4
        %v905 = vand.u32 %v903, 15
        %v906 = vsub.s32 0, %v905
        %v907 = vsel %vm901, %v906, %v905
        %vm908 = vcmp.lt.s32.totalorder %v798, 0
        %v909 = vsub.s32 0, %v798
        %v910 = vsel %vm908, %v909, %v798
        %v911 = vshrl.u32 %v910, 4
        %v912 = vand.u32 %v910, 15
        %v913 = vsub.s32 0, %v912
        %v914 = vsel %vm908, %v913, %v912
        %vm915 = vcmp.lt.s32.totalorder %v799, 0
        %v916 = vsub.s32 0, %v799
        %v917 = vsel %vm915, %v916, %v799
        %v918 = vshrl.u32 %v917, 4
        %v919 = vand.u32 %v917, 15
        %v920 = vsub.s32 0, %v919
        %v921 = vsel %vm915, %v920, %v919
        %vm922 = vcmp.lt.s32.totalorder %v800, 0
        %v923 = vsub.s32 0, %v800
        %v924 = vsel %vm922, %v923, %v800
        %v925 = vshrl.u32 %v924, 4
        %v926 = vand.u32 %v924, 15
        %v927 = vsub.s32 0, %v926
        %v928 = vsel %vm922, %v927, %v926
        %vm929 = vcmp.lt.s32.totalorder %v801, 0
        %v930 = vsub.s32 0, %v801
        %v931 = vsel %vm929, %v930, %v801
        %v932 = vshrl.u32 %v931, 4
        %v933 = vand.u32 %v931, 15
        %v934 = vsub.s32 0, %v933
        %v935 = vsel %vm929, %v934, %v933
        %vm936 = vcmp.lt.s32.totalorder %v802, 0
        %v937 = vsub.s32 0, %v802
        %v938 = vsel %vm936, %v937, %v802
        %v939 = vshrl.u32 %v938, 4
        %v940 = vand.u32 %v938, 15
        %v941 = vsub.s32 0, %v940
        %v942 = vsel %vm936, %v941, %v940
        %vm943 = vcmp.lt.s32.totalorder %v803, 0
        %v944 = vsub.s32 0, %v803
        %v945 = vsel %vm943, %v944, %v803
        %v946 = vshrl.u32 %v945, 4
        %v947 = vand.u32 %v945, 15
        %v948 = vsub.s32 0, %v947
        %v949 = vsel %vm943, %v948, %v947
        %vm950 = vcmp.lt.s32.totalorder %v804, 0
        %v951 = vsub.s32 0, %v804
        %v952 = vsel %vm950, %v951, %v804
        %v953 = vshrl.u32 %v952, 4
        %v954 = vand.u32 %v952, 15
        %v955 = vsub.s32 0, %v954
        %v956 = vsel %vm950, %v955, %v954
        %vm957 = vcmp.lt.s32.totalorder %v805, 0
        %v958 = vsub.s32 0, %v805
        %v959 = vsel %vm957, %v958, %v805
        %v960 = vshrl.u32 %v959, 4
        %v961 = vand.u32 %v959, 15
        %v962 = vsub.s32 0, %v961
        %v963 = vsel %vm957, %v962, %v961
        %vm964 = vcmp.lt.s32.totalorder %v806, 0
        %v965 = vsub.s32 0, %v806
        %v966 = vsel %vm964, %v965, %v806
        %v967 = vshrl.u32 %v966, 4
        %v968 = vand.u32 %v966, 15
        %v969 = vsub.s32 0, %v968
        %v970 = vsel %vm964, %v969, %v968
        %vm971 = vcmp.lt.s32.totalorder %v807, 0
        %v972 = vsub.s32 0, %v807
        %v973 = vsel %vm971, %v972, %v807
        %v974 = vshrl.u32 %v973, 4
        %v975 = vand.u32 %v973, 15
        %v976 = vsub.s32 0, %v975
        %v977 = vsel %vm971, %v976, %v975
        %vm978 = vcmp.lt.s32.totalorder %v808, 0
        %v979 = vsub.s32 0, %v808
        %v980 = vsel %vm978, %v979, %v808
        %v981 = vshrl.u32 %v980, 4
        %v982 = vand.u32 %v980, 15
        %v983 = vsub.s32 0, %v982
        %v984 = vsel %vm978, %v983, %v982
        %vm985 = vcmp.lt.s32.totalorder %v809, 0
        %v986 = vsub.s32 0, %v809
        %v987 = vsel %vm985, %v986, %v809
        %v988 = vshrl.u32 %v987, 4
        %v989 = vand.u32 %v987, 15
        %v990 = vsub.s32 0, %v989
        %v991 = vsel %vm985, %v990, %v989
        %vm992 = vcmp.lt.s32.totalorder %v810, 0
        %v993 = vsub.s32 0, %v810
        %v994 = vsel %vm992, %v993, %v810
        %v995 = vshrl.u32 %v994, 4
        %v996 = vand.u32 %v994, 15
        %v997 = vsub.s32 0, %v996
        %v998 = vsel %vm992, %v997, %v996
        %vm999 = vcmp.lt.s32.totalorder %v811, 0
        %v1000 = vsub.s32 0, %v811
        %v1001 = vsel %vm999, %v1000, %v811
        %v1002 = vshrl.u32 %v1001, 4
        %v1003 = vand.u32 %v1001, 15
        %v1004 = vsub.s32 0, %v1003
        %v1005 = vsel %vm999, %v1004, %v1003
        %vm1006 = vcmp.lt.s32.totalorder %v812, 0
        %v1007 = vsub.s32 0, %v812
        %v1008 = vsel %vm1006, %v1007, %v812
        %v1009 = vshrl.u32 %v1008, 4
        %v1010 = vand.u32 %v1008, 15
        %v1011 = vsub.s32 0, %v1010
        %v1012 = vsel %vm1006, %v1011, %v1010
        %vm1013 = vcmp.lt.s32.totalorder %v813, 0
        %v1014 = vsub.s32 0, %v813
        %v1015 = vsel %vm1013, %v1014, %v813
        %v1016 = vshrl.u32 %v1015, 4
        %v1017 = vand.u32 %v1015, 15
        %v1018 = vsub.s32 0, %v1017
        %v1019 = vsel %vm1013, %v1018, %v1017
        %vm1020 = vcmp.lt.s32.totalorder %v814, 0
        %v1021 = vsub.s32 0, %v814
        %v1022 = vsel %vm1020, %v1021, %v814
        %v1023 = vshrl.u32 %v1022, 4
        %v1024 = vand.u32 %v1022, 15
        %v1025 = vsub.s32 0, %v1024
        %v1026 = vsel %vm1020, %v1025, %v1024
        %vm1027 = vcmp.lt.s32.totalorder %v815, 0
        %v1028 = vsub.s32 0, %v815
        %v1029 = vsel %vm1027, %v1028, %v815
        %v1030 = vshrl.u32 %v1029, 4
        %v1031 = vand.u32 %v1029, 15
        %v1032 = vsub.s32 0, %v1031
        %v1033 = vsel %vm1027, %v1032, %v1031
        %vm1034 = vcmp.lt.s32.totalorder %v816, 0
        %v1035 = vsub.s32 0, %v816
        %v1036 = vsel %vm1034, %v1035, %v816
        %v1037 = vshrl.u32 %v1036, 4
        %v1038 = vand.u32 %v1036, 15
        %v1039 = vsub.s32 0, %v1038
        %v1040 = vsel %vm1034, %v1039, %v1038
        %vm1041 = vcmp.ne.s32.totalorder %v823, 0
        %vm1042 = vcmp.ne.s32.totalorder %v830, 0
        %vm1043 = vcmp.ne.s32.totalorder %v837, 0
        %vm1044 = vcmp.ne.s32.totalorder %v844, 0
        %vm1045 = vcmp.ne.s32.totalorder %v851, 0
        %vm1046 = vcmp.ne.s32.totalorder %v858, 0
        %vm1047 = vcmp.ne.s32.totalorder %v865, 0
        %vm1048 = vcmp.ne.s32.totalorder %v872, 0
        %vm1049 = vcmp.ne.s32.totalorder %v879, 0
        %vm1050 = vcmp.ne.s32.totalorder %v886, 0
        %vm1051 = vcmp.ne.s32.totalorder %v893, 0
        %vm1052 = vcmp.ne.s32.totalorder %v900, 0
        %vm1053 = vcmp.ne.s32.totalorder %v907, 0
        %vm1054 = vcmp.ne.s32.totalorder %v914, 0
        %vm1055 = vcmp.ne.s32.totalorder %v921, 0
        %vm1056 = vcmp.ne.s32.totalorder %v928, 0
        %vm1057 = vcmp.ne.s32.totalorder %v935, 0
        %vm1058 = vcmp.ne.s32.totalorder %v942, 0
        %vm1059 = vcmp.ne.s32.totalorder %v949, 0
        %vm1060 = vcmp.ne.s32.totalorder %v956, 0
        %vm1061 = vcmp.ne.s32.totalorder %v963, 0
        %vm1062 = vcmp.ne.s32.totalorder %v970, 0
        %vm1063 = vcmp.ne.s32.totalorder %v977, 0
        %vm1064 = vcmp.ne.s32.totalorder %v984, 0
        %vm1065 = vcmp.ne.s32.totalorder %v991, 0
        %vm1066 = vcmp.ne.s32.totalorder %v998, 0
        %vm1067 = vcmp.ne.s32.totalorder %v1005, 0
        %vm1068 = vcmp.ne.s32.totalorder %v1012, 0
        %vm1069 = vcmp.ne.s32.totalorder %v1019, 0
        %vm1070 = vcmp.ne.s32.totalorder %v1026, 0
        %vm1071 = vcmp.ne.s32.totalorder %v1033, 0
        %vm1072 = vcmp.ne.s32.totalorder %v1040, 0
        %vm1073 = vcmp.lt.s32.totalorder %v823, 0
        %vm1074 = vcmp.lt.s32.totalorder %v830, 0
        %vm1075 = vcmp.lt.s32.totalorder %v837, 0
        %vm1076 = vcmp.lt.s32.totalorder %v844, 0
        %vm1077 = vcmp.lt.s32.totalorder %v851, 0
        %vm1078 = vcmp.lt.s32.totalorder %v858, 0
        %vm1079 = vcmp.lt.s32.totalorder %v865, 0
        %vm1080 = vcmp.lt.s32.totalorder %v872, 0
        %vm1081 = vcmp.lt.s32.totalorder %v879, 0
        %vm1082 = vcmp.lt.s32.totalorder %v886, 0
        %vm1083 = vcmp.lt.s32.totalorder %v893, 0
        %vm1084 = vcmp.lt.s32.totalorder %v900, 0
        %vm1085 = vcmp.lt.s32.totalorder %v907, 0
        %vm1086 = vcmp.lt.s32.totalorder %v914, 0
        %vm1087 = vcmp.lt.s32.totalorder %v921, 0
        %vm1088 = vcmp.lt.s32.totalorder %v928, 0
        %vm1089 = vcmp.lt.s32.totalorder %v935, 0
        %vm1090 = vcmp.lt.s32.totalorder %v942, 0
        %vm1091 = vcmp.lt.s32.totalorder %v949, 0
        %vm1092 = vcmp.lt.s32.totalorder %v956, 0
        %vm1093 = vcmp.lt.s32.totalorder %v963, 0
        %vm1094 = vcmp.lt.s32.totalorder %v970, 0
        %vm1095 = vcmp.lt.s32.totalorder %v977, 0
        %vm1096 = vcmp.lt.s32.totalorder %v984, 0
        %vm1097 = vcmp.lt.s32.totalorder %v991, 0
        %vm1098 = vcmp.lt.s32.totalorder %v998, 0
        %vm1099 = vcmp.lt.s32.totalorder %v1005, 0
        %vm1100 = vcmp.lt.s32.totalorder %v1012, 0
        %vm1101 = vcmp.lt.s32.totalorder %v1019, 0
        %vm1102 = vcmp.lt.s32.totalorder %v1026, 0
        %vm1103 = vcmp.lt.s32.totalorder %v1033, 0
        %vm1104 = vcmp.lt.s32.totalorder %v1040, 0
        %vm1105 = vmand %vm1073, %vm1041
        %vm1106 = vmand %vm1074, %vm1042
        %vm1107 = vmand %vm1075, %vm1043
        %vm1108 = vmand %vm1076, %vm1044
        %vm1109 = vmand %vm1077, %vm1045
        %vm1110 = vmand %vm1078, %vm1046
        %vm1111 = vmand %vm1079, %vm1047
        %vm1112 = vmand %vm1080, %vm1048
        %vm1113 = vmand %vm1081, %vm1049
        %vm1114 = vmand %vm1082, %vm1050
        %vm1115 = vmand %vm1083, %vm1051
        %vm1116 = vmand %vm1084, %vm1052
        %vm1117 = vmand %vm1085, %vm1053
        %vm1118 = vmand %vm1086, %vm1054
        %vm1119 = vmand %vm1087, %vm1055
        %vm1120 = vmand %vm1088, %vm1056
        %vm1121 = vmand %vm1089, %vm1057
        %vm1122 = vmand %vm1090, %vm1058
        %vm1123 = vmand %vm1091, %vm1059
        %vm1124 = vmand %vm1092, %vm1060
        %vm1125 = vmand %vm1093, %vm1061
        %vm1126 = vmand %vm1094, %vm1062
        %vm1127 = vmand %vm1095, %vm1063
        %vm1128 = vmand %vm1096, %vm1064
        %vm1129 = vmand %vm1097, %vm1065
        %vm1130 = vmand %vm1098, %vm1066
        %vm1131 = vmand %vm1099, %vm1067
        %vm1132 = vmand %vm1100, %vm1068
        %vm1133 = vmand %vm1101, %vm1069
        %vm1134 = vmand %vm1102, %vm1070
        %vm1135 = vmand %vm1103, %vm1071
        %vm1136 = vmand %vm1104, %vm1072
        %v1137 = vadd.s32 %v823, 16
        %v1138 = vadd.s32 %v830, 16
        %v1139 = vadd.s32 %v837, 16
        %v1140 = vadd.s32 %v844, 16
        %v1141 = vadd.s32 %v851, 16
        %v1142 = vadd.s32 %v858, 16
        %v1143 = vadd.s32 %v865, 16
        %v1144 = vadd.s32 %v872, 16
        %v1145 = vadd.s32 %v879, 16
        %v1146 = vadd.s32 %v886, 16
        %v1147 = vadd.s32 %v893, 16
        %v1148 = vadd.s32 %v900, 16
        %v1149 = vadd.s32 %v907, 16
        %v1150 = vadd.s32 %v914, 16
        %v1151 = vadd.s32 %v921, 16
        %v1152 = vadd.s32 %v928, 16
        %v1153 = vadd.s32 %v935, 16
        %v1154 = vadd.s32 %v942, 16
        %v1155 = vadd.s32 %v949, 16
        %v1156 = vadd.s32 %v956, 16
        %v1157 = vadd.s32 %v963, 16
        %v1158 = vadd.s32 %v970, 16
        %v1159 = vadd.s32 %v977, 16
        %v1160 = vadd.s32 %v984, 16
        %v1161 = vadd.s32 %v991, 16
        %v1162 = vadd.s32 %v998, 16
        %v1163 = vadd.s32 %v1005, 16
        %v1164 = vadd.s32 %v1012, 16
        %v1165 = vadd.s32 %v1019, 16
        %v1166 = vadd.s32 %v1026, 16
        %v1167 = vadd.s32 %v1033, 16
        %v1168 = vadd.s32 %v1040, 16
        %v1169 = vsel %vm1105, %v1137, %v823
        %v1170 = vsel %vm1106, %v1138, %v830
        %v1171 = vsel %vm1107, %v1139, %v837
        %v1172 = vsel %vm1108, %v1140, %v844
        %v1173 = vsel %vm1109, %v1141, %v851
        %v1174 = vsel %vm1110, %v1142, %v858
        %v1175 = vsel %vm1111, %v1143, %v865
        %v1176 = vsel %vm1112, %v1144, %v872
        %v1177 = vsel %vm1113, %v1145, %v879
        %v1178 = vsel %vm1114, %v1146, %v886
        %v1179 = vsel %vm1115, %v1147, %v893
        %v1180 = vsel %vm1116, %v1148, %v900
        %v1181 = vsel %vm1117, %v1149, %v907
        %v1182 = vsel %vm1118, %v1150, %v914
        %v1183 = vsel %vm1119, %v1151, %v921
        %v1184 = vsel %vm1120, %v1152, %v928
        %v1185 = vsel %vm1121, %v1153, %v935
        %v1186 = vsel %vm1122, %v1154, %v942
        %v1187 = vsel %vm1123, %v1155, %v949
        %v1188 = vsel %vm1124, %v1156, %v956
        %v1189 = vsel %vm1125, %v1157, %v963
        %v1190 = vsel %vm1126, %v1158, %v970
        %v1191 = vsel %vm1127, %v1159, %v977
        %v1192 = vsel %vm1128, %v1160, %v984
        %v1193 = vsel %vm1129, %v1161, %v991
        %v1194 = vsel %vm1130, %v1162, %v998
        %v1195 = vsel %vm1131, %v1163, %v1005
        %v1196 = vsel %vm1132, %v1164, %v1012
        %v1197 = vsel %vm1133, %v1165, %v1019
        %v1198 = vsel %vm1134, %v1166, %v1026
        %v1199 = vsel %vm1135, %v1167, %v1033
        %v1200 = vsel %vm1136, %v1168, %v1040
        %vm1201 = vcmp.gt.s32.totalorder %v1169, 0
        %vm1202 = vcmp.gt.s32.totalorder %v1170, 0
        %vm1203 = vcmp.gt.s32.totalorder %v1171, 0
        %vm1204 = vcmp.gt.s32.totalorder %v1172, 0
        %vm1205 = vcmp.gt.s32.totalorder %v1173, 0
        %vm1206 = vcmp.gt.s32.totalorder %v1174, 0
        %vm1207 = vcmp.gt.s32.totalorder %v1175, 0
        %vm1208 = vcmp.gt.s32.totalorder %v1176, 0
        %vm1209 = vcmp.gt.s32.totalorder %v1177, 0
        %vm1210 = vcmp.gt.s32.totalorder %v1178, 0
        %vm1211 = vcmp.gt.s32.totalorder %v1179, 0
        %vm1212 = vcmp.gt.s32.totalorder %v1180, 0
        %vm1213 = vcmp.gt.s32.totalorder %v1181, 0
        %vm1214 = vcmp.gt.s32.totalorder %v1182, 0
        %vm1215 = vcmp.gt.s32.totalorder %v1183, 0
        %vm1216 = vcmp.gt.s32.totalorder %v1184, 0
        %vm1217 = vcmp.gt.s32.totalorder %v1185, 0
        %vm1218 = vcmp.gt.s32.totalorder %v1186, 0
        %vm1219 = vcmp.gt.s32.totalorder %v1187, 0
        %vm1220 = vcmp.gt.s32.totalorder %v1188, 0
        %vm1221 = vcmp.gt.s32.totalorder %v1189, 0
        %vm1222 = vcmp.gt.s32.totalorder %v1190, 0
        %vm1223 = vcmp.gt.s32.totalorder %v1191, 0
        %vm1224 = vcmp.gt.s32.totalorder %v1192, 0
        %vm1225 = vcmp.gt.s32.totalorder %v1193, 0
        %vm1226 = vcmp.gt.s32.totalorder %v1194, 0
        %vm1227 = vcmp.gt.s32.totalorder %v1195, 0
        %vm1228 = vcmp.gt.s32.totalorder %v1196, 0
        %vm1229 = vcmp.gt.s32.totalorder %v1197, 0
        %vm1230 = vcmp.gt.s32.totalorder %v1198, 0
        %vm1231 = vcmp.gt.s32.totalorder %v1199, 0
        %vm1232 = vcmp.gt.s32.totalorder %v1200, 0
        %vm1233 = vcmp.lt.s32.totalorder %v1169, 15
        %vm1234 = vcmp.lt.s32.totalorder %v1170, 15
        %vm1235 = vcmp.lt.s32.totalorder %v1171, 15
        %vm1236 = vcmp.lt.s32.totalorder %v1172, 15
        %vm1237 = vcmp.lt.s32.totalorder %v1173, 15
        %vm1238 = vcmp.lt.s32.totalorder %v1174, 15
        %vm1239 = vcmp.lt.s32.totalorder %v1175, 15
        %vm1240 = vcmp.lt.s32.totalorder %v1176, 15
        %vm1241 = vcmp.lt.s32.totalorder %v1177, 15
        %vm1242 = vcmp.lt.s32.totalorder %v1178, 15
        %vm1243 = vcmp.lt.s32.totalorder %v1179, 15
        %vm1244 = vcmp.lt.s32.totalorder %v1180, 15
        %vm1245 = vcmp.lt.s32.totalorder %v1181, 15
        %vm1246 = vcmp.lt.s32.totalorder %v1182, 15
        %vm1247 = vcmp.lt.s32.totalorder %v1183, 15
        %vm1248 = vcmp.lt.s32.totalorder %v1184, 15
        %vm1249 = vcmp.lt.s32.totalorder %v1185, 15
        %vm1250 = vcmp.lt.s32.totalorder %v1186, 15
        %vm1251 = vcmp.lt.s32.totalorder %v1187, 15
        %vm1252 = vcmp.lt.s32.totalorder %v1188, 15
        %vm1253 = vcmp.lt.s32.totalorder %v1189, 15
        %vm1254 = vcmp.lt.s32.totalorder %v1190, 15
        %vm1255 = vcmp.lt.s32.totalorder %v1191, 15
        %vm1256 = vcmp.lt.s32.totalorder %v1192, 15
        %vm1257 = vcmp.lt.s32.totalorder %v1193, 15
        %vm1258 = vcmp.lt.s32.totalorder %v1194, 15
        %vm1259 = vcmp.lt.s32.totalorder %v1195, 15
        %vm1260 = vcmp.lt.s32.totalorder %v1196, 15
        %vm1261 = vcmp.lt.s32.totalorder %v1197, 15
        %vm1262 = vcmp.lt.s32.totalorder %v1198, 15
        %vm1263 = vcmp.lt.s32.totalorder %v1199, 15
        %vm1264 = vcmp.lt.s32.totalorder %v1200, 15
        %v1265 = vld [vmem:[#allocation2] sm:$0x88]
        %v1266 = vld [vmem:[#allocation2 + $0x8] sm:$0x8]
        %v1267 = vld [vmem:[#allocation2 + $0xc] sm:$0xff]
        %v1268 = vld [vmem:[#allocation2 + $0x14] sm:$0xf]
        %v1269 = vld [vmem:[#allocation2 + $0x18] sm:$0xff]
        %v1270 = vld [vmem:[#allocation2 + $0x20] sm:$0xf]
        %v1271 = vld [vmem:[#allocation2 + $0x24] sm:$0xff]
        %v1272 = vld [vmem:[#allocation2 + $0x2c] sm:$0xf]
        %v1273 = vld [vmem:[#allocation2 + $0x30] sm:$0xff]
        %v1274 = vld [vmem:[#allocation2 + $0x38] sm:$0xf]
        %v1275 = vld [vmem:[#allocation2 + $0x3c] sm:$0xff]
        %v1276 = vld [vmem:[#allocation2 + $0x44] sm:$0xf]
        %v1277 = vld [vmem:[#allocation2 + $0x48] sm:$0xff]
        %v1278 = vld [vmem:[#allocation2 + $0x50] sm:$0xf]
        %v1279 = vld [vmem:[#allocation2 + $0x54] sm:$0xff]
        %v1280 = vld [vmem:[#allocation2 + $0x5c] sm:$0xf]
        %v1281 = vld [vmem:[#allocation2 + $0x60] sm:$0xff]
        %v1282 = vld [vmem:[#allocation2 + $0x68] sm:$0xf]
        %v1283 = vld [vmem:[#allocation2 + $0x6c] sm:$0xff]
        %v1284 = vld [vmem:[#allocation2 + $0x74] sm:$0xf]
        %v1285 = vld [vmem:[#allocation2 + $0x78] sm:$0xff]
        %v1286 = vld [vmem:[#allocation2 + $0x80] sm:$0xf]
        %v1287 = vld [vmem:[#allocation2 + $0x84] sm:$0xff]
        %v1288 = vld [vmem:[#allocation2 + $0x8c] sm:$0xf]
        %v1289 = vld [vmem:[#allocation2 + $0x90] sm:$0xff]
        %v1290 = vld [vmem:[#allocation2 + $0x98] sm:$0xf]
        %v1291 = vld [vmem:[#allocation2 + $0x9c] sm:$0xff]
        %v1292 = vld [vmem:[#allocation2 + $0xa4] sm:$0xf]
        %v1293 = vld [vmem:[#allocation2 + $0xa8] sm:$0xff]
        %v1294 = vld [vmem:[#allocation2 + $0xb0] sm:$0xf]
        %v1295 = vld [vmem:[#allocation2 + $0xb4] sm:$0xff]
        %v1296 = vld [vmem:[#allocation2 + $0xbc] sm:$0xf]
        %v1297 = vld [vmem:[#allocation2 + $0xc0] sm:$0xff]
        %v1298 = vld [vmem:[#allocation2 + $0xc8] sm:$0xf]
        %v1299 = vld [vmem:[#allocation2 + $0xcc] sm:$0xff]
        %v1300 = vld [vmem:[#allocation2 + $0xd4] sm:$0xf]
        %v1301 = vld [vmem:[#allocation2 + $0xd8] sm:$0xff]
        %v1302 = vld [vmem:[#allocation2 + $0xe0] sm:$0xf]
        %v1303 = vld [vmem:[#allocation2 + $0xe4] sm:$0xff]
        %v1304 = vld [vmem:[#allocation2 + $0xec] sm:$0xf]
        %v1305 = vld [vmem:[#allocation2 + $0xf0] sm:$0xff]
        %v1306 = vld [vmem:[#allocation2 + $0xf8] sm:$0xf]
        %v1307 = vld [vmem:[#allocation2 + $0xfc] sm:$0xff]
        %v1308 = vld [vmem:[#allocation2 + $0x104] sm:$0xf]
        %v1309 = vld [vmem:[#allocation2 + $0x108] sm:$0xff]
        %v1310 = vld [vmem:[#allocation2 + $0x110] sm:$0xf]
        %v1311 = vld [vmem:[#allocation2 + $0x114] sm:$0xff]
        %v1312 = vld [vmem:[#allocation2 + $0x11c] sm:$0xf]
        %v1313 = vld [vmem:[#allocation2 + $0x120] sm:$0xff]
        %v1314 = vld [vmem:[#allocation2 + $0x128] sm:$0xf]
        %v1315 = vld [vmem:[#allocation2 + $0x12c] sm:$0xff]
        %v1316 = vld [vmem:[#allocation2 + $0x134] sm:$0xf]
        %v1317 = vld [vmem:[#allocation2 + $0x138] sm:$0xff]
        %v1318 = vld [vmem:[#allocation2 + $0x140] sm:$0xf]
        %v1319 = vld [vmem:[#allocation2 + $0x144] sm:$0xff]
        %v1320 = vld [vmem:[#allocation2 + $0x14c] sm:$0xf]
        %v1321 = vld [vmem:[#allocation2 + $0x150] sm:$0xff]
        %v1322 = vld [vmem:[#allocation2 + $0x158] sm:$0xf]
        %v1323 = vld [vmem:[#allocation2 + $0x15c] sm:$0xff]
        %v1324 = vld [vmem:[#allocation2 + $0x164] sm:$0xf]
        %v1325 = vld [vmem:[#allocation2 + $0x168] sm:$0xff]
        %v1326 = vld [vmem:[#allocation2 + $0x170] sm:$0xf]
        %v1327 = vld [vmem:[#allocation2 + $0x174] sm:$0xff]
        %v1328 = vld [vmem:[#allocation2 + $0x17c] sm:$0xf]
        %v1329 = vld [vmem:[#allocation2 + $0x180] sm:$0xff]
        %v1330 = vld [vmem:[#allocation2 + $0x188] sm:$0xf]
        %v1331 = vsel %vm1201, 1, 0
        %v1332 = vsel %vm1202, 1, 0
        %v1333 = vsel %vm1203, 1, 0
        %v1334 = vsel %vm1204, 1, 0
        %v1335 = vsel %vm1205, 1, 0
        %v1336 = vsel %vm1206, 1, 0
        %v1337 = vsel %vm1207, 1, 0
        %v1338 = vsel %vm1208, 1, 0
        %v1339 = vsel %vm1209, 1, 0
        %v1340 = vsel %vm1210, 1, 0
        %v1341 = vsel %vm1211, 1, 0
        %v1342 = vsel %vm1212, 1, 0
        %v1343 = vsel %vm1213, 1, 0
        %v1344 = vsel %vm1214, 1, 0
        %v1345 = vsel %vm1215, 1, 0
        %v1346 = vsel %vm1216, 1, 0
        %v1347 = vsel %vm1217, 1, 0
        %v1348 = vsel %vm1218, 1, 0
        %v1349 = vsel %vm1219, 1, 0
        %v1350 = vsel %vm1220, 1, 0
        %v1351 = vsel %vm1221, 1, 0
        %v1352 = vsel %vm1222, 1, 0
        %v1353 = vsel %vm1223, 1, 0
        %v1354 = vsel %vm1224, 1, 0
        %v1355 = vsel %vm1225, 1, 0
        %v1356 = vsel %vm1226, 1, 0
        %v1357 = vsel %vm1227, 1, 0
        %v1358 = vsel %vm1228, 1, 0
        %v1359 = vsel %vm1229, 1, 0
        %v1360 = vsel %vm1230, 1, 0
        %v1361 = vsel %vm1231, 1, 0
        %v1362 = vsel %vm1232, 1, 0
        %vm1363 = vcmp.eq.s32.totalorder %v1331, 1
        %vm1364 = vcmp.eq.s32.totalorder %v1332, 1
        %vm1365 = vcmp.eq.s32.totalorder %v1333, 1
        %vm1366 = vcmp.eq.s32.totalorder %v1334, 1
        %vm1367 = vcmp.eq.s32.totalorder %v1335, 1
        %vm1368 = vcmp.eq.s32.totalorder %v1336, 1
        %vm1369 = vcmp.eq.s32.totalorder %v1337, 1
        %vm1370 = vcmp.eq.s32.totalorder %v1338, 1
        %vm1371 = vcmp.eq.s32.totalorder %v1339, 1
        %vm1372 = vcmp.eq.s32.totalorder %v1340, 1
        %vm1373 = vcmp.eq.s32.totalorder %v1341, 1
        %vm1374 = vcmp.eq.s32.totalorder %v1342, 1
        %vm1375 = vcmp.eq.s32.totalorder %v1343, 1
        %vm1376 = vcmp.eq.s32.totalorder %v1344, 1
        %vm1377 = vcmp.eq.s32.totalorder %v1345, 1
        %vm1378 = vcmp.eq.s32.totalorder %v1346, 1
        %vm1379 = vcmp.eq.s32.totalorder %v1347, 1
        %vm1380 = vcmp.eq.s32.totalorder %v1348, 1
        %vm1381 = vcmp.eq.s32.totalorder %v1349, 1
        %vm1382 = vcmp.eq.s32.totalorder %v1350, 1
        %vm1383 = vcmp.eq.s32.totalorder %v1351, 1
        %vm1384 = vcmp.eq.s32.totalorder %v1352, 1
        %vm1385 = vcmp.eq.s32.totalorder %v1353, 1
        %vm1386 = vcmp.eq.s32.totalorder %v1354, 1
        %vm1387 = vcmp.eq.s32.totalorder %v1355, 1
        %vm1388 = vcmp.eq.s32.totalorder %v1356, 1
        %vm1389 = vcmp.eq.s32.totalorder %v1357, 1
        %vm1390 = vcmp.eq.s32.totalorder %v1358, 1
        %vm1391 = vcmp.eq.s32.totalorder %v1359, 1
        %vm1392 = vcmp.eq.s32.totalorder %v1360, 1
        %vm1393 = vcmp.eq.s32.totalorder %v1361, 1
        %vm1394 = vcmp.eq.s32.totalorder %v1362, 1
        %vm1395 = vmpackc.low %vm1363, %vm1363
        %vm1396 = vmpackc.low %vm1364, %vm1364
        %vm1397 = vmpackc.low %vm1365, %vm1365
        %vm1398 = vmpackc.low %vm1366, %vm1366
        %vm1399 = vmpackc.low %vm1367, %vm1367
        %vm1400 = vmpackc.low %vm1368, %vm1368
        %vm1401 = vmpackc.low %vm1369, %vm1369
        %vm1402 = vmpackc.low %vm1370, %vm1370
        %vm1403 = vmpackc.low %vm1371, %vm1371
        %vm1404 = vmpackc.low %vm1372, %vm1372
        %vm1405 = vmpackc.low %vm1373, %vm1373
        %vm1406 = vmpackc.low %vm1374, %vm1374
        %vm1407 = vmpackc.low %vm1375, %vm1375
        %vm1408 = vmpackc.low %vm1376, %vm1376
        %vm1409 = vmpackc.low %vm1377, %vm1377
        %vm1410 = vmpackc.low %vm1378, %vm1378
        %vm1411 = vmpackc.low %vm1379, %vm1379
        %vm1412 = vmpackc.low %vm1380, %vm1380
        %vm1413 = vmpackc.low %vm1381, %vm1381
        %vm1414 = vmpackc.low %vm1382, %vm1382
        %vm1415 = vmpackc.low %vm1383, %vm1383
        %vm1416 = vmpackc.low %vm1384, %vm1384
        %vm1417 = vmpackc.low %vm1385, %vm1385
        %vm1418 = vmpackc.low %vm1386, %vm1386
        %vm1419 = vmpackc.low %vm1387, %vm1387
        %vm1420 = vmpackc.low %vm1388, %vm1388
        %vm1421 = vmpackc.low %vm1389, %vm1389
        %vm1422 = vmpackc.low %vm1390, %vm1390
        %vm1423 = vmpackc.low %vm1391, %vm1391
        %vm1424 = vmpackc.low %vm1392, %vm1392
        %vm1425 = vmpackc.low %vm1393, %vm1393
        %vm1426 = vmpackc.low %vm1394, %vm1394
        %v1427 = vsel %vm1395, 65537, 0
        %v1428 = vsel %vm1396, 65537, 0
        %v1429 = vsel %vm1397, 65537, 0
        %v1430 = vsel %vm1398, 65537, 0
        %v1431 = vsel %vm1399, 65537, 0
        %v1432 = vsel %vm1400, 65537, 0
        %v1433 = vsel %vm1401, 65537, 0
        %v1434 = vsel %vm1402, 65537, 0
        %v1435 = vsel %vm1403, 65537, 0
        %v1436 = vsel %vm1404, 65537, 0
        %v1437 = vsel %vm1405, 65537, 0
        %v1438 = vsel %vm1406, 65537, 0
        %v1439 = vsel %vm1407, 65537, 0
        %v1440 = vsel %vm1408, 65537, 0
        %v1441 = vsel %vm1409, 65537, 0
        %v1442 = vsel %vm1410, 65537, 0
        %v1443 = vsel %vm1411, 65537, 0
        %v1444 = vsel %vm1412, 65537, 0
        %v1445 = vsel %vm1413, 65537, 0
        %v1446 = vsel %vm1414, 65537, 0
        %v1447 = vsel %vm1415, 65537, 0
        %v1448 = vsel %vm1416, 65537, 0
        %v1449 = vsel %vm1417, 65537, 0
        %v1450 = vsel %vm1418, 65537, 0
        %v1451 = vsel %vm1419, 65537, 0
        %v1452 = vsel %vm1420, 65537, 0
        %v1453 = vsel %vm1421, 65537, 0
        %v1454 = vsel %vm1422, 65537, 0
        %v1455 = vsel %vm1423, 65537, 0
        %v1456 = vsel %vm1424, 65537, 0
        %v1457 = vsel %vm1425, 65537, 0
        %v1458 = vsel %vm1426, 65537, 0
        %vm1459 = vsmask.f32 3328
        %vm1460 = vsmask.f32 7440
        %vm1461 = vmor %vm1459, %vm1460
        %v1463 = vshll.u32 %v1427, 16
        %v1465 = vrot.slane %v1463, 5
        %v1466 = vshrl.u32 %v1427, 16
        %v1468 = vrot.slane %v1466, 4
        %v1469 = vor.u32 %v1468, %v1465
        %v1470 = vrot.slane %v1469, 4
        %v1472 = vshll.u32 %v1428, 16
        %v1474 = vrot.slane %v1472, 5
        %v1475 = vsel %vm1461, %v1470, %v1474
        %v1476 = vshrl.u32 %v1428, 16
        %v1478 = vrot.slane %v1476, 4
        %v1479 = vor.u32 %v1478, %v1474
        %v1480 = vrot.slane %v1479, 4
        %v1482 = vshll.u32 %v1429, 16
        %v1484 = vrot.slane %v1482, 5
        %v1485 = vsel %vm1461, %v1480, %v1484
        %v1486 = vshrl.u32 %v1429, 16
        %v1488 = vrot.slane %v1486, 4
        %v1489 = vor.u32 %v1488, %v1484
        %v1490 = vrot.slane %v1489, 4
        %v1492 = vshll.u32 %v1430, 16
        %v1494 = vrot.slane %v1492, 5
        %v1495 = vsel %vm1461, %v1490, %v1494
        %v1496 = vshrl.u32 %v1430, 16
        %v1498 = vrot.slane %v1496, 4
        %v1499 = vor.u32 %v1498, %v1494
        %v1500 = vrot.slane %v1499, 4
        %v1502 = vshll.u32 %v1431, 16
        %v1504 = vrot.slane %v1502, 5
        %v1505 = vsel %vm1461, %v1500, %v1504
        %v1506 = vshrl.u32 %v1431, 16
        %v1508 = vrot.slane %v1506, 4
        %v1509 = vor.u32 %v1508, %v1504
        %v1510 = vrot.slane %v1509, 4
        %v1512 = vshll.u32 %v1432, 16
        %v1514 = vrot.slane %v1512, 5
        %v1515 = vsel %vm1461, %v1510, %v1514
        %v1516 = vshrl.u32 %v1432, 16
        %v1518 = vrot.slane %v1516, 4
        %v1519 = vor.u32 %v1518, %v1514
        %v1520 = vrot.slane %v1519, 4
        %v1522 = vshll.u32 %v1433, 16
        %v1524 = vrot.slane %v1522, 5
        %v1525 = vsel %vm1461, %v1520, %v1524
        %v1526 = vshrl.u32 %v1433, 16
        %v1528 = vrot.slane %v1526, 4
        %v1529 = vor.u32 %v1528, %v1524
        %v1530 = vrot.slane %v1529, 4
        %v1532 = vshll.u32 %v1434, 16
        %v1534 = vrot.slane %v1532, 5
        %v1535 = vsel %vm1461, %v1530, %v1534
        %v1536 = vshrl.u32 %v1434, 16
        %v1538 = vrot.slane %v1536, 4
        %v1539 = vor.u32 %v1538, %v1534
        %v1540 = vrot.slane %v1539, 4
        %v1542 = vshll.u32 %v1435, 16
        %v1544 = vrot.slane %v1542, 5
        %v1545 = vsel %vm1461, %v1540, %v1544
        %v1546 = vshrl.u32 %v1435, 16
        %v1548 = vrot.slane %v1546, 4
        %v1549 = vor.u32 %v1548, %v1544
        %v1550 = vrot.slane %v1549, 4
        %v1552 = vshll.u32 %v1436, 16
        %v1554 = vrot.slane %v1552, 5
        %v1555 = vsel %vm1461, %v1550, %v1554
        %v1556 = vshrl.u32 %v1436, 16
        %v1558 = vrot.slane %v1556, 4
        %v1559 = vor.u32 %v1558, %v1554
        %v1560 = vrot.slane %v1559, 4
        %v1562 = vshll.u32 %v1437, 16
        %v1564 = vrot.slane %v1562, 5
        %v1565 = vsel %vm1461, %v1560, %v1564
        %v1566 = vshrl.u32 %v1437, 16
        %v1568 = vrot.slane %v1566, 4
        %v1569 = vor.u32 %v1568, %v1564
        %v1570 = vrot.slane %v1569, 4
        %v1572 = vshll.u32 %v1438, 16
        %v1574 = vrot.slane %v1572, 5
        %v1575 = vsel %vm1461, %v1570, %v1574
        %v1576 = vshrl.u32 %v1438, 16
        %v1578 = vrot.slane %v1576, 4
        %v1579 = vor.u32 %v1578, %v1574
        %v1580 = vrot.slane %v1579, 4
        %v1582 = vshll.u32 %v1439, 16
        %v1584 = vrot.slane %v1582, 5
        %v1585 = vsel %vm1461, %v1580, %v1584
        %v1586 = vshrl.u32 %v1439, 16
        %v1588 = vrot.slane %v1586, 4
        %v1589 = vor.u32 %v1588, %v1584
        %v1590 = vrot.slane %v1589, 4
        %v1592 = vshll.u32 %v1440, 16
        %v1594 = vrot.slane %v1592, 5
        %v1595 = vsel %vm1461, %v1590, %v1594
        %v1596 = vshrl.u32 %v1440, 16
        %v1598 = vrot.slane %v1596, 4
        %v1599 = vor.u32 %v1598, %v1594
        %v1600 = vrot.slane %v1599, 4
        %v1602 = vshll.u32 %v1441, 16
        %v1604 = vrot.slane %v1602, 5
        %v1605 = vsel %vm1461, %v1600, %v1604
        %v1606 = vshrl.u32 %v1441, 16
        %v1608 = vrot.slane %v1606, 4
        %v1609 = vor.u32 %v1608, %v1604
        %v1610 = vrot.slane %v1609, 4
        %v1612 = vshll.u32 %v1442, 16
        %v1614 = vrot.slane %v1612, 5
        %v1615 = vsel %vm1461, %v1610, %v1614
        %v1616 = vshrl.u32 %v1442, 16
        %v1618 = vrot.slane %v1616, 4
        %v1619 = vor.u32 %v1618, %v1614
        %v1620 = vrot.slane %v1619, 4
        %v1622 = vshll.u32 %v1443, 16
        %v1624 = vrot.slane %v1622, 5
        %v1625 = vsel %vm1461, %v1620, %v1624
        %v1626 = vshrl.u32 %v1443, 16
        %v1628 = vrot.slane %v1626, 4
        %v1629 = vor.u32 %v1628, %v1624
        %v1630 = vrot.slane %v1629, 4
        %v1632 = vshll.u32 %v1444, 16
        %v1634 = vrot.slane %v1632, 5
        %v1635 = vsel %vm1461, %v1630, %v1634
        %v1636 = vshrl.u32 %v1444, 16
        %v1638 = vrot.slane %v1636, 4
        %v1639 = vor.u32 %v1638, %v1634
        %v1640 = vrot.slane %v1639, 4
        %v1642 = vshll.u32 %v1445, 16
        %v1644 = vrot.slane %v1642, 5
        %v1645 = vsel %vm1461, %v1640, %v1644
        %v1646 = vshrl.u32 %v1445, 16
        %v1648 = vrot.slane %v1646, 4
        %v1649 = vor.u32 %v1648, %v1644
        %v1650 = vrot.slane %v1649, 4
        %v1652 = vshll.u32 %v1446, 16
        %v1654 = vrot.slane %v1652, 5
        %v1655 = vsel %vm1461, %v1650, %v1654
        %v1656 = vshrl.u32 %v1446, 16
        %v1658 = vrot.slane %v1656, 4
        %v1659 = vor.u32 %v1658, %v1654
        %v1660 = vrot.slane %v1659, 4
        %v1662 = vshll.u32 %v1447, 16
        %v1664 = vrot.slane %v1662, 5
        %v1665 = vsel %vm1461, %v1660, %v1664
        %v1666 = vshrl.u32 %v1447, 16
        %v1668 = vrot.slane %v1666, 4
        %v1669 = vor.u32 %v1668, %v1664
        %v1670 = vrot.slane %v1669, 4
        %v1672 = vshll.u32 %v1448, 16
        %v1674 = vrot.slane %v1672, 5
        %v1675 = vsel %vm1461, %v1670, %v1674
        %v1676 = vshrl.u32 %v1448, 16
        %v1678 = vrot.slane %v1676, 4
        %v1679 = vor.u32 %v1678, %v1674
        %v1680 = vrot.slane %v1679, 4
        %v1682 = vshll.u32 %v1449, 16
        %v1684 = vrot.slane %v1682, 5
        %v1685 = vsel %vm1461, %v1680, %v1684
        %v1686 = vshrl.u32 %v1449, 16
        %v1688 = vrot.slane %v1686, 4
        %v1689 = vor.u32 %v1688, %v1684
        %v1690 = vrot.slane %v1689, 4
        %v1692 = vshll.u32 %v1450, 16
        %v1694 = vrot.slane %v1692, 5
        %v1695 = vsel %vm1461, %v1690, %v1694
        %v1696 = vshrl.u32 %v1450, 16
        %v1698 = vrot.slane %v1696, 4
        %v1699 = vor.u32 %v1698, %v1694
        %v1700 = vrot.slane %v1699, 4
        %v1702 = vshll.u32 %v1451, 16
        %v1704 = vrot.slane %v1702, 5
        %v1705 = vsel %vm1461, %v1700, %v1704
        %v1706 = vshrl.u32 %v1451, 16
        %v1708 = vrot.slane %v1706, 4
        %v1709 = vor.u32 %v1708, %v1704
        %v1710 = vrot.slane %v1709, 4
        %v1712 = vshll.u32 %v1452, 16
        %v1714 = vrot.slane %v1712, 5
        %v1715 = vsel %vm1461, %v1710, %v1714
        %v1716 = vshrl.u32 %v1452, 16
        %v1718 = vrot.slane %v1716, 4
        %v1719 = vor.u32 %v1718, %v1714
        %v1720 = vrot.slane %v1719, 4
        %v1722 = vshll.u32 %v1453, 16
        %v1724 = vrot.slane %v1722, 5
        %v1725 = vsel %vm1461, %v1720, %v1724
        %v1726 = vshrl.u32 %v1453, 16
        %v1728 = vrot.slane %v1726, 4
        %v1729 = vor.u32 %v1728, %v1724
        %v1730 = vrot.slane %v1729, 4
        %v1732 = vshll.u32 %v1454, 16
        %v1734 = vrot.slane %v1732, 5
        %v1735 = vsel %vm1461, %v1730, %v1734
        %v1736 = vshrl.u32 %v1454, 16
        %v1738 = vrot.slane %v1736, 4
        %v1739 = vor.u32 %v1738, %v1734
        %v1740 = vrot.slane %v1739, 4
        %v1742 = vshll.u32 %v1455, 16
        %v1744 = vrot.slane %v1742, 5
        %v1745 = vsel %vm1461, %v1740, %v1744
        %v1746 = vshrl.u32 %v1455, 16
        %v1748 = vrot.slane %v1746, 4
        %v1749 = vor.u32 %v1748, %v1744
        %v1750 = vrot.slane %v1749, 4
        %v1752 = vshll.u32 %v1456, 16
        %v1754 = vrot.slane %v1752, 5
        %v1755 = vsel %vm1461, %v1750, %v1754
        %v1756 = vshrl.u32 %v1456, 16
        %v1758 = vrot.slane %v1756, 4
        %v1759 = vor.u32 %v1758, %v1754
        %v1760 = vrot.slane %v1759, 4
        %v1762 = vshll.u32 %v1457, 16
        %v1764 = vrot.slane %v1762, 5
        %v1765 = vsel %vm1461, %v1760, %v1764
        %v1766 = vshrl.u32 %v1457, 16
        %v1768 = vrot.slane %v1766, 4
        %v1769 = vor.u32 %v1768, %v1764
        %v1770 = vrot.slane %v1769, 4
        %v1772 = vshll.u32 %v1458, 16
        %v1774 = vrot.slane %v1772, 5
        %v1775 = vsel %vm1461, %v1770, %v1774
        %v1776 = vshrl.u32 %v1458, 16
        %v1778 = vrot.slane %v1776, 4
        %v1779 = vor.u32 %v1778, %v1774
        %v1780 = vrot.slane %v1779, 4
        %v1781 = vunpack.c.l.b16 %v1465
        %v1782 = vunpack.c.h.b16 %v1465
        %v1783 = vunpack.c.l.b16 0
        %v1784 = vunpack.c.h.b16 0
        %vm1785 = vcmp.ne.s32.totalorder %v1781, %v1783
        %vm1786 = vcmp.ne.s32.totalorder %v1782, %v1784
        %vm1787 = vmpackc.low %vm1786, %vm1785
        %v1788 = vunpack.c.l.b16 %v1475
        %v1789 = vunpack.c.h.b16 %v1475
        %v1790 = vunpack.c.l.b16 0
        %v1791 = vunpack.c.h.b16 0
        %vm1792 = vcmp.ne.s32.totalorder %v1788, %v1790
        %vm1793 = vcmp.ne.s32.totalorder %v1789, %v1791
        %vm1794 = vmpackc.low %vm1793, %vm1792
        %v1795 = vunpack.c.l.b16 %v1485
        %v1796 = vunpack.c.h.b16 %v1485
        %v1797 = vunpack.c.l.b16 0
        %v1798 = vunpack.c.h.b16 0
        %vm1799 = vcmp.ne.s32.totalorder %v1795, %v1797
        %vm1800 = vcmp.ne.s32.totalorder %v1796, %v1798
        %vm1801 = vmpackc.low %vm1800, %vm1799
        %v1802 = vunpack.c.l.b16 %v1495
        %v1803 = vunpack.c.h.b16 %v1495
        %v1804 = vunpack.c.l.b16 0
        %v1805 = vunpack.c.h.b16 0
        %vm1806 = vcmp.ne.s32.totalorder %v1802, %v1804
        %vm1807 = vcmp.ne.s32.totalorder %v1803, %v1805
        %vm1808 = vmpackc.low %vm1807, %vm1806
        %v1809 = vunpack.c.l.b16 %v1505
        %v1810 = vunpack.c.h.b16 %v1505
        %v1811 = vunpack.c.l.b16 0
        %v1812 = vunpack.c.h.b16 0
        %vm1813 = vcmp.ne.s32.totalorder %v1809, %v1811
        %vm1814 = vcmp.ne.s32.totalorder %v1810, %v1812
        %vm1815 = vmpackc.low %vm1814, %vm1813
        %v1816 = vunpack.c.l.b16 %v1515
        %v1817 = vunpack.c.h.b16 %v1515
        %v1818 = vunpack.c.l.b16 0
        %v1819 = vunpack.c.h.b16 0
        %vm1820 = vcmp.ne.s32.totalorder %v1816, %v1818
        %vm1821 = vcmp.ne.s32.totalorder %v1817, %v1819
        %vm1822 = vmpackc.low %vm1821, %vm1820
        %v1823 = vunpack.c.l.b16 %v1525
        %v1824 = vunpack.c.h.b16 %v1525
        %v1825 = vunpack.c.l.b16 0
        %v1826 = vunpack.c.h.b16 0
        %vm1827 = vcmp.ne.s32.totalorder %v1823, %v1825
        %vm1828 = vcmp.ne.s32.totalorder %v1824, %v1826
        %vm1829 = vmpackc.low %vm1828, %vm1827
        %v1830 = vunpack.c.l.b16 %v1535
        %v1831 = vunpack.c.h.b16 %v1535
        %v1832 = vunpack.c.l.b16 0
        %v1833 = vunpack.c.h.b16 0
        %vm1834 = vcmp.ne.s32.totalorder %v1830, %v1832
        %vm1835 = vcmp.ne.s32.totalorder %v1831, %v1833
        %vm1836 = vmpackc.low %vm1835, %vm1834
        %v1837 = vunpack.c.l.b16 %v1545
        %v1838 = vunpack.c.h.b16 %v1545
        %v1839 = vunpack.c.l.b16 0
        %v1840 = vunpack.c.h.b16 0
        %vm1841 = vcmp.ne.s32.totalorder %v1837, %v1839
        %vm1842 = vcmp.ne.s32.totalorder %v1838, %v1840
        %vm1843 = vmpackc.low %vm1842, %vm1841
        %v1844 = vunpack.c.l.b16 %v1555
        %v1845 = vunpack.c.h.b16 %v1555
        %v1846 = vunpack.c.l.b16 0
        %v1847 = vunpack.c.h.b16 0
        %vm1848 = vcmp.ne.s32.totalorder %v1844, %v1846
        %vm1849 = vcmp.ne.s32.totalorder %v1845, %v1847
        %vm1850 = vmpackc.low %vm1849, %vm1848
        %v1851 = vunpack.c.l.b16 %v1565
        %v1852 = vunpack.c.h.b16 %v1565
        %v1853 = vunpack.c.l.b16 0
        %v1854 = vunpack.c.h.b16 0
        %vm1855 = vcmp.ne.s32.totalorder %v1851, %v1853
        %vm1856 = vcmp.ne.s32.totalorder %v1852, %v1854
        %vm1857 = vmpackc.low %vm1856, %vm1855
        %v1858 = vunpack.c.l.b16 %v1575
        %v1859 = vunpack.c.h.b16 %v1575
        %v1860 = vunpack.c.l.b16 0
        %v1861 = vunpack.c.h.b16 0
        %vm1862 = vcmp.ne.s32.totalorder %v1858, %v1860
        %vm1863 = vcmp.ne.s32.totalorder %v1859, %v1861
        %vm1864 = vmpackc.low %vm1863, %vm1862
        %v1865 = vunpack.c.l.b16 %v1585
        %v1866 = vunpack.c.h.b16 %v1585
        %v1867 = vunpack.c.l.b16 0
        %v1868 = vunpack.c.h.b16 0
        %vm1869 = vcmp.ne.s32.totalorder %v1865, %v1867
        %vm1870 = vcmp.ne.s32.totalorder %v1866, %v1868
        %vm1871 = vmpackc.low %vm1870, %vm1869
        %v1872 = vunpack.c.l.b16 %v1595
        %v1873 = vunpack.c.h.b16 %v1595
        %v1874 = vunpack.c.l.b16 0
        %v1875 = vunpack.c.h.b16 0
        %vm1876 = vcmp.ne.s32.totalorder %v1872, %v1874
        %vm1877 = vcmp.ne.s32.totalorder %v1873, %v1875
        %vm1878 = vmpackc.low %vm1877, %vm1876
        %v1879 = vunpack.c.l.b16 %v1605
        %v1880 = vunpack.c.h.b16 %v1605
        %v1881 = vunpack.c.l.b16 0
        %v1882 = vunpack.c.h.b16 0
        %vm1883 = vcmp.ne.s32.totalorder %v1879, %v1881
        %vm1884 = vcmp.ne.s32.totalorder %v1880, %v1882
        %vm1885 = vmpackc.low %vm1884, %vm1883
        %v1886 = vunpack.c.l.b16 %v1615
        %v1887 = vunpack.c.h.b16 %v1615
        %v1888 = vunpack.c.l.b16 0
        %v1889 = vunpack.c.h.b16 0
        %vm1890 = vcmp.ne.s32.totalorder %v1886, %v1888
        %vm1891 = vcmp.ne.s32.totalorder %v1887, %v1889
        %vm1892 = vmpackc.low %vm1891, %vm1890
        %v1893 = vunpack.c.l.b16 %v1625
        %v1894 = vunpack.c.h.b16 %v1625
        %v1895 = vunpack.c.l.b16 0
        %v1896 = vunpack.c.h.b16 0
        %vm1897 = vcmp.ne.s32.totalorder %v1893, %v1895
        %vm1898 = vcmp.ne.s32.totalorder %v1894, %v1896
        %vm1899 = vmpackc.low %vm1898, %vm1897
        %v1900 = vunpack.c.l.b16 %v1635
        %v1901 = vunpack.c.h.b16 %v1635
        %v1902 = vunpack.c.l.b16 0
        %v1903 = vunpack.c.h.b16 0
        %vm1904 = vcmp.ne.s32.totalorder %v1900, %v1902
        %vm1905 = vcmp.ne.s32.totalorder %v1901, %v1903
        %vm1906 = vmpackc.low %vm1905, %vm1904
        %v1907 = vunpack.c.l.b16 %v1645
        %v1908 = vunpack.c.h.b16 %v1645
        %v1909 = vunpack.c.l.b16 0
        %v1910 = vunpack.c.h.b16 0
        %vm1911 = vcmp.ne.s32.totalorder %v1907, %v1909
        %vm1912 = vcmp.ne.s32.totalorder %v1908, %v1910
        %vm1913 = vmpackc.low %vm1912, %vm1911
        %v1914 = vunpack.c.l.b16 %v1655
        %v1915 = vunpack.c.h.b16 %v1655
        %v1916 = vunpack.c.l.b16 0
        %v1917 = vunpack.c.h.b16 0
        %vm1918 = vcmp.ne.s32.totalorder %v1914, %v1916
        %vm1919 = vcmp.ne.s32.totalorder %v1915, %v1917
        %vm1920 = vmpackc.low %vm1919, %vm1918
        %v1921 = vunpack.c.l.b16 %v1665
        %v1922 = vunpack.c.h.b16 %v1665
        %v1923 = vunpack.c.l.b16 0
        %v1924 = vunpack.c.h.b16 0
        %vm1925 = vcmp.ne.s32.totalorder %v1921, %v1923
        %vm1926 = vcmp.ne.s32.totalorder %v1922, %v1924
        %vm1927 = vmpackc.low %vm1926, %vm1925
        %v1928 = vunpack.c.l.b16 %v1675
        %v1929 = vunpack.c.h.b16 %v1675
        %v1930 = vunpack.c.l.b16 0
        %v1931 = vunpack.c.h.b16 0
        %vm1932 = vcmp.ne.s32.totalorder %v1928, %v1930
        %vm1933 = vcmp.ne.s32.totalorder %v1929, %v1931
        %vm1934 = vmpackc.low %vm1933, %vm1932
        %v1935 = vunpack.c.l.b16 %v1685
        %v1936 = vunpack.c.h.b16 %v1685
        %v1937 = vunpack.c.l.b16 0
        %v1938 = vunpack.c.h.b16 0
        %vm1939 = vcmp.ne.s32.totalorder %v1935, %v1937
        %vm1940 = vcmp.ne.s32.totalorder %v1936, %v1938
        %vm1941 = vmpackc.low %vm1940, %vm1939
        %v1942 = vunpack.c.l.b16 %v1695
        %v1943 = vunpack.c.h.b16 %v1695
        %v1944 = vunpack.c.l.b16 0
        %v1945 = vunpack.c.h.b16 0
        %vm1946 = vcmp.ne.s32.totalorder %v1942, %v1944
        %vm1947 = vcmp.ne.s32.totalorder %v1943, %v1945
        %vm1948 = vmpackc.low %vm1947, %vm1946
        %v1949 = vunpack.c.l.b16 %v1705
        %v1950 = vunpack.c.h.b16 %v1705
        %v1951 = vunpack.c.l.b16 0
        %v1952 = vunpack.c.h.b16 0
        %vm1953 = vcmp.ne.s32.totalorder %v1949, %v1951
        %vm1954 = vcmp.ne.s32.totalorder %v1950, %v1952
        %vm1955 = vmpackc.low %vm1954, %vm1953
        %v1956 = vunpack.c.l.b16 %v1715
        %v1957 = vunpack.c.h.b16 %v1715
        %v1958 = vunpack.c.l.b16 0
        %v1959 = vunpack.c.h.b16 0
        %vm1960 = vcmp.ne.s32.totalorder %v1956, %v1958
        %vm1961 = vcmp.ne.s32.totalorder %v1957, %v1959
        %vm1962 = vmpackc.low %vm1961, %vm1960
        %v1963 = vunpack.c.l.b16 %v1725
        %v1964 = vunpack.c.h.b16 %v1725
        %v1965 = vunpack.c.l.b16 0
        %v1966 = vunpack.c.h.b16 0
        %vm1967 = vcmp.ne.s32.totalorder %v1963, %v1965
        %vm1968 = vcmp.ne.s32.totalorder %v1964, %v1966
        %vm1969 = vmpackc.low %vm1968, %vm1967
        %v1970 = vunpack.c.l.b16 %v1735
        %v1971 = vunpack.c.h.b16 %v1735
        %v1972 = vunpack.c.l.b16 0
        %v1973 = vunpack.c.h.b16 0
        %vm1974 = vcmp.ne.s32.totalorder %v1970, %v1972
        %vm1975 = vcmp.ne.s32.totalorder %v1971, %v1973
        %vm1976 = vmpackc.low %vm1975, %vm1974
        %v1977 = vunpack.c.l.b16 %v1745
        %v1978 = vunpack.c.h.b16 %v1745
        %v1979 = vunpack.c.l.b16 0
        %v1980 = vunpack.c.h.b16 0
        %vm1981 = vcmp.ne.s32.totalorder %v1977, %v1979
        %vm1982 = vcmp.ne.s32.totalorder %v1978, %v1980
        %vm1983 = vmpackc.low %vm1982, %vm1981
        %v1984 = vunpack.c.l.b16 %v1755
        %v1985 = vunpack.c.h.b16 %v1755
        %v1986 = vunpack.c.l.b16 0
        %v1987 = vunpack.c.h.b16 0
        %vm1988 = vcmp.ne.s32.totalorder %v1984, %v1986
        %vm1989 = vcmp.ne.s32.totalorder %v1985, %v1987
        %vm1990 = vmpackc.low %vm1989, %vm1988
        %v1991 = vunpack.c.l.b16 %v1765
        %v1992 = vunpack.c.h.b16 %v1765
        %v1993 = vunpack.c.l.b16 0
        %v1994 = vunpack.c.h.b16 0
        %vm1995 = vcmp.ne.s32.totalorder %v1991, %v1993
        %vm1996 = vcmp.ne.s32.totalorder %v1992, %v1994
        %vm1997 = vmpackc.low %vm1996, %vm1995
        %v1998 = vunpack.c.l.b16 %v1775
        %v1999 = vunpack.c.h.b16 %v1775
        %v2000 = vunpack.c.l.b16 0
        %v2001 = vunpack.c.h.b16 0
        %vm2002 = vcmp.ne.s32.totalorder %v1998, %v2000
        %vm2003 = vcmp.ne.s32.totalorder %v1999, %v2001
        %vm2004 = vmpackc.low %vm2003, %vm2002
        %v2005 = vunpack.c.l.b16 %v1780
        %v2006 = vunpack.c.h.b16 %v1780
        %v2007 = vunpack.c.l.b16 0
        %v2008 = vunpack.c.h.b16 0
        %vm2009 = vcmp.ne.s32.totalorder %v2005, %v2007
        %vm2010 = vcmp.ne.s32.totalorder %v2006, %v2008
        %vm2011 = vmpackc.low %vm2010, %vm2009
        %v2012 = vsel %vm1787, %v1265, 0
        %v2013 = vsel %vm1787, %v1266, 0
        %v2014 = vsel %vm1794, %v1267, 0
        %v2015 = vsel %vm1794, %v1268, 0
        %v2016 = vsel %vm1801, %v1269, 0
        %v2017 = vsel %vm1801, %v1270, 0
        %v2018 = vsel %vm1808, %v1271, 0
        %v2019 = vsel %vm1808, %v1272, 0
        %v2020 = vsel %vm1815, %v1273, 0
        %v2021 = vsel %vm1815, %v1274, 0
        %v2022 = vsel %vm1822, %v1275, 0
        %v2023 = vsel %vm1822, %v1276, 0
        %v2024 = vsel %vm1829, %v1277, 0
        %v2025 = vsel %vm1829, %v1278, 0
        %v2026 = vsel %vm1836, %v1279, 0
        %v2027 = vsel %vm1836, %v1280, 0
        %v2028 = vsel %vm1843, %v1281, 0
        %v2029 = vsel %vm1843, %v1282, 0
        %v2030 = vsel %vm1850, %v1283, 0
        %v2031 = vsel %vm1850, %v1284, 0
        %v2032 = vsel %vm1857, %v1285, 0
        %v2033 = vsel %vm1857, %v1286, 0
        %v2034 = vsel %vm1864, %v1287, 0
        %v2035 = vsel %vm1864, %v1288, 0
        %v2036 = vsel %vm1871, %v1289, 0
        %v2037 = vsel %vm1871, %v1290, 0
        %v2038 = vsel %vm1878, %v1291, 0
        %v2039 = vsel %vm1878, %v1292, 0
        %v2040 = vsel %vm1885, %v1293, 0
        %v2041 = vsel %vm1885, %v1294, 0
        %v2042 = vsel %vm1892, %v1295, 0
        %v2043 = vsel %vm1892, %v1296, 0
        %v2044 = vsel %vm1899, %v1297, 0
        %v2045 = vsel %vm1899, %v1298, 0
        %v2046 = vsel %vm1906, %v1299, 0
        %v2047 = vsel %vm1906, %v1300, 0
        %v2048 = vsel %vm1913, %v1301, 0
        %v2049 = vsel %vm1913, %v1302, 0
        %v2050 = vsel %vm1920, %v1303, 0
        %v2051 = vsel %vm1920, %v1304, 0
        %v2052 = vsel %vm1927, %v1305, 0
        %v2053 = vsel %vm1927, %v1306, 0
        %v2054 = vsel %vm1934, %v1307, 0
        %v2055 = vsel %vm1934, %v1308, 0
        %v2056 = vsel %vm1941, %v1309, 0
        %v2057 = vsel %vm1941, %v1310, 0
        %v2058 = vsel %vm1948, %v1311, 0
        %v2059 = vsel %vm1948, %v1312, 0
        %v2060 = vsel %vm1955, %v1313, 0
        %v2061 = vsel %vm1955, %v1314, 0
        %v2062 = vsel %vm1962, %v1315, 0
        %v2063 = vsel %vm1962, %v1316, 0
        %v2064 = vsel %vm1969, %v1317, 0
        %v2065 = vsel %vm1969, %v1318, 0
        %v2066 = vsel %vm1976, %v1319, 0
        %v2067 = vsel %vm1976, %v1320, 0
        %v2068 = vsel %vm1983, %v1321, 0
        %v2069 = vsel %vm1983, %v1322, 0
        %v2070 = vsel %vm1990, %v1323, 0
        %v2071 = vsel %vm1990, %v1324, 0
        %v2072 = vsel %vm1997, %v1325, 0
        %v2073 = vsel %vm1997, %v1326, 0
        %v2074 = vsel %vm2004, %v1327, 0
        %v2075 = vsel %vm2004, %v1328, 0
        %v2076 = vsel %vm2011, %v1329, 0
        %v2077 = vsel %vm2011, %v1330, 0
        %v2078 = vld [vmem:[%s2] sm:$0xf]
        %v2079 = vld [vmem:[%s2 + $0x4] sm:$0xf]
        %v2080 = vld [vmem:[%s2 + $0x8] sm:$0xf]
        %v2081 = vld [vmem:[%s2 + $0xc] sm:$0xf]
        %v2082 = vld [vmem:[%s2 + $0x10] sm:$0xf]
        %v2083 = vld [vmem:[%s2 + $0x14] sm:$0xf]
        %v2084 = vld [vmem:[%s2 + $0x18] sm:$0xf]
        %v2085 = vld [vmem:[%s2 + $0x1c] sm:$0xf]
        %v2086 = vld [vmem:[%s2 + $0x20] sm:$0xf]
        %v2087 = vld [vmem:[%s2 + $0x24] sm:$0xf]
        %v2088 = vld [vmem:[%s2 + $0x28] sm:$0xf]
        %v2089 = vld [vmem:[%s2 + $0x2c] sm:$0xf]
        %v2090 = vld [vmem:[%s2 + $0x30] sm:$0xf]
        %v2091 = vld [vmem:[%s2 + $0x34] sm:$0xf]
        %v2092 = vld [vmem:[%s2 + $0x38] sm:$0xf]
        %v2093 = vld [vmem:[%s2 + $0x3c] sm:$0xf]
        %v2094 = vld [vmem:[%s2 + $0x40] sm:$0xf]
        %v2095 = vld [vmem:[%s2 + $0x44] sm:$0xf]
        %v2096 = vld [vmem:[%s2 + $0x48] sm:$0xf]
        %v2097 = vld [vmem:[%s2 + $0x4c] sm:$0xf]
        %v2098 = vld [vmem:[%s2 + $0x50] sm:$0xf]
        %v2099 = vld [vmem:[%s2 + $0x54] sm:$0xf]
        %v2100 = vld [vmem:[%s2 + $0x58] sm:$0xf]
        %v2101 = vld [vmem:[%s2 + $0x5c] sm:$0xf]
        %v2102 = vld [vmem:[%s2 + $0x60] sm:$0xf]
        %v2103 = vld [vmem:[%s2 + $0x64] sm:$0xf]
        %v2104 = vld [vmem:[%s2 + $0x68] sm:$0xf]
        %v2105 = vld [vmem:[%s2 + $0x6c] sm:$0xf]
        %v2106 = vld [vmem:[%s2 + $0x70] sm:$0xf]
        %v2107 = vld [vmem:[%s2 + $0x74] sm:$0xf]
        %v2108 = vld [vmem:[%s2 + $0x78] sm:$0xf]
        %v2109 = vld [vmem:[%s2 + $0x7c] sm:$0xf]
        %v2110 = vld [vmem:[%s2 + $0x80] sm:$0xf]
        %v2111 = vld [vmem:[%s2 + $0x84] sm:$0xf]
        %v2112 = vld [vmem:[%s2 + $0x88] sm:$0xf]
        %v2113 = vld [vmem:[%s2 + $0x8c] sm:$0xf]
        %v2114 = vld [vmem:[%s2 + $0x90] sm:$0xf]
        %v2115 = vld [vmem:[%s2 + $0x94] sm:$0xf]
        %v2116 = vld [vmem:[%s2 + $0x98] sm:$0xf]
        %v2117 = vld [vmem:[%s2 + $0x9c] sm:$0xf]
        %v2118 = vld [vmem:[%s2 + $0xa0] sm:$0xf]
        %v2119 = vld [vmem:[%s2 + $0xa4] sm:$0xf]
        %v2120 = vld [vmem:[%s2 + $0xa8] sm:$0xf]
        %v2121 = vld [vmem:[%s2 + $0xac] sm:$0xf]
        %v2122 = vld [vmem:[%s2 + $0xb0] sm:$0xf]
        %v2123 = vld [vmem:[%s2 + $0xb4] sm:$0xf]
        %v2124 = vld [vmem:[%s2 + $0xb8] sm:$0xf]
        %v2125 = vld [vmem:[%s2 + $0xbc] sm:$0xf]
        %s2126 = scalar_lea.vmem %s2, 192
        %v2127 = vld [vmem:[%s2126] sm:$0xf]
        %v2128 = vld [vmem:[%s2126 + $0x4] sm:$0xf]
        %v2129 = vld [vmem:[%s2126 + $0x8] sm:$0xf]
        %v2130 = vld [vmem:[%s2126 + $0xc] sm:$0xf]
        %v2131 = vld [vmem:[%s2126 + $0x10] sm:$0xf]
        %v2132 = vld [vmem:[%s2126 + $0x14] sm:$0xf]
        %v2133 = vld [vmem:[%s2126 + $0x18] sm:$0xf]
        %v2134 = vld [vmem:[%s2126 + $0x1c] sm:$0xf]
        %v2135 = vld [vmem:[%s2126 + $0x20] sm:$0xf]
        %v2136 = vld [vmem:[%s2126 + $0x24] sm:$0xf]
        %v2137 = vld [vmem:[%s2126 + $0x28] sm:$0xf]
        %v2138 = vld [vmem:[%s2126 + $0x2c] sm:$0xf]
        %v2139 = vld [vmem:[%s2126 + $0x30] sm:$0xf]
        %v2140 = vld [vmem:[%s2126 + $0x34] sm:$0xf]
        %v2141 = vld [vmem:[%s2126 + $0x38] sm:$0xf]
        %v2142 = vld [vmem:[%s2126 + $0x3c] sm:$0xf]
        %v2143 = vld [vmem:[%s2126 + $0x40] sm:$0xf]
        %v2144 = vld [vmem:[%s2126 + $0x44] sm:$0xf]
        %v2145 = vld [vmem:[%s2126 + $0x48] sm:$0xf]
        %v2146 = vld [vmem:[%s2126 + $0x4c] sm:$0xf]
        %v2147 = vld [vmem:[%s2126 + $0x50] sm:$0xf]
        %v2148 = vld [vmem:[%s2126 + $0x54] sm:$0xf]
        %v2149 = vld [vmem:[%s2126 + $0x58] sm:$0xf]
        %v2150 = vld [vmem:[%s2126 + $0x5c] sm:$0xf]
        %v2151 = vld [vmem:[%s2126 + $0x60] sm:$0xf]
        %v2152 = vld [vmem:[%s2126 + $0x64] sm:$0xf]
        %v2153 = vld [vmem:[%s2126 + $0x68] sm:$0xf]
        %v2154 = vld [vmem:[%s2126 + $0x6c] sm:$0xf]
        %v2155 = vld [vmem:[%s2126 + $0x70] sm:$0xf]
        %v2156 = vld [vmem:[%s2126 + $0x74] sm:$0xf]
        %v2157 = vld [vmem:[%s2126 + $0x78] sm:$0xf]
        %v2158 = vld [vmem:[%s2126 + $0x7c] sm:$0xf]
        %v2159 = vld [vmem:[%s2126 + $0x80] sm:$0xf]
        %v2160 = vld [vmem:[%s2126 + $0x84] sm:$0xf]
        %v2161 = vld [vmem:[%s2126 + $0x88] sm:$0xf]
        %v2162 = vld [vmem:[%s2126 + $0x8c] sm:$0xf]
        %v2163 = vld [vmem:[%s2126 + $0x90] sm:$0xf]
        %v2164 = vld [vmem:[%s2126 + $0x94] sm:$0xf]
        %v2165 = vld [vmem:[%s2126 + $0x98] sm:$0xf]
        %v2166 = vld [vmem:[%s2126 + $0x9c] sm:$0xf]
        %v2167 = vld [vmem:[%s2126 + $0xa0] sm:$0xf]
        %v2168 = vld [vmem:[%s2126 + $0xa4] sm:$0xf]
        %v2169 = vld [vmem:[%s2126 + $0xa8] sm:$0xf]
        %v2170 = vld [vmem:[%s2126 + $0xac] sm:$0xf]
        %v2171 = vld [vmem:[%s2126 + $0xb0] sm:$0xf]
        %v2172 = vld [vmem:[%s2126 + $0xb4] sm:$0xf]
        %v2173 = vld [vmem:[%s2126 + $0xb8] sm:$0xf]
        %v2174 = vld [vmem:[%s2126 + $0xbc] sm:$0xf]
        %v2239 = vunpack.c.l.b16 %v1267
        %v2240 = vunpack.c.h.b16 %v1267
        %v2241 = vunpack.c.l.b16 %v1268
        %v2242 = vunpack.c.l.b16 %v1269
        %v2243 = vunpack.c.h.b16 %v1269
        %v2244 = vunpack.c.l.b16 %v1270
        %v2245 = vunpack.c.l.b16 %v1271
        %v2246 = vunpack.c.h.b16 %v1271
        %v2247 = vunpack.c.l.b16 %v1272
        %v2248 = vunpack.c.l.b16 %v1273
        %v2249 = vunpack.c.h.b16 %v1273
        %v2250 = vunpack.c.l.b16 %v1274
        %v2251 = vunpack.c.l.b16 %v1275
        %v2252 = vunpack.c.h.b16 %v1275
        %v2253 = vunpack.c.l.b16 %v1276
        %v2254 = vunpack.c.l.b16 %v1277
        %v2255 = vunpack.c.h.b16 %v1277
        %v2256 = vunpack.c.l.b16 %v1278
        %v2257 = vunpack.c.l.b16 %v1279
        %v2258 = vunpack.c.h.b16 %v1279
        %v2259 = vunpack.c.l.b16 %v1280
        %v2260 = vunpack.c.l.b16 %v1281
        %v2261 = vunpack.c.h.b16 %v1281
        %v2262 = vunpack.c.l.b16 %v1282
        %v2263 = vunpack.c.l.b16 %v1283
        %v2264 = vunpack.c.h.b16 %v1283
        %v2265 = vunpack.c.l.b16 %v1284
        %v2266 = vunpack.c.l.b16 %v1285
        %v2267 = vunpack.c.h.b16 %v1285
        %v2268 = vunpack.c.l.b16 %v1286
        %v2269 = vunpack.c.l.b16 %v1287
        %v2270 = vunpack.c.h.b16 %v1287
        %v2271 = vunpack.c.l.b16 %v1288
        %v2272 = vunpack.c.l.b16 %v1289
        %v2273 = vunpack.c.h.b16 %v1289
        %v2274 = vunpack.c.l.b16 %v1290
        %v2275 = vunpack.c.l.b16 %v1291
        %v2276 = vunpack.c.h.b16 %v1291
        %v2277 = vunpack.c.l.b16 %v1292
        %v2278 = vunpack.c.l.b16 %v1293
        %v2279 = vunpack.c.h.b16 %v1293
        %v2280 = vunpack.c.l.b16 %v1294
        %v2281 = vunpack.c.l.b16 %v1295
        %v2282 = vunpack.c.h.b16 %v1295
        %v2283 = vunpack.c.l.b16 %v1296
        %v2284 = vunpack.c.l.b16 %v1297
        %v2285 = vunpack.c.h.b16 %v1297
        %v2286 = vunpack.c.l.b16 %v1298
        %v2287 = vunpack.c.l.b16 %v1299
        %v2288 = vunpack.c.h.b16 %v1299
        %v2289 = vunpack.c.l.b16 %v1300
        %v2290 = vunpack.c.l.b16 %v1301
        %v2291 = vunpack.c.h.b16 %v1301
        %v2292 = vunpack.c.l.b16 %v1302
        %v2293 = vunpack.c.l.b16 %v1303
        %v2294 = vunpack.c.h.b16 %v1303
        %v2295 = vunpack.c.l.b16 %v1304
        %v2296 = vunpack.c.l.b16 %v1305
        %v2297 = vunpack.c.h.b16 %v1305
        %v2298 = vunpack.c.l.b16 %v1306
        %v2299 = vunpack.c.l.b16 %v1307
        %v2300 = vunpack.c.h.b16 %v1307
        %v2301 = vunpack.c.l.b16 %v1308
        %v2302 = vunpack.c.l.b16 %v1309
        %v2303 = vunpack.c.h.b16 %v1309
        %v2304 = vunpack.c.l.b16 %v1310
        %v2305 = vunpack.c.l.b16 %v1311
        %v2306 = vunpack.c.h.b16 %v1311
        %v2307 = vunpack.c.l.b16 %v1312
        %v2308 = vunpack.c.l.b16 %v1313
        %v2309 = vunpack.c.h.b16 %v1313
        %v2310 = vunpack.c.l.b16 %v1314
        %v2311 = vunpack.c.l.b16 %v1315
        %v2312 = vunpack.c.h.b16 %v1315
        %v2313 = vunpack.c.l.b16 %v1316
        %v2314 = vunpack.c.l.b16 %v1317
        %v2315 = vunpack.c.h.b16 %v1317
        %v2316 = vunpack.c.l.b16 %v1318
        %v2317 = vunpack.c.l.b16 %v1319
        %v2318 = vunpack.c.h.b16 %v1319
        %v2319 = vunpack.c.l.b16 %v1320
        %v2320 = vunpack.c.l.b16 %v1321
        %v2321 = vunpack.c.h.b16 %v1321
        %v2322 = vunpack.c.l.b16 %v1322
        %v2323 = vunpack.c.l.b16 %v1323
        %v2324 = vunpack.c.h.b16 %v1323
        %v2325 = vunpack.c.l.b16 %v1324
        %v2326 = vunpack.c.l.b16 %v1325
        %v2327 = vunpack.c.h.b16 %v1325
        %v2328 = vunpack.c.l.b16 %v1326
        %v2329 = vunpack.c.l.b16 %v1327
        %v2330 = vunpack.c.h.b16 %v1327
        %v2331 = vunpack.c.l.b16 %v1328
        %v2332 = vunpack.c.l.b16 %v1329
        %v2333 = vunpack.c.h.b16 %v1329
        %v2334 = vunpack.c.l.b16 %v1330
        %v2335 = vpack.c.b16 %v2242, %v2239
        %v2336 = vpack.c.b16 %v2243, %v2240
        %v2337 = vpack.c.b16 %v2244, %v2241
        %v2338 = vpack.c.b16 %v2248, %v2245
        %v2339 = vpack.c.b16 %v2249, %v2246
        %v2340 = vpack.c.b16 %v2250, %v2247
        %v2341 = vpack.c.b16 %v2254, %v2251
        %v2342 = vpack.c.b16 %v2255, %v2252
        %v2343 = vpack.c.b16 %v2256, %v2253
        %v2344 = vpack.c.b16 %v2260, %v2257
        %v2345 = vpack.c.b16 %v2261, %v2258
        %v2346 = vpack.c.b16 %v2262, %v2259
        %v2347 = vpack.c.b16 %v2266, %v2263
        %v2348 = vpack.c.b16 %v2267, %v2264
        %v2349 = vpack.c.b16 %v2268, %v2265
        %v2350 = vpack.c.b16 %v2272, %v2269
        %v2351 = vpack.c.b16 %v2273, %v2270
        %v2352 = vpack.c.b16 %v2274, %v2271
        %v2353 = vpack.c.b16 %v2278, %v2275
        %v2354 = vpack.c.b16 %v2279, %v2276
        %v2355 = vpack.c.b16 %v2280, %v2277
        %v2356 = vpack.c.b16 %v2284, %v2281
        %v2357 = vpack.c.b16 %v2285, %v2282
        %v2358 = vpack.c.b16 %v2286, %v2283
        %v2359 = vpack.c.b16 %v2290, %v2287
        %v2360 = vpack.c.b16 %v2291, %v2288
        %v2361 = vpack.c.b16 %v2292, %v2289
        %v2362 = vpack.c.b16 %v2296, %v2293
        %v2363 = vpack.c.b16 %v2297, %v2294
        %v2364 = vpack.c.b16 %v2298, %v2295
        %v2365 = vpack.c.b16 %v2302, %v2299
        %v2366 = vpack.c.b16 %v2303, %v2300
        %v2367 = vpack.c.b16 %v2304, %v2301
        %v2368 = vpack.c.b16 %v2308, %v2305
        %v2369 = vpack.c.b16 %v2309, %v2306
        %v2370 = vpack.c.b16 %v2310, %v2307
        %v2371 = vpack.c.b16 %v2314, %v2311
        %v2372 = vpack.c.b16 %v2315, %v2312
        %v2373 = vpack.c.b16 %v2316, %v2313
        %v2374 = vpack.c.b16 %v2320, %v2317
        %v2375 = vpack.c.b16 %v2321, %v2318
        %v2376 = vpack.c.b16 %v2322, %v2319
        %v2377 = vpack.c.b16 %v2326, %v2323
        %v2378 = vpack.c.b16 %v2327, %v2324
        %v2379 = vpack.c.b16 %v2328, %v2325
        %v2380 = vpack.c.b16 %v2332, %v2329
        %v2381 = vpack.c.b16 %v2333, %v2330
        %v2382 = vpack.c.b16 %v2334, %v2331
        %v2479 = vunpack.c.l.b16 %v2127
        %v2480 = vunpack.c.l.b16 %v2128
        %v2481 = vunpack.c.l.b16 %v2129
        %v2482 = vunpack.c.l.b16 %v2130
        %v2483 = vunpack.c.l.b16 %v2131
        %v2484 = vunpack.c.l.b16 %v2132
        %v2485 = vunpack.c.l.b16 %v2133
        %v2486 = vunpack.c.l.b16 %v2134
        %v2487 = vunpack.c.l.b16 %v2135
        %v2488 = vunpack.c.l.b16 %v2136
        %v2489 = vunpack.c.l.b16 %v2137
        %v2490 = vunpack.c.l.b16 %v2138
        %v2491 = vunpack.c.l.b16 %v2139
        %v2492 = vunpack.c.l.b16 %v2140
        %v2493 = vunpack.c.l.b16 %v2141
        %v2494 = vunpack.c.l.b16 %v2142
        %v2495 = vunpack.c.l.b16 %v2143
        %v2496 = vunpack.c.l.b16 %v2144
        %v2497 = vunpack.c.l.b16 %v2145
        %v2498 = vunpack.c.l.b16 %v2146
        %v2499 = vunpack.c.l.b16 %v2147
        %v2500 = vunpack.c.l.b16 %v2148
        %v2501 = vunpack.c.l.b16 %v2149
        %v2502 = vunpack.c.l.b16 %v2150
        %v2503 = vunpack.c.l.b16 %v2151
        %v2504 = vunpack.c.l.b16 %v2152
        %v2505 = vunpack.c.l.b16 %v2153
        %v2506 = vunpack.c.l.b16 %v2154
        %v2507 = vunpack.c.l.b16 %v2155
        %v2508 = vunpack.c.l.b16 %v2156
        %v2509 = vunpack.c.l.b16 %v2157
        %v2510 = vunpack.c.l.b16 %v2158
        %v2511 = vunpack.c.l.b16 %v2159
        %v2512 = vunpack.c.l.b16 %v2160
        %v2513 = vunpack.c.l.b16 %v2161
        %v2514 = vunpack.c.l.b16 %v2162
        %v2515 = vunpack.c.l.b16 %v2163
        %v2516 = vunpack.c.l.b16 %v2164
        %v2517 = vunpack.c.l.b16 %v2165
        %v2518 = vunpack.c.l.b16 %v2166
        %v2519 = vunpack.c.l.b16 %v2167
        %v2520 = vunpack.c.l.b16 %v2168
        %v2521 = vunpack.c.l.b16 %v2169
        %v2522 = vunpack.c.l.b16 %v2170
        %v2523 = vunpack.c.l.b16 %v2171
        %v2524 = vunpack.c.l.b16 %v2172
        %v2525 = vunpack.c.l.b16 %v2173
        %v2526 = vunpack.c.l.b16 %v2174
        %v2527 = vpack.c.b16 %v2480, %v2479
        %v2528 = vpack.c.b16 %v2482, %v2481
        %v2529 = vpack.c.b16 %v2484, %v2483
        %v2530 = vpack.c.b16 %v2486, %v2485
        %v2531 = vpack.c.b16 %v2488, %v2487
        %v2532 = vpack.c.b16 %v2490, %v2489
        %v2533 = vpack.c.b16 %v2492, %v2491
        %v2534 = vpack.c.b16 %v2494, %v2493
        %v2535 = vpack.c.b16 %v2496, %v2495
        %v2536 = vpack.c.b16 %v2498, %v2497
        %v2537 = vpack.c.b16 %v2500, %v2499
        %v2538 = vpack.c.b16 %v2502, %v2501
        %v2539 = vpack.c.b16 %v2504, %v2503
        %v2540 = vpack.c.b16 %v2506, %v2505
        %v2541 = vpack.c.b16 %v2508, %v2507
        %v2542 = vpack.c.b16 %v2510, %v2509
        %v2543 = vpack.c.b16 %v2512, %v2511
        %v2544 = vpack.c.b16 %v2514, %v2513
        %v2545 = vpack.c.b16 %v2516, %v2515
        %v2546 = vpack.c.b16 %v2518, %v2517
        %v2547 = vpack.c.b16 %v2520, %v2519
        %v2548 = vpack.c.b16 %v2522, %v2521
        %v2549 = vpack.c.b16 %v2524, %v2523
        %v2550 = vpack.c.b16 %v2526, %v2525
        %2575 = vmatpush.bf16.msra.mxu0 %v2534
        %2576 = vmatpush.bf16.msra.mxu0 %v2533
        %2577 = vmatpush.bf16.msra.mxu0 %v2532
        %2578 = vmatpush.bf16.msra.mxu0 %v2531
        %2579 = vmatpush.bf16.msra.mxu0 %v2530
        %2580 = vmatpush.bf16.msra.mxu0 %v2529
        %2581 = vmatpush.bf16.msra.mxu0 %v2528
        %2582 = vmatpush.bf16.msra.mxu0 %v2527
        %2583 = vmatmul.bf16.gmra.mxu0 %v2335
        %v2584 = vpop.f32.mrf.mxu0
        %v2585 = vadd.f32 0.0, %v2584
        %v2586 = vpop.f32.mrf.mxu0
        %v2587 = vadd.f32 0.0, %v2586
        %2588 = vmatmul.bf16.gmra.mxu0 %v2338
        %v2589 = vpop.f32.mrf.mxu0
        %v2590 = vadd.f32 0.0, %v2589
        %v2591 = vpop.f32.mrf.mxu0
        %v2592 = vadd.f32 0.0, %v2591
        %2593 = vmatmul.bf16.gmra.mxu0 %v2341
        %v2594 = vpop.f32.mrf.mxu0
        %v2595 = vadd.f32 0.0, %v2594
        %v2596 = vpop.f32.mrf.mxu0
        %v2597 = vadd.f32 0.0, %v2596
        %2598 = vmatmul.bf16.gmra.mxu0 %v2344
        %v2599 = vpop.f32.mrf.mxu0
        %v2600 = vadd.f32 0.0, %v2599
        %v2601 = vpop.f32.mrf.mxu0
        %v2602 = vadd.f32 0.0, %v2601
        %2603 = vmatmul.bf16.gmra.mxu0 %v2347
        %v2604 = vpop.f32.mrf.mxu0
        %v2605 = vadd.f32 0.0, %v2604
        %v2606 = vpop.f32.mrf.mxu0
        %v2607 = vadd.f32 0.0, %v2606
        %2608 = vmatmul.bf16.gmra.mxu0 %v2350
        %v2609 = vpop.f32.mrf.mxu0
        %v2610 = vadd.f32 0.0, %v2609
        %v2611 = vpop.f32.mrf.mxu0
        %v2612 = vadd.f32 0.0, %v2611
        %2613 = vmatmul.bf16.gmra.mxu0 %v2353
        %v2614 = vpop.f32.mrf.mxu0
        %v2615 = vadd.f32 0.0, %v2614
        %v2616 = vpop.f32.mrf.mxu0
        %v2617 = vadd.f32 0.0, %v2616
        %2618 = vmatmul.bf16.gmra.mxu0 %v2356
        %v2619 = vpop.f32.mrf.mxu0
        %v2620 = vadd.f32 0.0, %v2619
        %v2621 = vpop.f32.mrf.mxu0
        %v2622 = vadd.f32 0.0, %v2621
        %2623 = vmatmul.bf16.gmra.mxu0 %v2359
        %v2624 = vpop.f32.mrf.mxu0
        %v2625 = vadd.f32 0.0, %v2624
        %v2626 = vpop.f32.mrf.mxu0
        %v2627 = vadd.f32 0.0, %v2626
        %2628 = vmatmul.bf16.gmra.mxu0 %v2362
        %v2629 = vpop.f32.mrf.mxu0
        %v2630 = vadd.f32 0.0, %v2629
        %v2631 = vpop.f32.mrf.mxu0
        %v2632 = vadd.f32 0.0, %v2631
        %2633 = vmatmul.bf16.gmra.mxu0 %v2365
        %v2634 = vpop.f32.mrf.mxu0
        %v2635 = vadd.f32 0.0, %v2634
        %v2636 = vpop.f32.mrf.mxu0
        %v2637 = vadd.f32 0.0, %v2636
        %2638 = vmatmul.bf16.gmra.mxu0 %v2368
        %v2639 = vpop.f32.mrf.mxu0
        %v2640 = vadd.f32 0.0, %v2639
        %v2641 = vpop.f32.mrf.mxu0
        %v2642 = vadd.f32 0.0, %v2641
        %2643 = vmatmul.bf16.gmra.mxu0 %v2371
        %v2644 = vpop.f32.mrf.mxu0
        %v2645 = vadd.f32 0.0, %v2644
        %v2646 = vpop.f32.mrf.mxu0
        %v2647 = vadd.f32 0.0, %v2646
        %2648 = vmatmul.bf16.gmra.mxu0 %v2374
        %v2649 = vpop.f32.mrf.mxu0
        %v2650 = vadd.f32 0.0, %v2649
        %v2651 = vpop.f32.mrf.mxu0
        %v2652 = vadd.f32 0.0, %v2651
        %2653 = vmatmul.bf16.gmra.mxu0 %v2377
        %v2654 = vpop.f32.mrf.mxu0
        %v2655 = vadd.f32 0.0, %v2654
        %v2656 = vpop.f32.mrf.mxu0
        %v2657 = vadd.f32 0.0, %v2656
        %2658 = vmatmul.bf16.gmra.mxu0 %v2380
        %v2659 = vpop.f32.mrf.mxu0
        %v2660 = vadd.f32 0.0, %v2659
        %v2661 = vpop.f32.mrf.mxu0
        %v2662 = vadd.f32 0.0, %v2661
        %2663 = vdwg.mxu0
        %2664 = vmatpush.bf16.msra.mxu0 %v2542
        %2665 = vmatpush.bf16.msra.mxu0 %v2541
        %2666 = vmatpush.bf16.msra.mxu0 %v2540
        %2667 = vmatpush.bf16.msra.mxu0 %v2539
        %2668 = vmatpush.bf16.msra.mxu0 %v2538
        %2669 = vmatpush.bf16.msra.mxu0 %v2537
        %2670 = vmatpush.bf16.msra.mxu0 %v2536
        %2671 = vmatpush.bf16.msra.mxu0 %v2535
        %2672 = vmatmul.bf16.gmra.mxu0 %v2336
        %v2673 = vpop.f32.mrf.mxu0
        %v2674 = vadd.f32 %v2585, %v2673
        %v2675 = vpop.f32.mrf.mxu0
        %v2676 = vadd.f32 %v2587, %v2675
        %2677 = vmatmul.bf16.gmra.mxu0 %v2339
        %v2678 = vpop.f32.mrf.mxu0
        %v2679 = vadd.f32 %v2590, %v2678
        %v2680 = vpop.f32.mrf.mxu0
        %v2681 = vadd.f32 %v2592, %v2680
        %2682 = vmatmul.bf16.gmra.mxu0 %v2342
        %v2683 = vpop.f32.mrf.mxu0
        %v2684 = vadd.f32 %v2595, %v2683
        %v2685 = vpop.f32.mrf.mxu0
        %v2686 = vadd.f32 %v2597, %v2685
        %2687 = vmatmul.bf16.gmra.mxu0 %v2345
        %v2688 = vpop.f32.mrf.mxu0
        %v2689 = vadd.f32 %v2600, %v2688
        %v2690 = vpop.f32.mrf.mxu0
        %v2691 = vadd.f32 %v2602, %v2690
        %2692 = vmatmul.bf16.gmra.mxu0 %v2348
        %v2693 = vpop.f32.mrf.mxu0
        %v2694 = vadd.f32 %v2605, %v2693
        %v2695 = vpop.f32.mrf.mxu0
        %v2696 = vadd.f32 %v2607, %v2695
        %2697 = vmatmul.bf16.gmra.mxu0 %v2351
        %v2698 = vpop.f32.mrf.mxu0
        %v2699 = vadd.f32 %v2610, %v2698
        %v2700 = vpop.f32.mrf.mxu0
        %v2701 = vadd.f32 %v2612, %v2700
        %2702 = vmatmul.bf16.gmra.mxu0 %v2354
        %v2703 = vpop.f32.mrf.mxu0
        %v2704 = vadd.f32 %v2615, %v2703
        %v2705 = vpop.f32.mrf.mxu0
        %v2706 = vadd.f32 %v2617, %v2705
        %2707 = vmatmul.bf16.gmra.mxu0 %v2357
        %v2708 = vpop.f32.mrf.mxu0
        %v2709 = vadd.f32 %v2620, %v2708
        %v2710 = vpop.f32.mrf.mxu0
        %v2711 = vadd.f32 %v2622, %v2710
        %2712 = vmatmul.bf16.gmra.mxu0 %v2360
        %v2713 = vpop.f32.mrf.mxu0
        %v2714 = vadd.f32 %v2625, %v2713
        %v2715 = vpop.f32.mrf.mxu0
        %v2716 = vadd.f32 %v2627, %v2715
        %2717 = vmatmul.bf16.gmra.mxu0 %v2363
        %v2718 = vpop.f32.mrf.mxu0
        %v2719 = vadd.f32 %v2630, %v2718
        %v2720 = vpop.f32.mrf.mxu0
        %v2721 = vadd.f32 %v2632, %v2720
        %2722 = vmatmul.bf16.gmra.mxu0 %v2366
        %v2723 = vpop.f32.mrf.mxu0
        %v2724 = vadd.f32 %v2635, %v2723
        %v2725 = vpop.f32.mrf.mxu0
        %v2726 = vadd.f32 %v2637, %v2725
        %2727 = vmatmul.bf16.gmra.mxu0 %v2369
        %v2728 = vpop.f32.mrf.mxu0
        %v2729 = vadd.f32 %v2640, %v2728
        %v2730 = vpop.f32.mrf.mxu0
        %v2731 = vadd.f32 %v2642, %v2730
        %2732 = vmatmul.bf16.gmra.mxu0 %v2372
        %v2733 = vpop.f32.mrf.mxu0
        %v2734 = vadd.f32 %v2645, %v2733
        %v2735 = vpop.f32.mrf.mxu0
        %v2736 = vadd.f32 %v2647, %v2735
        %2737 = vmatmul.bf16.gmra.mxu0 %v2375
        %v2738 = vpop.f32.mrf.mxu0
        %v2739 = vadd.f32 %v2650, %v2738
        %v2740 = vpop.f32.mrf.mxu0
        %v2741 = vadd.f32 %v2652, %v2740
        %2742 = vmatmul.bf16.gmra.mxu0 %v2378
        %v2743 = vpop.f32.mrf.mxu0
        %v2744 = vadd.f32 %v2655, %v2743
        %v2745 = vpop.f32.mrf.mxu0
        %v2746 = vadd.f32 %v2657, %v2745
        %2747 = vmatmul.bf16.gmra.mxu0 %v2381
        %v2748 = vpop.f32.mrf.mxu0
        %v2749 = vadd.f32 %v2660, %v2748
        %v2750 = vpop.f32.mrf.mxu0
        %v2751 = vadd.f32 %v2662, %v2750
        %2752 = vdwg.mxu0
        %2753 = vmatpush.bf16.msra.mxu0 %v2550
        %2754 = vmatpush.bf16.msra.mxu0 %v2549
        %2755 = vmatpush.bf16.msra.mxu0 %v2548
        %2756 = vmatpush.bf16.msra.mxu0 %v2547
        %2757 = vmatpush.bf16.msra.mxu0 %v2546
        %2758 = vmatpush.bf16.msra.mxu0 %v2545
        %2759 = vmatpush.bf16.msra.mxu0 %v2544
        %2760 = vmatpush.bf16.msra.mxu0 %v2543
        %2761 = vmatmul.bf16.gmra.mxu0 %v2337
        %v2762 = vpop.f32.mrf.mxu0
        %v2763 = vadd.f32 %v2674, %v2762
        %v2764 = vpop.f32.mrf.mxu0
        %v2765 = vadd.f32 %v2676, %v2764
        %2766 = vmatmul.bf16.gmra.mxu0 %v2340
        %v2767 = vpop.f32.mrf.mxu0
        %v2768 = vadd.f32 %v2679, %v2767
        %v2769 = vpop.f32.mrf.mxu0
        %v2770 = vadd.f32 %v2681, %v2769
        %2771 = vmatmul.bf16.gmra.mxu0 %v2343
        %v2772 = vpop.f32.mrf.mxu0
        %v2773 = vadd.f32 %v2684, %v2772
        %v2774 = vpop.f32.mrf.mxu0
        %v2775 = vadd.f32 %v2686, %v2774
        %2776 = vmatmul.bf16.gmra.mxu0 %v2346
        %v2777 = vpop.f32.mrf.mxu0
        %v2778 = vadd.f32 %v2689, %v2777
        %v2779 = vpop.f32.mrf.mxu0
        %v2780 = vadd.f32 %v2691, %v2779
        %2781 = vmatmul.bf16.gmra.mxu0 %v2349
        %v2782 = vpop.f32.mrf.mxu0
        %v2783 = vadd.f32 %v2694, %v2782
        %v2784 = vpop.f32.mrf.mxu0
        %v2785 = vadd.f32 %v2696, %v2784
        %2786 = vmatmul.bf16.gmra.mxu0 %v2352
        %v2787 = vpop.f32.mrf.mxu0
        %v2788 = vadd.f32 %v2699, %v2787
        %v2789 = vpop.f32.mrf.mxu0
        %v2790 = vadd.f32 %v2701, %v2789
        %2791 = vmatmul.bf16.gmra.mxu0 %v2355
        %v2792 = vpop.f32.mrf.mxu0
        %v2793 = vadd.f32 %v2704, %v2792
        %v2794 = vpop.f32.mrf.mxu0
        %v2795 = vadd.f32 %v2706, %v2794
        %2796 = vmatmul.bf16.gmra.mxu0 %v2358
        %v2797 = vpop.f32.mrf.mxu0
        %v2798 = vadd.f32 %v2709, %v2797
        %v2799 = vpop.f32.mrf.mxu0
        %v2800 = vadd.f32 %v2711, %v2799
        %2801 = vmatmul.bf16.gmra.mxu0 %v2361
        %v2802 = vpop.f32.mrf.mxu0
        %v2803 = vadd.f32 %v2714, %v2802
        %v2804 = vpop.f32.mrf.mxu0
        %v2805 = vadd.f32 %v2716, %v2804
        %2806 = vmatmul.bf16.gmra.mxu0 %v2364
        %v2807 = vpop.f32.mrf.mxu0
        %v2808 = vadd.f32 %v2719, %v2807
        %v2809 = vpop.f32.mrf.mxu0
        %v2810 = vadd.f32 %v2721, %v2809
        %2811 = vmatmul.bf16.gmra.mxu0 %v2367
        %v2812 = vpop.f32.mrf.mxu0
        %v2813 = vadd.f32 %v2724, %v2812
        %v2814 = vpop.f32.mrf.mxu0
        %v2815 = vadd.f32 %v2726, %v2814
        %2816 = vmatmul.bf16.gmra.mxu0 %v2370
        %v2817 = vpop.f32.mrf.mxu0
        %v2818 = vadd.f32 %v2729, %v2817
        %v2819 = vpop.f32.mrf.mxu0
        %v2820 = vadd.f32 %v2731, %v2819
        %2821 = vmatmul.bf16.gmra.mxu0 %v2373
        %v2822 = vpop.f32.mrf.mxu0
        %v2823 = vadd.f32 %v2734, %v2822
        %v2824 = vpop.f32.mrf.mxu0
        %v2825 = vadd.f32 %v2736, %v2824
        %2826 = vmatmul.bf16.gmra.mxu0 %v2376
        %v2827 = vpop.f32.mrf.mxu0
        %v2828 = vadd.f32 %v2739, %v2827
        %v2829 = vpop.f32.mrf.mxu0
        %v2830 = vadd.f32 %v2741, %v2829
        %2831 = vmatmul.bf16.gmra.mxu0 %v2379
        %v2832 = vpop.f32.mrf.mxu0
        %v2833 = vadd.f32 %v2744, %v2832
        %v2834 = vpop.f32.mrf.mxu0
        %v2835 = vadd.f32 %v2746, %v2834
        %2836 = vmatmul.bf16.gmra.mxu0 %v2382
        %v2837 = vpop.f32.mrf.mxu0
        %v2838 = vadd.f32 %v2749, %v2837
        %v2839 = vpop.f32.mrf.mxu0
        %v2840 = vadd.f32 %v2751, %v2839
        %2841 = vdwg.mxu0
        %v2908 = vunpack.c.l.b16 %v2012
        %v2909 = vunpack.c.h.b16 %v2012
        %v2910 = vunpack.c.l.b16 %v2013
        %v2911 = vunpack.c.l.b16 %v2014
        %v2912 = vunpack.c.h.b16 %v2014
        %v2913 = vunpack.c.l.b16 %v2015
        %v2914 = vunpack.c.l.b16 %v2016
        %v2915 = vunpack.c.h.b16 %v2016
        %v2916 = vunpack.c.l.b16 %v2017
        %v2917 = vunpack.c.l.b16 %v2018
        %v2918 = vunpack.c.h.b16 %v2018
        %v2919 = vunpack.c.l.b16 %v2019
        %v2920 = vunpack.c.l.b16 %v2020
        %v2921 = vunpack.c.h.b16 %v2020
        %v2922 = vunpack.c.l.b16 %v2021
        %v2923 = vunpack.c.l.b16 %v2022
        %v2924 = vunpack.c.h.b16 %v2022
        %v2925 = vunpack.c.l.b16 %v2023
        %v2926 = vunpack.c.l.b16 %v2024
        %v2927 = vunpack.c.h.b16 %v2024
        %v2928 = vunpack.c.l.b16 %v2025
        %v2929 = vunpack.c.l.b16 %v2026
        %v2930 = vunpack.c.h.b16 %v2026
        %v2931 = vunpack.c.l.b16 %v2027
        %v2932 = vunpack.c.l.b16 %v2028
        %v2933 = vunpack.c.h.b16 %v2028
        %v2934 = vunpack.c.l.b16 %v2029
        %v2935 = vunpack.c.l.b16 %v2030
        %v2936 = vunpack.c.h.b16 %v2030
        %v2937 = vunpack.c.l.b16 %v2031
        %v2938 = vunpack.c.l.b16 %v2032
        %v2939 = vunpack.c.h.b16 %v2032
        %v2940 = vunpack.c.l.b16 %v2033
        %v2941 = vunpack.c.l.b16 %v2034
        %v2942 = vunpack.c.h.b16 %v2034
        %v2943 = vunpack.c.l.b16 %v2035
        %v2944 = vunpack.c.l.b16 %v2036
        %v2945 = vunpack.c.h.b16 %v2036
        %v2946 = vunpack.c.l.b16 %v2037
        %v2947 = vunpack.c.l.b16 %v2038
        %v2948 = vunpack.c.h.b16 %v2038
        %v2949 = vunpack.c.l.b16 %v2039
        %v2950 = vunpack.c.l.b16 %v2040
        %v2951 = vunpack.c.h.b16 %v2040
        %v2952 = vunpack.c.l.b16 %v2041
        %v2953 = vunpack.c.l.b16 %v2042
        %v2954 = vunpack.c.h.b16 %v2042
        %v2955 = vunpack.c.l.b16 %v2043
        %v2956 = vunpack.c.l.b16 %v2044
        %v2957 = vunpack.c.h.b16 %v2044
        %v2958 = vunpack.c.l.b16 %v2045
        %v2959 = vunpack.c.l.b16 %v2046
        %v2960 = vunpack.c.h.b16 %v2046
        %v2961 = vunpack.c.l.b16 %v2047
        %v2962 = vunpack.c.l.b16 %v2048
        %v2963 = vunpack.c.h.b16 %v2048
        %v2964 = vunpack.c.l.b16 %v2049
        %v2965 = vunpack.c.l.b16 %v2050
        %v2966 = vunpack.c.h.b16 %v2050
        %v2967 = vunpack.c.l.b16 %v2051
        %v2968 = vunpack.c.l.b16 %v2052
        %v2969 = vunpack.c.h.b16 %v2052
        %v2970 = vunpack.c.l.b16 %v2053
        %v2971 = vunpack.c.l.b16 %v2054
        %v2972 = vunpack.c.h.b16 %v2054
        %v2973 = vunpack.c.l.b16 %v2055
        %v2974 = vunpack.c.l.b16 %v2056
        %v2975 = vunpack.c.h.b16 %v2056
        %v2976 = vunpack.c.l.b16 %v2057
        %v2977 = vunpack.c.l.b16 %v2058
        %v2978 = vunpack.c.h.b16 %v2058
        %v2979 = vunpack.c.l.b16 %v2059
        %v2980 = vunpack.c.l.b16 %v2060
        %v2981 = vunpack.c.h.b16 %v2060
        %v2982 = vunpack.c.l.b16 %v2061
        %v2983 = vunpack.c.l.b16 %v2062
        %v2984 = vunpack.c.h.b16 %v2062
        %v2985 = vunpack.c.l.b16 %v2063
        %v2986 = vunpack.c.l.b16 %v2064
        %v2987 = vunpack.c.h.b16 %v2064
        %v2988 = vunpack.c.l.b16 %v2065
        %v2989 = vunpack.c.l.b16 %v2066
        %v2990 = vunpack.c.h.b16 %v2066
        %v2991 = vunpack.c.l.b16 %v2067
        %v2992 = vunpack.c.l.b16 %v2068
        %v2993 = vunpack.c.h.b16 %v2068
        %v2994 = vunpack.c.l.b16 %v2069
        %v2995 = vunpack.c.l.b16 %v2070
        %v2996 = vunpack.c.h.b16 %v2070
        %v2997 = vunpack.c.l.b16 %v2071
        %v2998 = vunpack.c.l.b16 %v2072
        %v2999 = vunpack.c.h.b16 %v2072
        %v3000 = vunpack.c.l.b16 %v2073
        %v3001 = vunpack.c.l.b16 %v2074
        %v3002 = vunpack.c.h.b16 %v2074
        %v3003 = vunpack.c.l.b16 %v2075
        %v3004 = vunpack.c.l.b16 %v2076
        %v3005 = vunpack.c.h.b16 %v2076
        %v3006 = vunpack.c.l.b16 %v2077
        %v3007 = vpack.c.b16 %v2911, %v2908
        %v3008 = vpack.c.b16 %v2912, %v2909
        %v3009 = vpack.c.b16 %v2913, %v2910
        %v3010 = vpack.c.b16 %v2917, %v2914
        %v3011 = vpack.c.b16 %v2918, %v2915
        %v3012 = vpack.c.b16 %v2919, %v2916
        %v3013 = vpack.c.b16 %v2923, %v2920
        %v3014 = vpack.c.b16 %v2924, %v2921
        %v3015 = vpack.c.b16 %v2925, %v2922
        %v3016 = vpack.c.b16 %v2929, %v2926
        %v3017 = vpack.c.b16 %v2930, %v2927
        %v3018 = vpack.c.b16 %v2931, %v2928
        %v3019 = vpack.c.b16 %v2935, %v2932
        %v3020 = vpack.c.b16 %v2936, %v2933
        %v3021 = vpack.c.b16 %v2937, %v2934
        %v3022 = vpack.c.b16 %v2941, %v2938
        %v3023 = vpack.c.b16 %v2942, %v2939
        %v3024 = vpack.c.b16 %v2943, %v2940
        %v3025 = vpack.c.b16 %v2947, %v2944
        %v3026 = vpack.c.b16 %v2948, %v2945
        %v3027 = vpack.c.b16 %v2949, %v2946
        %v3028 = vpack.c.b16 %v2953, %v2950
        %v3029 = vpack.c.b16 %v2954, %v2951
        %v3030 = vpack.c.b16 %v2955, %v2952
        %v3031 = vpack.c.b16 %v2959, %v2956
        %v3032 = vpack.c.b16 %v2960, %v2957
        %v3033 = vpack.c.b16 %v2961, %v2958
        %v3034 = vpack.c.b16 %v2965, %v2962
        %v3035 = vpack.c.b16 %v2966, %v2963
        %v3036 = vpack.c.b16 %v2967, %v2964
        %v3037 = vpack.c.b16 %v2971, %v2968
        %v3038 = vpack.c.b16 %v2972, %v2969
        %v3039 = vpack.c.b16 %v2973, %v2970
        %v3040 = vpack.c.b16 %v2977, %v2974
        %v3041 = vpack.c.b16 %v2978, %v2975
        %v3042 = vpack.c.b16 %v2979, %v2976
        %v3043 = vpack.c.b16 %v2983, %v2980
        %v3044 = vpack.c.b16 %v2984, %v2981
        %v3045 = vpack.c.b16 %v2985, %v2982
        %v3046 = vpack.c.b16 %v2989, %v2986
        %v3047 = vpack.c.b16 %v2990, %v2987
        %v3048 = vpack.c.b16 %v2991, %v2988
        %v3049 = vpack.c.b16 %v2995, %v2992
        %v3050 = vpack.c.b16 %v2996, %v2993
        %v3051 = vpack.c.b16 %v2997, %v2994
        %v3052 = vpack.c.b16 %v3001, %v2998
        %v3053 = vpack.c.b16 %v3002, %v2999
        %v3054 = vpack.c.b16 %v3003, %v3000
        %v3055 = vpack.c.b16 %v3004, %v3004
        %v3056 = vpack.c.b16 %v3005, %v3005
        %v3057 = vpack.c.b16 %v3006, %v3006
        %vm3058 = vsmask.f32 4352
        %v3060 = vshrl.u32 %v3007, 16
        %v3062 = vrot.slane %v3060, 3
        %v3063 = vshll.u32 %v3007, 16
        %v3065 = vrot.slane %v3063, 4
        %v3066 = vor.u32 %v3062, %v3065
        %v3068 = vshrl.u32 %v3010, 16
        %v3070 = vrot.slane %v3068, 3
        %v3071 = vshll.u32 %v3010, 16
        %v3073 = vrot.slane %v3071, 4
        %v3074 = vor.u32 %v3070, %v3073
        %v3075 = vsel %vm3058, %v3066, %v3074
        %v3077 = vshrl.u32 %v3008, 16
        %v3079 = vrot.slane %v3077, 3
        %v3080 = vshll.u32 %v3008, 16
        %v3082 = vrot.slane %v3080, 4
        %v3083 = vor.u32 %v3079, %v3082
        %v3085 = vshrl.u32 %v3011, 16
        %v3087 = vrot.slane %v3085, 3
        %v3088 = vshll.u32 %v3011, 16
        %v3090 = vrot.slane %v3088, 4
        %v3091 = vor.u32 %v3087, %v3090
        %v3092 = vsel %vm3058, %v3083, %v3091
        %v3094 = vshrl.u32 %v3009, 16
        %v3096 = vrot.slane %v3094, 3
        %v3097 = vshll.u32 %v3009, 16
        %v3099 = vrot.slane %v3097, 4
        %v3100 = vor.u32 %v3096, %v3099
        %v3102 = vshrl.u32 %v3012, 16
        %v3104 = vrot.slane %v3102, 3
        %v3105 = vshll.u32 %v3012, 16
        %v3107 = vrot.slane %v3105, 4
        %v3108 = vor.u32 %v3104, %v3107
        %v3109 = vsel %vm3058, %v3100, %v3108
        %v3111 = vshrl.u32 %v3013, 16
        %v3113 = vrot.slane %v3111, 3
        %v3114 = vshll.u32 %v3013, 16
        %v3116 = vrot.slane %v3114, 4
        %v3117 = vor.u32 %v3113, %v3116
        %v3118 = vsel %vm3058, %v3074, %v3117
        %v3120 = vshrl.u32 %v3014, 16
        %v3122 = vrot.slane %v3120, 3
        %v3123 = vshll.u32 %v3014, 16
        %v3125 = vrot.slane %v3123, 4
        %v3126 = vor.u32 %v3122, %v3125
        %v3127 = vsel %vm3058, %v3091, %v3126
        %v3129 = vshrl.u32 %v3015, 16
        %v3131 = vrot.slane %v3129, 3
        %v3132 = vshll.u32 %v3015, 16
        %v3134 = vrot.slane %v3132, 4
        %v3135 = vor.u32 %v3131, %v3134
        %v3136 = vsel %vm3058, %v3108, %v3135
        %v3138 = vshrl.u32 %v3016, 16
        %v3140 = vrot.slane %v3138, 3
        %v3141 = vshll.u32 %v3016, 16
        %v3143 = vrot.slane %v3141, 4
        %v3144 = vor.u32 %v3140, %v3143
        %v3145 = vsel %vm3058, %v3117, %v3144
        %v3147 = vshrl.u32 %v3017, 16
        %v3149 = vrot.slane %v3147, 3
        %v3150 = vshll.u32 %v3017, 16
        %v3152 = vrot.slane %v3150, 4
        %v3153 = vor.u32 %v3149, %v3152
        %v3154 = vsel %vm3058, %v3126, %v3153
        %v3156 = vshrl.u32 %v3018, 16
        %v3158 = vrot.slane %v3156, 3
        %v3159 = vshll.u32 %v3018, 16
        %v3161 = vrot.slane %v3159, 4
        %v3162 = vor.u32 %v3158, %v3161
        %v3163 = vsel %vm3058, %v3135, %v3162
        %v3165 = vshrl.u32 %v3019, 16
        %v3167 = vrot.slane %v3165, 3
        %v3168 = vshll.u32 %v3019, 16
        %v3170 = vrot.slane %v3168, 4
        %v3171 = vor.u32 %v3167, %v3170
        %v3172 = vsel %vm3058, %v3144, %v3171
        %v3174 = vshrl.u32 %v3020, 16
        %v3176 = vrot.slane %v3174, 3
        %v3177 = vshll.u32 %v3020, 16
        %v3179 = vrot.slane %v3177, 4
        %v3180 = vor.u32 %v3176, %v3179
        %v3181 = vsel %vm3058, %v3153, %v3180
        %v3183 = vshrl.u32 %v3021, 16
        %v3185 = vrot.slane %v3183, 3
        %v3186 = vshll.u32 %v3021, 16
        %v3188 = vrot.slane %v3186, 4
        %v3189 = vor.u32 %v3185, %v3188
        %v3190 = vsel %vm3058, %v3162, %v3189
        %v3192 = vshrl.u32 %v3022, 16
        %v3194 = vrot.slane %v3192, 3
        %v3195 = vshll.u32 %v3022, 16
        %v3197 = vrot.slane %v3195, 4
        %v3198 = vor.u32 %v3194, %v3197
        %v3199 = vsel %vm3058, %v3171, %v3198
        %v3201 = vshrl.u32 %v3023, 16
        %v3203 = vrot.slane %v3201, 3
        %v3204 = vshll.u32 %v3023, 16
        %v3206 = vrot.slane %v3204, 4
        %v3207 = vor.u32 %v3203, %v3206
        %v3208 = vsel %vm3058, %v3180, %v3207
        %v3210 = vshrl.u32 %v3024, 16
        %v3212 = vrot.slane %v3210, 3
        %v3213 = vshll.u32 %v3024, 16
        %v3215 = vrot.slane %v3213, 4
        %v3216 = vor.u32 %v3212, %v3215
        %v3217 = vsel %vm3058, %v3189, %v3216
        %v3219 = vshrl.u32 %v3025, 16
        %v3221 = vrot.slane %v3219, 3
        %v3222 = vshll.u32 %v3025, 16
        %v3224 = vrot.slane %v3222, 4
        %v3225 = vor.u32 %v3221, %v3224
        %v3226 = vsel %vm3058, %v3198, %v3225
        %v3228 = vshrl.u32 %v3026, 16
        %v3230 = vrot.slane %v3228, 3
        %v3231 = vshll.u32 %v3026, 16
        %v3233 = vrot.slane %v3231, 4
        %v3234 = vor.u32 %v3230, %v3233
        %v3235 = vsel %vm3058, %v3207, %v3234
        %v3237 = vshrl.u32 %v3027, 16
        %v3239 = vrot.slane %v3237, 3
        %v3240 = vshll.u32 %v3027, 16
        %v3242 = vrot.slane %v3240, 4
        %v3243 = vor.u32 %v3239, %v3242
        %v3244 = vsel %vm3058, %v3216, %v3243
        %v3246 = vshrl.u32 %v3028, 16
        %v3248 = vrot.slane %v3246, 3
        %v3249 = vshll.u32 %v3028, 16
        %v3251 = vrot.slane %v3249, 4
        %v3252 = vor.u32 %v3248, %v3251
        %v3253 = vsel %vm3058, %v3225, %v3252
        %v3255 = vshrl.u32 %v3029, 16
        %v3257 = vrot.slane %v3255, 3
        %v3258 = vshll.u32 %v3029, 16
        %v3260 = vrot.slane %v3258, 4
        %v3261 = vor.u32 %v3257, %v3260
        %v3262 = vsel %vm3058, %v3234, %v3261
        %v3264 = vshrl.u32 %v3030, 16
        %v3266 = vrot.slane %v3264, 3
        %v3267 = vshll.u32 %v3030, 16
        %v3269 = vrot.slane %v3267, 4
        %v3270 = vor.u32 %v3266, %v3269
        %v3271 = vsel %vm3058, %v3243, %v3270
        %v3273 = vshrl.u32 %v3031, 16
        %v3275 = vrot.slane %v3273, 3
        %v3276 = vshll.u32 %v3031, 16
        %v3278 = vrot.slane %v3276, 4
        %v3279 = vor.u32 %v3275, %v3278
        %v3280 = vsel %vm3058, %v3252, %v3279
        %v3282 = vshrl.u32 %v3032, 16
        %v3284 = vrot.slane %v3282, 3
        %v3285 = vshll.u32 %v3032, 16
        %v3287 = vrot.slane %v3285, 4
        %v3288 = vor.u32 %v3284, %v3287
        %v3289 = vsel %vm3058, %v3261, %v3288
        %v3291 = vshrl.u32 %v3033, 16
        %v3293 = vrot.slane %v3291, 3
        %v3294 = vshll.u32 %v3033, 16
        %v3296 = vrot.slane %v3294, 4
        %v3297 = vor.u32 %v3293, %v3296
        %v3298 = vsel %vm3058, %v3270, %v3297
        %v3300 = vshrl.u32 %v3034, 16
        %v3302 = vrot.slane %v3300, 3
        %v3303 = vshll.u32 %v3034, 16
        %v3305 = vrot.slane %v3303, 4
        %v3306 = vor.u32 %v3302, %v3305
        %v3307 = vsel %vm3058, %v3279, %v3306
        %v3309 = vshrl.u32 %v3035, 16
        %v3311 = vrot.slane %v3309, 3
        %v3312 = vshll.u32 %v3035, 16
        %v3314 = vrot.slane %v3312, 4
        %v3315 = vor.u32 %v3311, %v3314
        %v3316 = vsel %vm3058, %v3288, %v3315
        %v3318 = vshrl.u32 %v3036, 16
        %v3320 = vrot.slane %v3318, 3
        %v3321 = vshll.u32 %v3036, 16
        %v3323 = vrot.slane %v3321, 4
        %v3324 = vor.u32 %v3320, %v3323
        %v3325 = vsel %vm3058, %v3297, %v3324
        %v3327 = vshrl.u32 %v3037, 16
        %v3329 = vrot.slane %v3327, 3
        %v3330 = vshll.u32 %v3037, 16
        %v3332 = vrot.slane %v3330, 4
        %v3333 = vor.u32 %v3329, %v3332
        %v3334 = vsel %vm3058, %v3306, %v3333
        %v3336 = vshrl.u32 %v3038, 16
        %v3338 = vrot.slane %v3336, 3
        %v3339 = vshll.u32 %v3038, 16
        %v3341 = vrot.slane %v3339, 4
        %v3342 = vor.u32 %v3338, %v3341
        %v3343 = vsel %vm3058, %v3315, %v3342
        %v3345 = vshrl.u32 %v3039, 16
        %v3347 = vrot.slane %v3345, 3
        %v3348 = vshll.u32 %v3039, 16
        %v3350 = vrot.slane %v3348, 4
        %v3351 = vor.u32 %v3347, %v3350
        %v3352 = vsel %vm3058, %v3324, %v3351
        %v3354 = vshrl.u32 %v3040, 16
        %v3356 = vrot.slane %v3354, 3
        %v3357 = vshll.u32 %v3040, 16
        %v3359 = vrot.slane %v3357, 4
        %v3360 = vor.u32 %v3356, %v3359
        %v3361 = vsel %vm3058, %v3333, %v3360
        %v3363 = vshrl.u32 %v3041, 16
        %v3365 = vrot.slane %v3363, 3
        %v3366 = vshll.u32 %v3041, 16
        %v3368 = vrot.slane %v3366, 4
        %v3369 = vor.u32 %v3365, %v3368
        %v3370 = vsel %vm3058, %v3342, %v3369
        %v3372 = vshrl.u32 %v3042, 16
        %v3374 = vrot.slane %v3372, 3
        %v3375 = vshll.u32 %v3042, 16
        %v3377 = vrot.slane %v3375, 4
        %v3378 = vor.u32 %v3374, %v3377
        %v3379 = vsel %vm3058, %v3351, %v3378
        %v3381 = vshrl.u32 %v3043, 16
        %v3383 = vrot.slane %v3381, 3
        %v3384 = vshll.u32 %v3043, 16
        %v3386 = vrot.slane %v3384, 4
        %v3387 = vor.u32 %v3383, %v3386
        %v3388 = vsel %vm3058, %v3360, %v3387
        %v3390 = vshrl.u32 %v3044, 16
        %v3392 = vrot.slane %v3390, 3
        %v3393 = vshll.u32 %v3044, 16
        %v3395 = vrot.slane %v3393, 4
        %v3396 = vor.u32 %v3392, %v3395
        %v3397 = vsel %vm3058, %v3369, %v3396
        %v3399 = vshrl.u32 %v3045, 16
        %v3401 = vrot.slane %v3399, 3
        %v3402 = vshll.u32 %v3045, 16
        %v3404 = vrot.slane %v3402, 4
        %v3405 = vor.u32 %v3401, %v3404
        %v3406 = vsel %vm3058, %v3378, %v3405
        %v3408 = vshrl.u32 %v3046, 16
        %v3410 = vrot.slane %v3408, 3
        %v3411 = vshll.u32 %v3046, 16
        %v3413 = vrot.slane %v3411, 4
        %v3414 = vor.u32 %v3410, %v3413
        %v3415 = vsel %vm3058, %v3387, %v3414
        %v3417 = vshrl.u32 %v3047, 16
        %v3419 = vrot.slane %v3417, 3
        %v3420 = vshll.u32 %v3047, 16
        %v3422 = vrot.slane %v3420, 4
        %v3423 = vor.u32 %v3419, %v3422
        %v3424 = vsel %vm3058, %v3396, %v3423
        %v3426 = vshrl.u32 %v3048, 16
        %v3428 = vrot.slane %v3426, 3
        %v3429 = vshll.u32 %v3048, 16
        %v3431 = vrot.slane %v3429, 4
        %v3432 = vor.u32 %v3428, %v3431
        %v3433 = vsel %vm3058, %v3405, %v3432
        %v3435 = vshrl.u32 %v3049, 16
        %v3437 = vrot.slane %v3435, 3
        %v3438 = vshll.u32 %v3049, 16
        %v3440 = vrot.slane %v3438, 4
        %v3441 = vor.u32 %v3437, %v3440
        %v3442 = vsel %vm3058, %v3414, %v3441
        %v3444 = vshrl.u32 %v3050, 16
        %v3446 = vrot.slane %v3444, 3
        %v3447 = vshll.u32 %v3050, 16
        %v3449 = vrot.slane %v3447, 4
        %v3450 = vor.u32 %v3446, %v3449
        %v3451 = vsel %vm3058, %v3423, %v3450
        %v3453 = vshrl.u32 %v3051, 16
        %v3455 = vrot.slane %v3453, 3
        %v3456 = vshll.u32 %v3051, 16
        %v3458 = vrot.slane %v3456, 4
        %v3459 = vor.u32 %v3455, %v3458
        %v3460 = vsel %vm3058, %v3432, %v3459
        %v3462 = vshrl.u32 %v3052, 16
        %v3464 = vrot.slane %v3462, 3
        %v3465 = vshll.u32 %v3052, 16
        %v3467 = vrot.slane %v3465, 4
        %v3468 = vor.u32 %v3464, %v3467
        %v3469 = vsel %vm3058, %v3441, %v3468
        %v3471 = vshrl.u32 %v3053, 16
        %v3473 = vrot.slane %v3471, 3
        %v3474 = vshll.u32 %v3053, 16
        %v3476 = vrot.slane %v3474, 4
        %v3477 = vor.u32 %v3473, %v3476
        %v3478 = vsel %vm3058, %v3450, %v3477
        %v3480 = vshrl.u32 %v3054, 16
        %v3482 = vrot.slane %v3480, 3
        %v3483 = vshll.u32 %v3054, 16
        %v3485 = vrot.slane %v3483, 4
        %v3486 = vor.u32 %v3482, %v3485
        %v3487 = vsel %vm3058, %v3459, %v3486
        %v3489 = vshrl.u32 %v3055, 16
        %v3491 = vrot.slane %v3489, 3
        %v3492 = vshll.u32 %v3055, 16
        %v3494 = vrot.slane %v3492, 4
        %v3495 = vor.u32 %v3491, %v3494
        %v3496 = vsel %vm3058, %v3468, %v3495
        %v3498 = vshrl.u32 %v3056, 16
        %v3500 = vrot.slane %v3498, 3
        %v3501 = vshll.u32 %v3056, 16
        %v3503 = vrot.slane %v3501, 4
        %v3504 = vor.u32 %v3500, %v3503
        %v3505 = vsel %vm3058, %v3477, %v3504
        %v3507 = vshrl.u32 %v3057, 16
        %v3509 = vrot.slane %v3507, 3
        %v3510 = vshll.u32 %v3057, 16
        %v3512 = vrot.slane %v3510, 4
        %v3513 = vor.u32 %v3509, %v3512
        %v3514 = vsel %vm3058, %v3486, %v3513
        %v3611 = vunpack.c.l.b16 %v2078
        %v3612 = vunpack.c.l.b16 %v2079
        %v3613 = vunpack.c.l.b16 %v2080
        %v3614 = vunpack.c.l.b16 %v2081
        %v3615 = vunpack.c.l.b16 %v2082
        %v3616 = vunpack.c.l.b16 %v2083
        %v3617 = vunpack.c.l.b16 %v2084
        %v3618 = vunpack.c.l.b16 %v2085
        %v3619 = vunpack.c.l.b16 %v2086
        %v3620 = vunpack.c.l.b16 %v2087
        %v3621 = vunpack.c.l.b16 %v2088
        %v3622 = vunpack.c.l.b16 %v2089
        %v3623 = vunpack.c.l.b16 %v2090
        %v3624 = vunpack.c.l.b16 %v2091
        %v3625 = vunpack.c.l.b16 %v2092
        %v3626 = vunpack.c.l.b16 %v2093
        %v3627 = vunpack.c.l.b16 %v2094
        %v3628 = vunpack.c.l.b16 %v2095
        %v3629 = vunpack.c.l.b16 %v2096
        %v3630 = vunpack.c.l.b16 %v2097
        %v3631 = vunpack.c.l.b16 %v2098
        %v3632 = vunpack.c.l.b16 %v2099
        %v3633 = vunpack.c.l.b16 %v2100
        %v3634 = vunpack.c.l.b16 %v2101
        %v3635 = vunpack.c.l.b16 %v2102
        %v3636 = vunpack.c.l.b16 %v2103
        %v3637 = vunpack.c.l.b16 %v2104
        %v3638 = vunpack.c.l.b16 %v2105
        %v3639 = vunpack.c.l.b16 %v2106
        %v3640 = vunpack.c.l.b16 %v2107
        %v3641 = vunpack.c.l.b16 %v2108
        %v3642 = vunpack.c.l.b16 %v2109
        %v3643 = vunpack.c.l.b16 %v2110
        %v3644 = vunpack.c.l.b16 %v2111
        %v3645 = vunpack.c.l.b16 %v2112
        %v3646 = vunpack.c.l.b16 %v2113
        %v3647 = vunpack.c.l.b16 %v2114
        %v3648 = vunpack.c.l.b16 %v2115
        %v3649 = vunpack.c.l.b16 %v2116
        %v3650 = vunpack.c.l.b16 %v2117
        %v3651 = vunpack.c.l.b16 %v2118
        %v3652 = vunpack.c.l.b16 %v2119
        %v3653 = vunpack.c.l.b16 %v2120
        %v3654 = vunpack.c.l.b16 %v2121
        %v3655 = vunpack.c.l.b16 %v2122
        %v3656 = vunpack.c.l.b16 %v2123
        %v3657 = vunpack.c.l.b16 %v2124
        %v3658 = vunpack.c.l.b16 %v2125
        %v3659 = vpack.c.b16 %v3612, %v3611
        %v3660 = vpack.c.b16 %v3614, %v3613
        %v3661 = vpack.c.b16 %v3616, %v3615
        %v3662 = vpack.c.b16 %v3618, %v3617
        %v3663 = vpack.c.b16 %v3620, %v3619
        %v3664 = vpack.c.b16 %v3622, %v3621
        %v3665 = vpack.c.b16 %v3624, %v3623
        %v3666 = vpack.c.b16 %v3626, %v3625
        %v3667 = vpack.c.b16 %v3628, %v3627
        %v3668 = vpack.c.b16 %v3630, %v3629
        %v3669 = vpack.c.b16 %v3632, %v3631
        %v3670 = vpack.c.b16 %v3634, %v3633
        %v3671 = vpack.c.b16 %v3636, %v3635
        %v3672 = vpack.c.b16 %v3638, %v3637
        %v3673 = vpack.c.b16 %v3640, %v3639
        %v3674 = vpack.c.b16 %v3642, %v3641
        %v3675 = vpack.c.b16 %v3644, %v3643
        %v3676 = vpack.c.b16 %v3646, %v3645
        %v3677 = vpack.c.b16 %v3648, %v3647
        %v3678 = vpack.c.b16 %v3650, %v3649
        %v3679 = vpack.c.b16 %v3652, %v3651
        %v3680 = vpack.c.b16 %v3654, %v3653
        %v3681 = vpack.c.b16 %v3656, %v3655
        %v3682 = vpack.c.b16 %v3658, %v3657
        %3707 = vmatpush.bf16.msra.mxu0 %v3666
        %3708 = vmatpush.bf16.msra.mxu0 %v3665
        %3709 = vmatpush.bf16.msra.mxu0 %v3664
        %3710 = vmatpush.bf16.msra.mxu0 %v3663
        %3711 = vmatpush.bf16.msra.mxu0 %v3662
        %3712 = vmatpush.bf16.msra.mxu0 %v3661
        %3713 = vmatpush.bf16.msra.mxu0 %v3660
        %3714 = vmatpush.bf16.msra.mxu0 %v3659
        %3715 = vmatmul.bf16.gmra.mxu0 %v3075
        %v3716 = vpop.f32.mrf.mxu0
        %v3717 = vadd.f32 %v2763, %v3716
        %v3718 = vpop.f32.mrf.mxu0
        %v3719 = vadd.f32 %v2765, %v3718
        %3720 = vmatmul.bf16.gmra.mxu0 %v3118
        %v3721 = vpop.f32.mrf.mxu0
        %v3722 = vadd.f32 %v2768, %v3721
        %v3723 = vpop.f32.mrf.mxu0
        %v3724 = vadd.f32 %v2770, %v3723
        %3725 = vmatmul.bf16.gmra.mxu0 %v3145
        %v3726 = vpop.f32.mrf.mxu0
        %v3727 = vadd.f32 %v2773, %v3726
        %v3728 = vpop.f32.mrf.mxu0
        %v3729 = vadd.f32 %v2775, %v3728
        %3730 = vmatmul.bf16.gmra.mxu0 %v3172
        %v3731 = vpop.f32.mrf.mxu0
        %v3732 = vadd.f32 %v2778, %v3731
        %v3733 = vpop.f32.mrf.mxu0
        %v3734 = vadd.f32 %v2780, %v3733
        %3735 = vmatmul.bf16.gmra.mxu0 %v3199
        %v3736 = vpop.f32.mrf.mxu0
        %v3737 = vadd.f32 %v2783, %v3736
        %v3738 = vpop.f32.mrf.mxu0
        %v3739 = vadd.f32 %v2785, %v3738
        %3740 = vmatmul.bf16.gmra.mxu0 %v3226
        %v3741 = vpop.f32.mrf.mxu0
        %v3742 = vadd.f32 %v2788, %v3741
        %v3743 = vpop.f32.mrf.mxu0
        %v3744 = vadd.f32 %v2790, %v3743
        %3745 = vmatmul.bf16.gmra.mxu0 %v3253
        %v3746 = vpop.f32.mrf.mxu0
        %v3747 = vadd.f32 %v2793, %v3746
        %v3748 = vpop.f32.mrf.mxu0
        %v3749 = vadd.f32 %v2795, %v3748
        %3750 = vmatmul.bf16.gmra.mxu0 %v3280
        %v3751 = vpop.f32.mrf.mxu0
        %v3752 = vadd.f32 %v2798, %v3751
        %v3753 = vpop.f32.mrf.mxu0
        %v3754 = vadd.f32 %v2800, %v3753
        %3755 = vmatmul.bf16.gmra.mxu0 %v3307
        %v3756 = vpop.f32.mrf.mxu0
        %v3757 = vadd.f32 %v2803, %v3756
        %v3758 = vpop.f32.mrf.mxu0
        %v3759 = vadd.f32 %v2805, %v3758
        %3760 = vmatmul.bf16.gmra.mxu0 %v3334
        %v3761 = vpop.f32.mrf.mxu0
        %v3762 = vadd.f32 %v2808, %v3761
        %v3763 = vpop.f32.mrf.mxu0
        %v3764 = vadd.f32 %v2810, %v3763
        %3765 = vmatmul.bf16.gmra.mxu0 %v3361
        %v3766 = vpop.f32.mrf.mxu0
        %v3767 = vadd.f32 %v2813, %v3766
        %v3768 = vpop.f32.mrf.mxu0
        %v3769 = vadd.f32 %v2815, %v3768
        %3770 = vmatmul.bf16.gmra.mxu0 %v3388
        %v3771 = vpop.f32.mrf.mxu0
        %v3772 = vadd.f32 %v2818, %v3771
        %v3773 = vpop.f32.mrf.mxu0
        %v3774 = vadd.f32 %v2820, %v3773
        %3775 = vmatmul.bf16.gmra.mxu0 %v3415
        %v3776 = vpop.f32.mrf.mxu0
        %v3777 = vadd.f32 %v2823, %v3776
        %v3778 = vpop.f32.mrf.mxu0
        %v3779 = vadd.f32 %v2825, %v3778
        %3780 = vmatmul.bf16.gmra.mxu0 %v3442
        %v3781 = vpop.f32.mrf.mxu0
        %v3782 = vadd.f32 %v2828, %v3781
        %v3783 = vpop.f32.mrf.mxu0
        %v3784 = vadd.f32 %v2830, %v3783
        %3785 = vmatmul.bf16.gmra.mxu0 %v3469
        %v3786 = vpop.f32.mrf.mxu0
        %v3787 = vadd.f32 %v2833, %v3786
        %v3788 = vpop.f32.mrf.mxu0
        %v3789 = vadd.f32 %v2835, %v3788
        %3790 = vmatmul.bf16.gmra.mxu0 %v3496
        %v3791 = vpop.f32.mrf.mxu0
        %v3792 = vadd.f32 %v2838, %v3791
        %v3793 = vpop.f32.mrf.mxu0
        %v3794 = vadd.f32 %v2840, %v3793
        %3795 = vdwg.mxu0
        %3796 = vmatpush.bf16.msra.mxu0 %v3674
        %3797 = vmatpush.bf16.msra.mxu0 %v3673
        %3798 = vmatpush.bf16.msra.mxu0 %v3672
        %3799 = vmatpush.bf16.msra.mxu0 %v3671
        %3800 = vmatpush.bf16.msra.mxu0 %v3670
        %3801 = vmatpush.bf16.msra.mxu0 %v3669
        %3802 = vmatpush.bf16.msra.mxu0 %v3668
        %3803 = vmatpush.bf16.msra.mxu0 %v3667
        %3804 = vmatmul.bf16.gmra.mxu0 %v3092
        %v3805 = vpop.f32.mrf.mxu0
        %v3806 = vadd.f32 %v3717, %v3805
        %v3807 = vpop.f32.mrf.mxu0
        %v3808 = vadd.f32 %v3719, %v3807
        %3809 = vmatmul.bf16.gmra.mxu0 %v3127
        %v3810 = vpop.f32.mrf.mxu0
        %v3811 = vadd.f32 %v3722, %v3810
        %v3812 = vpop.f32.mrf.mxu0
        %v3813 = vadd.f32 %v3724, %v3812
        %3814 = vmatmul.bf16.gmra.mxu0 %v3154
        %v3815 = vpop.f32.mrf.mxu0
        %v3816 = vadd.f32 %v3727, %v3815
        %v3817 = vpop.f32.mrf.mxu0
        %v3818 = vadd.f32 %v3729, %v3817
        %3819 = vmatmul.bf16.gmra.mxu0 %v3181
        %v3820 = vpop.f32.mrf.mxu0
        %v3821 = vadd.f32 %v3732, %v3820
        %v3822 = vpop.f32.mrf.mxu0
        %v3823 = vadd.f32 %v3734, %v3822
        %3824 = vmatmul.bf16.gmra.mxu0 %v3208
        %v3825 = vpop.f32.mrf.mxu0
        %v3826 = vadd.f32 %v3737, %v3825
        %v3827 = vpop.f32.mrf.mxu0
        %v3828 = vadd.f32 %v3739, %v3827
        %3829 = vmatmul.bf16.gmra.mxu0 %v3235
        %v3830 = vpop.f32.mrf.mxu0
        %v3831 = vadd.f32 %v3742, %v3830
        %v3832 = vpop.f32.mrf.mxu0
        %v3833 = vadd.f32 %v3744, %v3832
        %3834 = vmatmul.bf16.gmra.mxu0 %v3262
        %v3835 = vpop.f32.mrf.mxu0
        %v3836 = vadd.f32 %v3747, %v3835
        %v3837 = vpop.f32.mrf.mxu0
        %v3838 = vadd.f32 %v3749, %v3837
        %3839 = vmatmul.bf16.gmra.mxu0 %v3289
        %v3840 = vpop.f32.mrf.mxu0
        %v3841 = vadd.f32 %v3752, %v3840
        %v3842 = vpop.f32.mrf.mxu0
        %v3843 = vadd.f32 %v3754, %v3842
        %3844 = vmatmul.bf16.gmra.mxu0 %v3316
        %v3845 = vpop.f32.mrf.mxu0
        %v3846 = vadd.f32 %v3757, %v3845
        %v3847 = vpop.f32.mrf.mxu0
        %v3848 = vadd.f32 %v3759, %v3847
        %3849 = vmatmul.bf16.gmra.mxu0 %v3343
        %v3850 = vpop.f32.mrf.mxu0
        %v3851 = vadd.f32 %v3762, %v3850
        %v3852 = vpop.f32.mrf.mxu0
        %v3853 = vadd.f32 %v3764, %v3852
        %3854 = vmatmul.bf16.gmra.mxu0 %v3370
        %v3855 = vpop.f32.mrf.mxu0
        %v3856 = vadd.f32 %v3767, %v3855
        %v3857 = vpop.f32.mrf.mxu0
        %v3858 = vadd.f32 %v3769, %v3857
        %3859 = vmatmul.bf16.gmra.mxu0 %v3397
        %v3860 = vpop.f32.mrf.mxu0
        %v3861 = vadd.f32 %v3772, %v3860
        %v3862 = vpop.f32.mrf.mxu0
        %v3863 = vadd.f32 %v3774, %v3862
        %3864 = vmatmul.bf16.gmra.mxu0 %v3424
        %v3865 = vpop.f32.mrf.mxu0
        %v3866 = vadd.f32 %v3777, %v3865
        %v3867 = vpop.f32.mrf.mxu0
        %v3868 = vadd.f32 %v3779, %v3867
        %3869 = vmatmul.bf16.gmra.mxu0 %v3451
        %v3870 = vpop.f32.mrf.mxu0
        %v3871 = vadd.f32 %v3782, %v3870
        %v3872 = vpop.f32.mrf.mxu0
        %v3873 = vadd.f32 %v3784, %v3872
        %3874 = vmatmul.bf16.gmra.mxu0 %v3478
        %v3875 = vpop.f32.mrf.mxu0
        %v3876 = vadd.f32 %v3787, %v3875
        %v3877 = vpop.f32.mrf.mxu0
        %v3878 = vadd.f32 %v3789, %v3877
        %3879 = vmatmul.bf16.gmra.mxu0 %v3505
        %v3880 = vpop.f32.mrf.mxu0
        %v3881 = vadd.f32 %v3792, %v3880
        %v3882 = vpop.f32.mrf.mxu0
        %v3883 = vadd.f32 %v3794, %v3882
        %3884 = vdwg.mxu0
        %3885 = vmatpush.bf16.msra.mxu0 %v3682
        %3886 = vmatpush.bf16.msra.mxu0 %v3681
        %3887 = vmatpush.bf16.msra.mxu0 %v3680
        %3888 = vmatpush.bf16.msra.mxu0 %v3679
        %3889 = vmatpush.bf16.msra.mxu0 %v3678
        %3890 = vmatpush.bf16.msra.mxu0 %v3677
        %3891 = vmatpush.bf16.msra.mxu0 %v3676
        %3892 = vmatpush.bf16.msra.mxu0 %v3675
        %3893 = vmatmul.bf16.gmra.mxu0 %v3109
        %v3894 = vpop.f32.mrf.mxu0
        %v3895 = vadd.f32 %v3806, %v3894
        %v3896 = vpop.f32.mrf.mxu0
        %v3897 = vadd.f32 %v3808, %v3896
        %3898 = vmatmul.bf16.gmra.mxu0 %v3136
        %v3899 = vpop.f32.mrf.mxu0
        %v3900 = vadd.f32 %v3811, %v3899
        %v3901 = vpop.f32.mrf.mxu0
        %v3902 = vadd.f32 %v3813, %v3901
        %3903 = vmatmul.bf16.gmra.mxu0 %v3163
        %v3904 = vpop.f32.mrf.mxu0
        %v3905 = vadd.f32 %v3816, %v3904
        %v3906 = vpop.f32.mrf.mxu0
        %v3907 = vadd.f32 %v3818, %v3906
        %3908 = vmatmul.bf16.gmra.mxu0 %v3190
        %v3909 = vpop.f32.mrf.mxu0
        %v3910 = vadd.f32 %v3821, %v3909
        %v3911 = vpop.f32.mrf.mxu0
        %v3912 = vadd.f32 %v3823, %v3911
        %3913 = vmatmul.bf16.gmra.mxu0 %v3217
        %v3914 = vpop.f32.mrf.mxu0
        %v3915 = vadd.f32 %v3826, %v3914
        %v3916 = vpop.f32.mrf.mxu0
        %v3917 = vadd.f32 %v3828, %v3916
        %3918 = vmatmul.bf16.gmra.mxu0 %v3244
        %v3919 = vpop.f32.mrf.mxu0
        %v3920 = vadd.f32 %v3831, %v3919
        %v3921 = vpop.f32.mrf.mxu0
        %v3922 = vadd.f32 %v3833, %v3921
        %3923 = vmatmul.bf16.gmra.mxu0 %v3271
        %v3924 = vpop.f32.mrf.mxu0
        %v3925 = vadd.f32 %v3836, %v3924
        %v3926 = vpop.f32.mrf.mxu0
        %v3927 = vadd.f32 %v3838, %v3926
        %3928 = vmatmul.bf16.gmra.mxu0 %v3298
        %v3929 = vpop.f32.mrf.mxu0
        %v3930 = vadd.f32 %v3841, %v3929
        %v3931 = vpop.f32.mrf.mxu0
        %v3932 = vadd.f32 %v3843, %v3931
        %3933 = vmatmul.bf16.gmra.mxu0 %v3325
        %v3934 = vpop.f32.mrf.mxu0
        %v3935 = vadd.f32 %v3846, %v3934
        %v3936 = vpop.f32.mrf.mxu0
        %v3937 = vadd.f32 %v3848, %v3936
        %3938 = vmatmul.bf16.gmra.mxu0 %v3352
        %v3939 = vpop.f32.mrf.mxu0
        %v3940 = vadd.f32 %v3851, %v3939
        %v3941 = vpop.f32.mrf.mxu0
        %v3942 = vadd.f32 %v3853, %v3941
        %3943 = vmatmul.bf16.gmra.mxu0 %v3379
        %v3944 = vpop.f32.mrf.mxu0
        %v3945 = vadd.f32 %v3856, %v3944
        %v3946 = vpop.f32.mrf.mxu0
        %v3947 = vadd.f32 %v3858, %v3946
        %3948 = vmatmul.bf16.gmra.mxu0 %v3406
        %v3949 = vpop.f32.mrf.mxu0
        %v3950 = vadd.f32 %v3861, %v3949
        %v3951 = vpop.f32.mrf.mxu0
        %v3952 = vadd.f32 %v3863, %v3951
        %3953 = vmatmul.bf16.gmra.mxu0 %v3433
        %v3954 = vpop.f32.mrf.mxu0
        %v3955 = vadd.f32 %v3866, %v3954
        %v3956 = vpop.f32.mrf.mxu0
        %v3957 = vadd.f32 %v3868, %v3956
        %3958 = vmatmul.bf16.gmra.mxu0 %v3460
        %v3959 = vpop.f32.mrf.mxu0
        %v3960 = vadd.f32 %v3871, %v3959
        %v3961 = vpop.f32.mrf.mxu0
        %v3962 = vadd.f32 %v3873, %v3961
        %3963 = vmatmul.bf16.gmra.mxu0 %v3487
        %v3964 = vpop.f32.mrf.mxu0
        %v3965 = vadd.f32 %v3876, %v3964
        %v3966 = vpop.f32.mrf.mxu0
        %v3967 = vadd.f32 %v3878, %v3966
        %3968 = vmatmul.bf16.gmra.mxu0 %v3514
        %v3969 = vpop.f32.mrf.mxu0
        %v3970 = vadd.f32 %v3881, %v3969
        %v3971 = vpop.f32.mrf.mxu0
        %v3972 = vadd.f32 %v3883, %v3971
        %3973 = vdwg.mxu0
        %v3974 = vld [vmem:[#allocation2 + $0xc] sm:$0xff]
        %v3975 = vld [vmem:[#allocation2 + $0x14] sm:$0xf]
        %v3976 = vld [vmem:[#allocation2 + $0x18] sm:$0xff]
        %v3977 = vld [vmem:[#allocation2 + $0x20] sm:$0xf]
        %v3978 = vld [vmem:[#allocation2 + $0x24] sm:$0xff]
        %v3979 = vld [vmem:[#allocation2 + $0x2c] sm:$0xf]
        %v3980 = vld [vmem:[#allocation2 + $0x30] sm:$0xff]
        %v3981 = vld [vmem:[#allocation2 + $0x38] sm:$0xf]
        %v3982 = vld [vmem:[#allocation2 + $0x3c] sm:$0xff]
        %v3983 = vld [vmem:[#allocation2 + $0x44] sm:$0xf]
        %v3984 = vld [vmem:[#allocation2 + $0x48] sm:$0xff]
        %v3985 = vld [vmem:[#allocation2 + $0x50] sm:$0xf]
        %v3986 = vld [vmem:[#allocation2 + $0x54] sm:$0xff]
        %v3987 = vld [vmem:[#allocation2 + $0x5c] sm:$0xf]
        %v3988 = vld [vmem:[#allocation2 + $0x60] sm:$0xff]
        %v3989 = vld [vmem:[#allocation2 + $0x68] sm:$0xf]
        %v3990 = vld [vmem:[#allocation2 + $0x6c] sm:$0xff]
        %v3991 = vld [vmem:[#allocation2 + $0x74] sm:$0xf]
        %v3992 = vld [vmem:[#allocation2 + $0x78] sm:$0xff]
        %v3993 = vld [vmem:[#allocation2 + $0x80] sm:$0xf]
        %v3994 = vld [vmem:[#allocation2 + $0x84] sm:$0xff]
        %v3995 = vld [vmem:[#allocation2 + $0x8c] sm:$0xf]
        %v3996 = vld [vmem:[#allocation2 + $0x90] sm:$0xff]
        %v3997 = vld [vmem:[#allocation2 + $0x98] sm:$0xf]
        %v3998 = vld [vmem:[#allocation2 + $0x9c] sm:$0xff]
        %v3999 = vld [vmem:[#allocation2 + $0xa4] sm:$0xf]
        %v4000 = vld [vmem:[#allocation2 + $0xa8] sm:$0xff]
        %v4001 = vld [vmem:[#allocation2 + $0xb0] sm:$0xf]
        %v4002 = vld [vmem:[#allocation2 + $0xb4] sm:$0xff]
        %v4003 = vld [vmem:[#allocation2 + $0xbc] sm:$0xf]
        %v4004 = vld [vmem:[#allocation2 + $0xc0] sm:$0xff]
        %v4005 = vld [vmem:[#allocation2 + $0xc8] sm:$0xf]
        %v4006 = vld [vmem:[#allocation2 + $0xcc] sm:$0xff]
        %v4007 = vld [vmem:[#allocation2 + $0xd4] sm:$0xf]
        %v4008 = vld [vmem:[#allocation2 + $0xd8] sm:$0xff]
        %v4009 = vld [vmem:[#allocation2 + $0xe0] sm:$0xf]
        %v4010 = vld [vmem:[#allocation2 + $0xe4] sm:$0xff]
        %v4011 = vld [vmem:[#allocation2 + $0xec] sm:$0xf]
        %v4012 = vld [vmem:[#allocation2 + $0xf0] sm:$0xff]
        %v4013 = vld [vmem:[#allocation2 + $0xf8] sm:$0xf]
        %v4014 = vld [vmem:[#allocation2 + $0xfc] sm:$0xff]
        %v4015 = vld [vmem:[#allocation2 + $0x104] sm:$0xf]
        %v4016 = vld [vmem:[#allocation2 + $0x108] sm:$0xff]
        %v4017 = vld [vmem:[#allocation2 + $0x110] sm:$0xf]
        %v4018 = vld [vmem:[#allocation2 + $0x114] sm:$0xff]
        %v4019 = vld [vmem:[#allocation2 + $0x11c] sm:$0xf]
        %v4020 = vld [vmem:[#allocation2 + $0x120] sm:$0xff]
        %v4021 = vld [vmem:[#allocation2 + $0x128] sm:$0xf]
        %v4022 = vld [vmem:[#allocation2 + $0x12c] sm:$0xff]
        %v4023 = vld [vmem:[#allocation2 + $0x134] sm:$0xf]
        %v4024 = vld [vmem:[#allocation2 + $0x138] sm:$0xff]
        %v4025 = vld [vmem:[#allocation2 + $0x140] sm:$0xf]
        %v4026 = vld [vmem:[#allocation2 + $0x144] sm:$0xff]
        %v4027 = vld [vmem:[#allocation2 + $0x14c] sm:$0xf]
        %v4028 = vld [vmem:[#allocation2 + $0x150] sm:$0xff]
        %v4029 = vld [vmem:[#allocation2 + $0x158] sm:$0xf]
        %v4030 = vld [vmem:[#allocation2 + $0x15c] sm:$0xff]
        %v4031 = vld [vmem:[#allocation2 + $0x164] sm:$0xf]
        %v4032 = vld [vmem:[#allocation2 + $0x168] sm:$0xff]
        %v4033 = vld [vmem:[#allocation2 + $0x170] sm:$0xf]
        %v4034 = vld [vmem:[#allocation2 + $0x174] sm:$0xff]
        %v4035 = vld [vmem:[#allocation2 + $0x17c] sm:$0xf]
        %v4036 = vld [vmem:[#allocation2 + $0x180] sm:$0xff]
        %v4037 = vld [vmem:[#allocation2 + $0x188] sm:$0xf]
        %v4038 = vld [vmem:[#allocation2 + $0x18c] sm:$0x11]
        %v4039 = vld [vmem:[#allocation2 + $0x194] sm:$0x1]
        %v4040 = vsel %vm1233, 1, 0
        %v4041 = vsel %vm1234, 1, 0
        %v4042 = vsel %vm1235, 1, 0
        %v4043 = vsel %vm1236, 1, 0
        %v4044 = vsel %vm1237, 1, 0
        %v4045 = vsel %vm1238, 1, 0
        %v4046 = vsel %vm1239, 1, 0
        %v4047 = vsel %vm1240, 1, 0
        %v4048 = vsel %vm1241, 1, 0
        %v4049 = vsel %vm1242, 1, 0
        %v4050 = vsel %vm1243, 1, 0
        %v4051 = vsel %vm1244, 1, 0
        %v4052 = vsel %vm1245, 1, 0
        %v4053 = vsel %vm1246, 1, 0
        %v4054 = vsel %vm1247, 1, 0
        %v4055 = vsel %vm1248, 1, 0
        %v4056 = vsel %vm1249, 1, 0
        %v4057 = vsel %vm1250, 1, 0
        %v4058 = vsel %vm1251, 1, 0
        %v4059 = vsel %vm1252, 1, 0
        %v4060 = vsel %vm1253, 1, 0
        %v4061 = vsel %vm1254, 1, 0
        %v4062 = vsel %vm1255, 1, 0
        %v4063 = vsel %vm1256, 1, 0
        %v4064 = vsel %vm1257, 1, 0
        %v4065 = vsel %vm1258, 1, 0
        %v4066 = vsel %vm1259, 1, 0
        %v4067 = vsel %vm1260, 1, 0
        %v4068 = vsel %vm1261, 1, 0
        %v4069 = vsel %vm1262, 1, 0
        %v4070 = vsel %vm1263, 1, 0
        %v4071 = vsel %vm1264, 1, 0
        %vm4072 = vcmp.eq.s32.totalorder %v4040, 1
        %vm4073 = vcmp.eq.s32.totalorder %v4041, 1
        %vm4074 = vcmp.eq.s32.totalorder %v4042, 1
        %vm4075 = vcmp.eq.s32.totalorder %v4043, 1
        %vm4076 = vcmp.eq.s32.totalorder %v4044, 1
        %vm4077 = vcmp.eq.s32.totalorder %v4045, 1
        %vm4078 = vcmp.eq.s32.totalorder %v4046, 1
        %vm4079 = vcmp.eq.s32.totalorder %v4047, 1
        %vm4080 = vcmp.eq.s32.totalorder %v4048, 1
        %vm4081 = vcmp.eq.s32.totalorder %v4049, 1
        %vm4082 = vcmp.eq.s32.totalorder %v4050, 1
        %vm4083 = vcmp.eq.s32.totalorder %v4051, 1
        %vm4084 = vcmp.eq.s32.totalorder %v4052, 1
        %vm4085 = vcmp.eq.s32.totalorder %v4053, 1
        %vm4086 = vcmp.eq.s32.totalorder %v4054, 1
        %vm4087 = vcmp.eq.s32.totalorder %v4055, 1
        %vm4088 = vcmp.eq.s32.totalorder %v4056, 1
        %vm4089 = vcmp.eq.s32.totalorder %v4057, 1
        %vm4090 = vcmp.eq.s32.totalorder %v4058, 1
        %vm4091 = vcmp.eq.s32.totalorder %v4059, 1
        %vm4092 = vcmp.eq.s32.totalorder %v4060, 1
        %vm4093 = vcmp.eq.s32.totalorder %v4061, 1
        %vm4094 = vcmp.eq.s32.totalorder %v4062, 1
        %vm4095 = vcmp.eq.s32.totalorder %v4063, 1
        %vm4096 = vcmp.eq.s32.totalorder %v4064, 1
        %vm4097 = vcmp.eq.s32.totalorder %v4065, 1
        %vm4098 = vcmp.eq.s32.totalorder %v4066, 1
        %vm4099 = vcmp.eq.s32.totalorder %v4067, 1
        %vm4100 = vcmp.eq.s32.totalorder %v4068, 1
        %vm4101 = vcmp.eq.s32.totalorder %v4069, 1
        %vm4102 = vcmp.eq.s32.totalorder %v4070, 1
        %vm4103 = vcmp.eq.s32.totalorder %v4071, 1
        %vm4104 = vmpackc.low %vm4072, %vm4072
        %vm4105 = vmpackc.low %vm4073, %vm4073
        %vm4106 = vmpackc.low %vm4074, %vm4074
        %vm4107 = vmpackc.low %vm4075, %vm4075
        %vm4108 = vmpackc.low %vm4076, %vm4076
        %vm4109 = vmpackc.low %vm4077, %vm4077
        %vm4110 = vmpackc.low %vm4078, %vm4078
        %vm4111 = vmpackc.low %vm4079, %vm4079
        %vm4112 = vmpackc.low %vm4080, %vm4080
        %vm4113 = vmpackc.low %vm4081, %vm4081
        %vm4114 = vmpackc.low %vm4082, %vm4082
        %vm4115 = vmpackc.low %vm4083, %vm4083
        %vm4116 = vmpackc.low %vm4084, %vm4084
        %vm4117 = vmpackc.low %vm4085, %vm4085
        %vm4118 = vmpackc.low %vm4086, %vm4086
        %vm4119 = vmpackc.low %vm4087, %vm4087
        %vm4120 = vmpackc.low %vm4088, %vm4088
        %vm4121 = vmpackc.low %vm4089, %vm4089
        %vm4122 = vmpackc.low %vm4090, %vm4090
        %vm4123 = vmpackc.low %vm4091, %vm4091
        %vm4124 = vmpackc.low %vm4092, %vm4092
        %vm4125 = vmpackc.low %vm4093, %vm4093
        %vm4126 = vmpackc.low %vm4094, %vm4094
        %vm4127 = vmpackc.low %vm4095, %vm4095
        %vm4128 = vmpackc.low %vm4096, %vm4096
        %vm4129 = vmpackc.low %vm4097, %vm4097
        %vm4130 = vmpackc.low %vm4098, %vm4098
        %vm4131 = vmpackc.low %vm4099, %vm4099
        %vm4132 = vmpackc.low %vm4100, %vm4100
        %vm4133 = vmpackc.low %vm4101, %vm4101
        %vm4134 = vmpackc.low %vm4102, %vm4102
        %vm4135 = vmpackc.low %vm4103, %vm4103
        %v4136 = vsel %vm4104, 65537, 0
        %v4137 = vsel %vm4105, 65537, 0
        %v4138 = vsel %vm4106, 65537, 0
        %v4139 = vsel %vm4107, 65537, 0
        %v4140 = vsel %vm4108, 65537, 0
        %v4141 = vsel %vm4109, 65537, 0
        %v4142 = vsel %vm4110, 65537, 0
        %v4143 = vsel %vm4111, 65537, 0
        %v4144 = vsel %vm4112, 65537, 0
        %v4145 = vsel %vm4113, 65537, 0
        %v4146 = vsel %vm4114, 65537, 0
        %v4147 = vsel %vm4115, 65537, 0
        %v4148 = vsel %vm4116, 65537, 0
        %v4149 = vsel %vm4117, 65537, 0
        %v4150 = vsel %vm4118, 65537, 0
        %v4151 = vsel %vm4119, 65537, 0
        %v4152 = vsel %vm4120, 65537, 0
        %v4153 = vsel %vm4121, 65537, 0
        %v4154 = vsel %vm4122, 65537, 0
        %v4155 = vsel %vm4123, 65537, 0
        %v4156 = vsel %vm4124, 65537, 0
        %v4157 = vsel %vm4125, 65537, 0
        %v4158 = vsel %vm4126, 65537, 0
        %v4159 = vsel %vm4127, 65537, 0
        %v4160 = vsel %vm4128, 65537, 0
        %v4161 = vsel %vm4129, 65537, 0
        %v4162 = vsel %vm4130, 65537, 0
        %v4163 = vsel %vm4131, 65537, 0
        %v4164 = vsel %vm4132, 65537, 0
        %v4165 = vsel %vm4133, 65537, 0
        %v4166 = vsel %vm4134, 65537, 0
        %v4167 = vsel %vm4135, 65537, 0
        %vm4168 = vsmask.f32 256
        %vm4169 = vsmask.f32 4368
        %vm4170 = vmor %vm4168, %vm4169
        %v4172 = vshrl.u32 %v4136, 16
        %v4174 = vrot.slane %v4172, 7
        %v4175 = vshll.u32 %v4136, 16
        %v4177 = vor.u32 %v4174, %v4175
        %v4178 = vrot.slane %v4174, 4
        %v4180 = vshrl.u32 %v4137, 16
        %v4182 = vrot.slane %v4180, 7
        %v4183 = vshll.u32 %v4137, 16
        %v4185 = vor.u32 %v4182, %v4183
        %v4186 = vsel %vm4170, %v4178, %v4185
        %v4187 = vrot.slane %v4182, 4
        %v4189 = vshrl.u32 %v4138, 16
        %v4191 = vrot.slane %v4189, 7
        %v4192 = vshll.u32 %v4138, 16
        %v4194 = vor.u32 %v4191, %v4192
        %v4195 = vsel %vm4170, %v4187, %v4194
        %v4196 = vrot.slane %v4191, 4
        %v4198 = vshrl.u32 %v4139, 16
        %v4200 = vrot.slane %v4198, 7
        %v4201 = vshll.u32 %v4139, 16
        %v4203 = vor.u32 %v4200, %v4201
        %v4204 = vsel %vm4170, %v4196, %v4203
        %v4205 = vrot.slane %v4200, 4
        %v4207 = vshrl.u32 %v4140, 16
        %v4209 = vrot.slane %v4207, 7
        %v4210 = vshll.u32 %v4140, 16
        %v4212 = vor.u32 %v4209, %v4210
        %v4213 = vsel %vm4170, %v4205, %v4212
        %v4214 = vrot.slane %v4209, 4
        %v4216 = vshrl.u32 %v4141, 16
        %v4218 = vrot.slane %v4216, 7
        %v4219 = vshll.u32 %v4141, 16
        %v4221 = vor.u32 %v4218, %v4219
        %v4222 = vsel %vm4170, %v4214, %v4221
        %v4223 = vrot.slane %v4218, 4
        %v4225 = vshrl.u32 %v4142, 16
        %v4227 = vrot.slane %v4225, 7
        %v4228 = vshll.u32 %v4142, 16
        %v4230 = vor.u32 %v4227, %v4228
        %v4231 = vsel %vm4170, %v4223, %v4230
        %v4232 = vrot.slane %v4227, 4
        %v4234 = vshrl.u32 %v4143, 16
        %v4236 = vrot.slane %v4234, 7
        %v4237 = vshll.u32 %v4143, 16
        %v4239 = vor.u32 %v4236, %v4237
        %v4240 = vsel %vm4170, %v4232, %v4239
        %v4241 = vrot.slane %v4236, 4
        %v4243 = vshrl.u32 %v4144, 16
        %v4245 = vrot.slane %v4243, 7
        %v4246 = vshll.u32 %v4144, 16
        %v4248 = vor.u32 %v4245, %v4246
        %v4249 = vsel %vm4170, %v4241, %v4248
        %v4250 = vrot.slane %v4245, 4
        %v4252 = vshrl.u32 %v4145, 16
        %v4254 = vrot.slane %v4252, 7
        %v4255 = vshll.u32 %v4145, 16
        %v4257 = vor.u32 %v4254, %v4255
        %v4258 = vsel %vm4170, %v4250, %v4257
        %v4259 = vrot.slane %v4254, 4
        %v4261 = vshrl.u32 %v4146, 16
        %v4263 = vrot.slane %v4261, 7
        %v4264 = vshll.u32 %v4146, 16
        %v4266 = vor.u32 %v4263, %v4264
        %v4267 = vsel %vm4170, %v4259, %v4266
        %v4268 = vrot.slane %v4263, 4
        %v4270 = vshrl.u32 %v4147, 16
        %v4272 = vrot.slane %v4270, 7
        %v4273 = vshll.u32 %v4147, 16
        %v4275 = vor.u32 %v4272, %v4273
        %v4276 = vsel %vm4170, %v4268, %v4275
        %v4277 = vrot.slane %v4272, 4
        %v4279 = vshrl.u32 %v4148, 16
        %v4281 = vrot.slane %v4279, 7
        %v4282 = vshll.u32 %v4148, 16
        %v4284 = vor.u32 %v4281, %v4282
        %v4285 = vsel %vm4170, %v4277, %v4284
        %v4286 = vrot.slane %v4281, 4
        %v4288 = vshrl.u32 %v4149, 16
        %v4290 = vrot.slane %v4288, 7
        %v4291 = vshll.u32 %v4149, 16
        %v4293 = vor.u32 %v4290, %v4291
        %v4294 = vsel %vm4170, %v4286, %v4293
        %v4295 = vrot.slane %v4290, 4
        %v4297 = vshrl.u32 %v4150, 16
        %v4299 = vrot.slane %v4297, 7
        %v4300 = vshll.u32 %v4150, 16
        %v4302 = vor.u32 %v4299, %v4300
        %v4303 = vsel %vm4170, %v4295, %v4302
        %v4304 = vrot.slane %v4299, 4
        %v4306 = vshrl.u32 %v4151, 16
        %v4308 = vrot.slane %v4306, 7
        %v4309 = vshll.u32 %v4151, 16
        %v4311 = vor.u32 %v4308, %v4309
        %v4312 = vsel %vm4170, %v4304, %v4311
        %v4313 = vrot.slane %v4308, 4
        %v4315 = vshrl.u32 %v4152, 16
        %v4317 = vrot.slane %v4315, 7
        %v4318 = vshll.u32 %v4152, 16
        %v4320 = vor.u32 %v4317, %v4318
        %v4321 = vsel %vm4170, %v4313, %v4320
        %v4322 = vrot.slane %v4317, 4
        %v4324 = vshrl.u32 %v4153, 16
        %v4326 = vrot.slane %v4324, 7
        %v4327 = vshll.u32 %v4153, 16
        %v4329 = vor.u32 %v4326, %v4327
        %v4330 = vsel %vm4170, %v4322, %v4329
        %v4331 = vrot.slane %v4326, 4
        %v4333 = vshrl.u32 %v4154, 16
        %v4335 = vrot.slane %v4333, 7
        %v4336 = vshll.u32 %v4154, 16
        %v4338 = vor.u32 %v4335, %v4336
        %v4339 = vsel %vm4170, %v4331, %v4338
        %v4340 = vrot.slane %v4335, 4
        %v4342 = vshrl.u32 %v4155, 16
        %v4344 = vrot.slane %v4342, 7
        %v4345 = vshll.u32 %v4155, 16
        %v4347 = vor.u32 %v4344, %v4345
        %v4348 = vsel %vm4170, %v4340, %v4347
        %v4349 = vrot.slane %v4344, 4
        %v4351 = vshrl.u32 %v4156, 16
        %v4353 = vrot.slane %v4351, 7
        %v4354 = vshll.u32 %v4156, 16
        %v4356 = vor.u32 %v4353, %v4354
        %v4357 = vsel %vm4170, %v4349, %v4356
        %v4358 = vrot.slane %v4353, 4
        %v4360 = vshrl.u32 %v4157, 16
        %v4362 = vrot.slane %v4360, 7
        %v4363 = vshll.u32 %v4157, 16
        %v4365 = vor.u32 %v4362, %v4363
        %v4366 = vsel %vm4170, %v4358, %v4365
        %v4367 = vrot.slane %v4362, 4
        %v4369 = vshrl.u32 %v4158, 16
        %v4371 = vrot.slane %v4369, 7
        %v4372 = vshll.u32 %v4158, 16
        %v4374 = vor.u32 %v4371, %v4372
        %v4375 = vsel %vm4170, %v4367, %v4374
        %v4376 = vrot.slane %v4371, 4
        %v4378 = vshrl.u32 %v4159, 16
        %v4380 = vrot.slane %v4378, 7
        %v4381 = vshll.u32 %v4159, 16
        %v4383 = vor.u32 %v4380, %v4381
        %v4384 = vsel %vm4170, %v4376, %v4383
        %v4385 = vrot.slane %v4380, 4
        %v4387 = vshrl.u32 %v4160, 16
        %v4389 = vrot.slane %v4387, 7
        %v4390 = vshll.u32 %v4160, 16
        %v4392 = vor.u32 %v4389, %v4390
        %v4393 = vsel %vm4170, %v4385, %v4392
        %v4394 = vrot.slane %v4389, 4
        %v4396 = vshrl.u32 %v4161, 16
        %v4398 = vrot.slane %v4396, 7
        %v4399 = vshll.u32 %v4161, 16
        %v4401 = vor.u32 %v4398, %v4399
        %v4402 = vsel %vm4170, %v4394, %v4401
        %v4403 = vrot.slane %v4398, 4
        %v4405 = vshrl.u32 %v4162, 16
        %v4407 = vrot.slane %v4405, 7
        %v4408 = vshll.u32 %v4162, 16
        %v4410 = vor.u32 %v4407, %v4408
        %v4411 = vsel %vm4170, %v4403, %v4410
        %v4412 = vrot.slane %v4407, 4
        %v4414 = vshrl.u32 %v4163, 16
        %v4416 = vrot.slane %v4414, 7
        %v4417 = vshll.u32 %v4163, 16
        %v4419 = vor.u32 %v4416, %v4417
        %v4420 = vsel %vm4170, %v4412, %v4419
        %v4421 = vrot.slane %v4416, 4
        %v4423 = vshrl.u32 %v4164, 16
        %v4425 = vrot.slane %v4423, 7
        %v4426 = vshll.u32 %v4164, 16
        %v4428 = vor.u32 %v4425, %v4426
        %v4429 = vsel %vm4170, %v4421, %v4428
        %v4430 = vrot.slane %v4425, 4
        %v4432 = vshrl.u32 %v4165, 16
        %v4434 = vrot.slane %v4432, 7
        %v4435 = vshll.u32 %v4165, 16
        %v4437 = vor.u32 %v4434, %v4435
        %v4438 = vsel %vm4170, %v4430, %v4437
        %v4439 = vrot.slane %v4434, 4
        %v4441 = vshrl.u32 %v4166, 16
        %v4443 = vrot.slane %v4441, 7
        %v4444 = vshll.u32 %v4166, 16
        %v4446 = vor.u32 %v4443, %v4444
        %v4447 = vsel %vm4170, %v4439, %v4446
        %v4448 = vrot.slane %v4443, 4
        %v4450 = vshrl.u32 %v4167, 16
        %v4452 = vrot.slane %v4450, 7
        %v4453 = vshll.u32 %v4167, 16
        %v4455 = vor.u32 %v4452, %v4453
        %v4456 = vsel %vm4170, %v4448, %v4455
        %v4457 = vrot.slane %v4452, 4
        %v4458 = vunpack.c.l.b16 %v4177
        %v4459 = vunpack.c.h.b16 %v4177
        %v4460 = vunpack.c.l.b16 0
        %v4461 = vunpack.c.h.b16 0
        %vm4462 = vcmp.ne.s32.totalorder %v4458, %v4460
        %vm4463 = vcmp.ne.s32.totalorder %v4459, %v4461
        %vm4464 = vmpackc.low %vm4463, %vm4462
        %v4465 = vunpack.c.l.b16 %v4186
        %v4466 = vunpack.c.h.b16 %v4186
        %v4467 = vunpack.c.l.b16 0
        %v4468 = vunpack.c.h.b16 0
        %vm4469 = vcmp.ne.s32.totalorder %v4465, %v4467
        %vm4470 = vcmp.ne.s32.totalorder %v4466, %v4468
        %vm4471 = vmpackc.low %vm4470, %vm4469
        %v4472 = vunpack.c.l.b16 %v4195
        %v4473 = vunpack.c.h.b16 %v4195
        %v4474 = vunpack.c.l.b16 0
        %v4475 = vunpack.c.h.b16 0
        %vm4476 = vcmp.ne.s32.totalorder %v4472, %v4474
        %vm4477 = vcmp.ne.s32.totalorder %v4473, %v4475
        %vm4478 = vmpackc.low %vm4477, %vm4476
        %v4479 = vunpack.c.l.b16 %v4204
        %v4480 = vunpack.c.h.b16 %v4204
        %v4481 = vunpack.c.l.b16 0
        %v4482 = vunpack.c.h.b16 0
        %vm4483 = vcmp.ne.s32.totalorder %v4479, %v4481
        %vm4484 = vcmp.ne.s32.totalorder %v4480, %v4482
        %vm4485 = vmpackc.low %vm4484, %vm4483
        %v4486 = vunpack.c.l.b16 %v4213
        %v4487 = vunpack.c.h.b16 %v4213
        %v4488 = vunpack.c.l.b16 0
        %v4489 = vunpack.c.h.b16 0
        %vm4490 = vcmp.ne.s32.totalorder %v4486, %v4488
        %vm4491 = vcmp.ne.s32.totalorder %v4487, %v4489
        %vm4492 = vmpackc.low %vm4491, %vm4490
        %v4493 = vunpack.c.l.b16 %v4222
        %v4494 = vunpack.c.h.b16 %v4222
        %v4495 = vunpack.c.l.b16 0
        %v4496 = vunpack.c.h.b16 0
        %vm4497 = vcmp.ne.s32.totalorder %v4493, %v4495
        %vm4498 = vcmp.ne.s32.totalorder %v4494, %v4496
        %vm4499 = vmpackc.low %vm4498, %vm4497
        %v4500 = vunpack.c.l.b16 %v4231
        %v4501 = vunpack.c.h.b16 %v4231
        %v4502 = vunpack.c.l.b16 0
        %v4503 = vunpack.c.h.b16 0
        %vm4504 = vcmp.ne.s32.totalorder %v4500, %v4502
        %vm4505 = vcmp.ne.s32.totalorder %v4501, %v4503
        %vm4506 = vmpackc.low %vm4505, %vm4504
        %v4507 = vunpack.c.l.b16 %v4240
        %v4508 = vunpack.c.h.b16 %v4240
        %v4509 = vunpack.c.l.b16 0
        %v4510 = vunpack.c.h.b16 0
        %vm4511 = vcmp.ne.s32.totalorder %v4507, %v4509
        %vm4512 = vcmp.ne.s32.totalorder %v4508, %v4510
        %vm4513 = vmpackc.low %vm4512, %vm4511
        %v4514 = vunpack.c.l.b16 %v4249
        %v4515 = vunpack.c.h.b16 %v4249
        %v4516 = vunpack.c.l.b16 0
        %v4517 = vunpack.c.h.b16 0
        %vm4518 = vcmp.ne.s32.totalorder %v4514, %v4516
        %vm4519 = vcmp.ne.s32.totalorder %v4515, %v4517
        %vm4520 = vmpackc.low %vm4519, %vm4518
        %v4521 = vunpack.c.l.b16 %v4258
        %v4522 = vunpack.c.h.b16 %v4258
        %v4523 = vunpack.c.l.b16 0
        %v4524 = vunpack.c.h.b16 0
        %vm4525 = vcmp.ne.s32.totalorder %v4521, %v4523
        %vm4526 = vcmp.ne.s32.totalorder %v4522, %v4524
        %vm4527 = vmpackc.low %vm4526, %vm4525
        %v4528 = vunpack.c.l.b16 %v4267
        %v4529 = vunpack.c.h.b16 %v4267
        %v4530 = vunpack.c.l.b16 0
        %v4531 = vunpack.c.h.b16 0
        %vm4532 = vcmp.ne.s32.totalorder %v4528, %v4530
        %vm4533 = vcmp.ne.s32.totalorder %v4529, %v4531
        %vm4534 = vmpackc.low %vm4533, %vm4532
        %v4535 = vunpack.c.l.b16 %v4276
        %v4536 = vunpack.c.h.b16 %v4276
        %v4537 = vunpack.c.l.b16 0
        %v4538 = vunpack.c.h.b16 0
        %vm4539 = vcmp.ne.s32.totalorder %v4535, %v4537
        %vm4540 = vcmp.ne.s32.totalorder %v4536, %v4538
        %vm4541 = vmpackc.low %vm4540, %vm4539
        %v4542 = vunpack.c.l.b16 %v4285
        %v4543 = vunpack.c.h.b16 %v4285
        %v4544 = vunpack.c.l.b16 0
        %v4545 = vunpack.c.h.b16 0
        %vm4546 = vcmp.ne.s32.totalorder %v4542, %v4544
        %vm4547 = vcmp.ne.s32.totalorder %v4543, %v4545
        %vm4548 = vmpackc.low %vm4547, %vm4546
        %v4549 = vunpack.c.l.b16 %v4294
        %v4550 = vunpack.c.h.b16 %v4294
        %v4551 = vunpack.c.l.b16 0
        %v4552 = vunpack.c.h.b16 0
        %vm4553 = vcmp.ne.s32.totalorder %v4549, %v4551
        %vm4554 = vcmp.ne.s32.totalorder %v4550, %v4552
        %vm4555 = vmpackc.low %vm4554, %vm4553
        %v4556 = vunpack.c.l.b16 %v4303
        %v4557 = vunpack.c.h.b16 %v4303
        %v4558 = vunpack.c.l.b16 0
        %v4559 = vunpack.c.h.b16 0
        %vm4560 = vcmp.ne.s32.totalorder %v4556, %v4558
        %vm4561 = vcmp.ne.s32.totalorder %v4557, %v4559
        %vm4562 = vmpackc.low %vm4561, %vm4560
        %v4563 = vunpack.c.l.b16 %v4312
        %v4564 = vunpack.c.h.b16 %v4312
        %v4565 = vunpack.c.l.b16 0
        %v4566 = vunpack.c.h.b16 0
        %vm4567 = vcmp.ne.s32.totalorder %v4563, %v4565
        %vm4568 = vcmp.ne.s32.totalorder %v4564, %v4566
        %vm4569 = vmpackc.low %vm4568, %vm4567
        %v4570 = vunpack.c.l.b16 %v4321
        %v4571 = vunpack.c.h.b16 %v4321
        %v4572 = vunpack.c.l.b16 0
        %v4573 = vunpack.c.h.b16 0
        %vm4574 = vcmp.ne.s32.totalorder %v4570, %v4572
        %vm4575 = vcmp.ne.s32.totalorder %v4571, %v4573
        %vm4576 = vmpackc.low %vm4575, %vm4574
        %v4577 = vunpack.c.l.b16 %v4330
        %v4578 = vunpack.c.h.b16 %v4330
        %v4579 = vunpack.c.l.b16 0
        %v4580 = vunpack.c.h.b16 0
        %vm4581 = vcmp.ne.s32.totalorder %v4577, %v4579
        %vm4582 = vcmp.ne.s32.totalorder %v4578, %v4580
        %vm4583 = vmpackc.low %vm4582, %vm4581
        %v4584 = vunpack.c.l.b16 %v4339
        %v4585 = vunpack.c.h.b16 %v4339
        %v4586 = vunpack.c.l.b16 0
        %v4587 = vunpack.c.h.b16 0
        %vm4588 = vcmp.ne.s32.totalorder %v4584, %v4586
        %vm4589 = vcmp.ne.s32.totalorder %v4585, %v4587
        %vm4590 = vmpackc.low %vm4589, %vm4588
        %v4591 = vunpack.c.l.b16 %v4348
        %v4592 = vunpack.c.h.b16 %v4348
        %v4593 = vunpack.c.l.b16 0
        %v4594 = vunpack.c.h.b16 0
        %vm4595 = vcmp.ne.s32.totalorder %v4591, %v4593
        %vm4596 = vcmp.ne.s32.totalorder %v4592, %v4594
        %vm4597 = vmpackc.low %vm4596, %vm4595
        %v4598 = vunpack.c.l.b16 %v4357
        %v4599 = vunpack.c.h.b16 %v4357
        %v4600 = vunpack.c.l.b16 0
        %v4601 = vunpack.c.h.b16 0
        %vm4602 = vcmp.ne.s32.totalorder %v4598, %v4600
        %vm4603 = vcmp.ne.s32.totalorder %v4599, %v4601
        %vm4604 = vmpackc.low %vm4603, %vm4602
        %v4605 = vunpack.c.l.b16 %v4366
        %v4606 = vunpack.c.h.b16 %v4366
        %v4607 = vunpack.c.l.b16 0
        %v4608 = vunpack.c.h.b16 0
        %vm4609 = vcmp.ne.s32.totalorder %v4605, %v4607
        %vm4610 = vcmp.ne.s32.totalorder %v4606, %v4608
        %vm4611 = vmpackc.low %vm4610, %vm4609
        %v4612 = vunpack.c.l.b16 %v4375
        %v4613 = vunpack.c.h.b16 %v4375
        %v4614 = vunpack.c.l.b16 0
        %v4615 = vunpack.c.h.b16 0
        %vm4616 = vcmp.ne.s32.totalorder %v4612, %v4614
        %vm4617 = vcmp.ne.s32.totalorder %v4613, %v4615
        %vm4618 = vmpackc.low %vm4617, %vm4616
        %v4619 = vunpack.c.l.b16 %v4384
        %v4620 = vunpack.c.h.b16 %v4384
        %v4621 = vunpack.c.l.b16 0
        %v4622 = vunpack.c.h.b16 0
        %vm4623 = vcmp.ne.s32.totalorder %v4619, %v4621
        %vm4624 = vcmp.ne.s32.totalorder %v4620, %v4622
        %vm4625 = vmpackc.low %vm4624, %vm4623
        %v4626 = vunpack.c.l.b16 %v4393
        %v4627 = vunpack.c.h.b16 %v4393
        %v4628 = vunpack.c.l.b16 0
        %v4629 = vunpack.c.h.b16 0
        %vm4630 = vcmp.ne.s32.totalorder %v4626, %v4628
        %vm4631 = vcmp.ne.s32.totalorder %v4627, %v4629
        %vm4632 = vmpackc.low %vm4631, %vm4630
        %v4633 = vunpack.c.l.b16 %v4402
        %v4634 = vunpack.c.h.b16 %v4402
        %v4635 = vunpack.c.l.b16 0
        %v4636 = vunpack.c.h.b16 0
        %vm4637 = vcmp.ne.s32.totalorder %v4633, %v4635
        %vm4638 = vcmp.ne.s32.totalorder %v4634, %v4636
        %vm4639 = vmpackc.low %vm4638, %vm4637
        %v4640 = vunpack.c.l.b16 %v4411
        %v4641 = vunpack.c.h.b16 %v4411
        %v4642 = vunpack.c.l.b16 0
        %v4643 = vunpack.c.h.b16 0
        %vm4644 = vcmp.ne.s32.totalorder %v4640, %v4642
        %vm4645 = vcmp.ne.s32.totalorder %v4641, %v4643
        %vm4646 = vmpackc.low %vm4645, %vm4644
        %v4647 = vunpack.c.l.b16 %v4420
        %v4648 = vunpack.c.h.b16 %v4420
        %v4649 = vunpack.c.l.b16 0
        %v4650 = vunpack.c.h.b16 0
        %vm4651 = vcmp.ne.s32.totalorder %v4647, %v4649
        %vm4652 = vcmp.ne.s32.totalorder %v4648, %v4650
        %vm4653 = vmpackc.low %vm4652, %vm4651
        %v4654 = vunpack.c.l.b16 %v4429
        %v4655 = vunpack.c.h.b16 %v4429
        %v4656 = vunpack.c.l.b16 0
        %v4657 = vunpack.c.h.b16 0
        %vm4658 = vcmp.ne.s32.totalorder %v4654, %v4656
        %vm4659 = vcmp.ne.s32.totalorder %v4655, %v4657
        %vm4660 = vmpackc.low %vm4659, %vm4658
        %v4661 = vunpack.c.l.b16 %v4438
        %v4662 = vunpack.c.h.b16 %v4438
        %v4663 = vunpack.c.l.b16 0
        %v4664 = vunpack.c.h.b16 0
        %vm4665 = vcmp.ne.s32.totalorder %v4661, %v4663
        %vm4666 = vcmp.ne.s32.totalorder %v4662, %v4664
        %vm4667 = vmpackc.low %vm4666, %vm4665
        %v4668 = vunpack.c.l.b16 %v4447
        %v4669 = vunpack.c.h.b16 %v4447
        %v4670 = vunpack.c.l.b16 0
        %v4671 = vunpack.c.h.b16 0
        %vm4672 = vcmp.ne.s32.totalorder %v4668, %v4670
        %vm4673 = vcmp.ne.s32.totalorder %v4669, %v4671
        %vm4674 = vmpackc.low %vm4673, %vm4672
        %v4675 = vunpack.c.l.b16 %v4456
        %v4676 = vunpack.c.h.b16 %v4456
        %v4677 = vunpack.c.l.b16 0
        %v4678 = vunpack.c.h.b16 0
        %vm4679 = vcmp.ne.s32.totalorder %v4675, %v4677
        %vm4680 = vcmp.ne.s32.totalorder %v4676, %v4678
        %vm4681 = vmpackc.low %vm4680, %vm4679
        %v4682 = vunpack.c.l.b16 %v4457
        %v4683 = vunpack.c.h.b16 %v4457
        %v4684 = vunpack.c.l.b16 0
        %v4685 = vunpack.c.h.b16 0
        %vm4686 = vcmp.ne.s32.totalorder %v4682, %v4684
        %vm4687 = vcmp.ne.s32.totalorder %v4683, %v4685
        %vm4688 = vmpackc.low %vm4687, %vm4686
        %v4689 = vsel %vm4464, %v3974, 0
        %v4690 = vsel %vm4464, %v3975, 0
        %v4691 = vsel %vm4471, %v3976, 0
        %v4692 = vsel %vm4471, %v3977, 0
        %v4693 = vsel %vm4478, %v3978, 0
        %v4694 = vsel %vm4478, %v3979, 0
        %v4695 = vsel %vm4485, %v3980, 0
        %v4696 = vsel %vm4485, %v3981, 0
        %v4697 = vsel %vm4492, %v3982, 0
        %v4698 = vsel %vm4492, %v3983, 0
        %v4699 = vsel %vm4499, %v3984, 0
        %v4700 = vsel %vm4499, %v3985, 0
        %v4701 = vsel %vm4506, %v3986, 0
        %v4702 = vsel %vm4506, %v3987, 0
        %v4703 = vsel %vm4513, %v3988, 0
        %v4704 = vsel %vm4513, %v3989, 0
        %v4705 = vsel %vm4520, %v3990, 0
        %v4706 = vsel %vm4520, %v3991, 0
        %v4707 = vsel %vm4527, %v3992, 0
        %v4708 = vsel %vm4527, %v3993, 0
        %v4709 = vsel %vm4534, %v3994, 0
        %v4710 = vsel %vm4534, %v3995, 0
        %v4711 = vsel %vm4541, %v3996, 0
        %v4712 = vsel %vm4541, %v3997, 0
        %v4713 = vsel %vm4548, %v3998, 0
        %v4714 = vsel %vm4548, %v3999, 0
        %v4715 = vsel %vm4555, %v4000, 0
        %v4716 = vsel %vm4555, %v4001, 0
        %v4717 = vsel %vm4562, %v4002, 0
        %v4718 = vsel %vm4562, %v4003, 0
        %v4719 = vsel %vm4569, %v4004, 0
        %v4720 = vsel %vm4569, %v4005, 0
        %v4721 = vsel %vm4576, %v4006, 0
        %v4722 = vsel %vm4576, %v4007, 0
        %v4723 = vsel %vm4583, %v4008, 0
        %v4724 = vsel %vm4583, %v4009, 0
        %v4725 = vsel %vm4590, %v4010, 0
        %v4726 = vsel %vm4590, %v4011, 0
        %v4727 = vsel %vm4597, %v4012, 0
        %v4728 = vsel %vm4597, %v4013, 0
        %v4729 = vsel %vm4604, %v4014, 0
        %v4730 = vsel %vm4604, %v4015, 0
        %v4731 = vsel %vm4611, %v4016, 0
        %v4732 = vsel %vm4611, %v4017, 0
        %v4733 = vsel %vm4618, %v4018, 0
        %v4734 = vsel %vm4618, %v4019, 0
        %v4735 = vsel %vm4625, %v4020, 0
        %v4736 = vsel %vm4625, %v4021, 0
        %v4737 = vsel %vm4632, %v4022, 0
        %v4738 = vsel %vm4632, %v4023, 0
        %v4739 = vsel %vm4639, %v4024, 0
        %v4740 = vsel %vm4639, %v4025, 0
        %v4741 = vsel %vm4646, %v4026, 0
        %v4742 = vsel %vm4646, %v4027, 0
        %v4743 = vsel %vm4653, %v4028, 0
        %v4744 = vsel %vm4653, %v4029, 0
        %v4745 = vsel %vm4660, %v4030, 0
        %v4746 = vsel %vm4660, %v4031, 0
        %v4747 = vsel %vm4667, %v4032, 0
        %v4748 = vsel %vm4667, %v4033, 0
        %v4749 = vsel %vm4674, %v4034, 0
        %v4750 = vsel %vm4674, %v4035, 0
        %v4751 = vsel %vm4681, %v4036, 0
        %v4752 = vsel %vm4681, %v4037, 0
        %v4753 = vsel %vm4688, %v4038, 0
        %v4754 = vsel %vm4688, %v4039, 0
        %s4755 = scalar_lea.vmem %s2, 384
        %v4756 = vld [vmem:[%s4755] sm:$0xf]
        %v4757 = vld [vmem:[%s4755 + $0x4] sm:$0xf]
        %v4758 = vld [vmem:[%s4755 + $0x8] sm:$0xf]
        %v4759 = vld [vmem:[%s4755 + $0xc] sm:$0xf]
        %v4760 = vld [vmem:[%s4755 + $0x10] sm:$0xf]
        %v4761 = vld [vmem:[%s4755 + $0x14] sm:$0xf]
        %v4762 = vld [vmem:[%s4755 + $0x18] sm:$0xf]
        %v4763 = vld [vmem:[%s4755 + $0x1c] sm:$0xf]
        %v4764 = vld [vmem:[%s4755 + $0x20] sm:$0xf]
        %v4765 = vld [vmem:[%s4755 + $0x24] sm:$0xf]
        %v4766 = vld [vmem:[%s4755 + $0x28] sm:$0xf]
        %v4767 = vld [vmem:[%s4755 + $0x2c] sm:$0xf]
        %v4768 = vld [vmem:[%s4755 + $0x30] sm:$0xf]
        %v4769 = vld [vmem:[%s4755 + $0x34] sm:$0xf]
        %v4770 = vld [vmem:[%s4755 + $0x38] sm:$0xf]
        %v4771 = vld [vmem:[%s4755 + $0x3c] sm:$0xf]
        %v4772 = vld [vmem:[%s4755 + $0x40] sm:$0xf]
        %v4773 = vld [vmem:[%s4755 + $0x44] sm:$0xf]
        %v4774 = vld [vmem:[%s4755 + $0x48] sm:$0xf]
        %v4775 = vld [vmem:[%s4755 + $0x4c] sm:$0xf]
        %v4776 = vld [vmem:[%s4755 + $0x50] sm:$0xf]
        %v4777 = vld [vmem:[%s4755 + $0x54] sm:$0xf]
        %v4778 = vld [vmem:[%s4755 + $0x58] sm:$0xf]
        %v4779 = vld [vmem:[%s4755 + $0x5c] sm:$0xf]
        %v4780 = vld [vmem:[%s4755 + $0x60] sm:$0xf]
        %v4781 = vld [vmem:[%s4755 + $0x64] sm:$0xf]
        %v4782 = vld [vmem:[%s4755 + $0x68] sm:$0xf]
        %v4783 = vld [vmem:[%s4755 + $0x6c] sm:$0xf]
        %v4784 = vld [vmem:[%s4755 + $0x70] sm:$0xf]
        %v4785 = vld [vmem:[%s4755 + $0x74] sm:$0xf]
        %v4786 = vld [vmem:[%s4755 + $0x78] sm:$0xf]
        %v4787 = vld [vmem:[%s4755 + $0x7c] sm:$0xf]
        %v4788 = vld [vmem:[%s4755 + $0x80] sm:$0xf]
        %v4789 = vld [vmem:[%s4755 + $0x84] sm:$0xf]
        %v4790 = vld [vmem:[%s4755 + $0x88] sm:$0xf]
        %v4791 = vld [vmem:[%s4755 + $0x8c] sm:$0xf]
        %v4792 = vld [vmem:[%s4755 + $0x90] sm:$0xf]
        %v4793 = vld [vmem:[%s4755 + $0x94] sm:$0xf]
        %v4794 = vld [vmem:[%s4755 + $0x98] sm:$0xf]
        %v4795 = vld [vmem:[%s4755 + $0x9c] sm:$0xf]
        %v4796 = vld [vmem:[%s4755 + $0xa0] sm:$0xf]
        %v4797 = vld [vmem:[%s4755 + $0xa4] sm:$0xf]
        %v4798 = vld [vmem:[%s4755 + $0xa8] sm:$0xf]
        %v4799 = vld [vmem:[%s4755 + $0xac] sm:$0xf]
        %v4800 = vld [vmem:[%s4755 + $0xb0] sm:$0xf]
        %v4801 = vld [vmem:[%s4755 + $0xb4] sm:$0xf]
        %v4802 = vld [vmem:[%s4755 + $0xb8] sm:$0xf]
        %v4803 = vld [vmem:[%s4755 + $0xbc] sm:$0xf]
        %v4870 = vunpack.c.l.b16 %v4689
        %v4871 = vunpack.c.h.b16 %v4689
        %v4872 = vunpack.c.l.b16 %v4690
        %v4873 = vunpack.c.l.b16 %v4691
        %v4874 = vunpack.c.h.b16 %v4691
        %v4875 = vunpack.c.l.b16 %v4692
        %v4876 = vunpack.c.l.b16 %v4693
        %v4877 = vunpack.c.h.b16 %v4693
        %v4878 = vunpack.c.l.b16 %v4694
        %v4879 = vunpack.c.l.b16 %v4695
        %v4880 = vunpack.c.h.b16 %v4695
        %v4881 = vunpack.c.l.b16 %v4696
        %v4882 = vunpack.c.l.b16 %v4697
        %v4883 = vunpack.c.h.b16 %v4697
        %v4884 = vunpack.c.l.b16 %v4698
        %v4885 = vunpack.c.l.b16 %v4699
        %v4886 = vunpack.c.h.b16 %v4699
        %v4887 = vunpack.c.l.b16 %v4700
        %v4888 = vunpack.c.l.b16 %v4701
        %v4889 = vunpack.c.h.b16 %v4701
        %v4890 = vunpack.c.l.b16 %v4702
        %v4891 = vunpack.c.l.b16 %v4703
        %v4892 = vunpack.c.h.b16 %v4703
        %v4893 = vunpack.c.l.b16 %v4704
        %v4894 = vunpack.c.l.b16 %v4705
        %v4895 = vunpack.c.h.b16 %v4705
        %v4896 = vunpack.c.l.b16 %v4706
        %v4897 = vunpack.c.l.b16 %v4707
        %v4898 = vunpack.c.h.b16 %v4707
        %v4899 = vunpack.c.l.b16 %v4708
        %v4900 = vunpack.c.l.b16 %v4709
        %v4901 = vunpack.c.h.b16 %v4709
        %v4902 = vunpack.c.l.b16 %v4710
        %v4903 = vunpack.c.l.b16 %v4711
        %v4904 = vunpack.c.h.b16 %v4711
        %v4905 = vunpack.c.l.b16 %v4712
        %v4906 = vunpack.c.l.b16 %v4713
        %v4907 = vunpack.c.h.b16 %v4713
        %v4908 = vunpack.c.l.b16 %v4714
        %v4909 = vunpack.c.l.b16 %v4715
        %v4910 = vunpack.c.h.b16 %v4715
        %v4911 = vunpack.c.l.b16 %v4716
        %v4912 = vunpack.c.l.b16 %v4717
        %v4913 = vunpack.c.h.b16 %v4717
        %v4914 = vunpack.c.l.b16 %v4718
        %v4915 = vunpack.c.l.b16 %v4719
        %v4916 = vunpack.c.h.b16 %v4719
        %v4917 = vunpack.c.l.b16 %v4720
        %v4918 = vunpack.c.l.b16 %v4721
        %v4919 = vunpack.c.h.b16 %v4721
        %v4920 = vunpack.c.l.b16 %v4722
        %v4921 = vunpack.c.l.b16 %v4723
        %v4922 = vunpack.c.h.b16 %v4723
        %v4923 = vunpack.c.l.b16 %v4724
        %v4924 = vunpack.c.l.b16 %v4725
        %v4925 = vunpack.c.h.b16 %v4725
        %v4926 = vunpack.c.l.b16 %v4726
        %v4927 = vunpack.c.l.b16 %v4727
        %v4928 = vunpack.c.h.b16 %v4727
        %v4929 = vunpack.c.l.b16 %v4728
        %v4930 = vunpack.c.l.b16 %v4729
        %v4931 = vunpack.c.h.b16 %v4729
        %v4932 = vunpack.c.l.b16 %v4730
        %v4933 = vunpack.c.l.b16 %v4731
        %v4934 = vunpack.c.h.b16 %v4731
        %v4935 = vunpack.c.l.b16 %v4732
        %v4936 = vunpack.c.l.b16 %v4733
        %v4937 = vunpack.c.h.b16 %v4733
        %v4938 = vunpack.c.l.b16 %v4734
        %v4939 = vunpack.c.l.b16 %v4735
        %v4940 = vunpack.c.h.b16 %v4735
        %v4941 = vunpack.c.l.b16 %v4736
        %v4942 = vunpack.c.l.b16 %v4737
        %v4943 = vunpack.c.h.b16 %v4737
        %v4944 = vunpack.c.l.b16 %v4738
        %v4945 = vunpack.c.l.b16 %v4739
        %v4946 = vunpack.c.h.b16 %v4739
        %v4947 = vunpack.c.l.b16 %v4740
        %v4948 = vunpack.c.l.b16 %v4741
        %v4949 = vunpack.c.h.b16 %v4741
        %v4950 = vunpack.c.l.b16 %v4742
        %v4951 = vunpack.c.l.b16 %v4743
        %v4952 = vunpack.c.h.b16 %v4743
        %v4953 = vunpack.c.l.b16 %v4744
        %v4954 = vunpack.c.l.b16 %v4745
        %v4955 = vunpack.c.h.b16 %v4745
        %v4956 = vunpack.c.l.b16 %v4746
        %v4957 = vunpack.c.l.b16 %v4747
        %v4958 = vunpack.c.h.b16 %v4747
        %v4959 = vunpack.c.l.b16 %v4748
        %v4960 = vunpack.c.l.b16 %v4749
        %v4961 = vunpack.c.h.b16 %v4749
        %v4962 = vunpack.c.l.b16 %v4750
        %v4963 = vunpack.c.l.b16 %v4751
        %v4964 = vunpack.c.h.b16 %v4751
        %v4965 = vunpack.c.l.b16 %v4752
        %v4966 = vunpack.c.l.b16 %v4753
        %v4967 = vunpack.c.h.b16 %v4753
        %v4968 = vunpack.c.l.b16 %v4754
        %v4969 = vpack.c.b16 %v4873, %v4870
        %v4970 = vpack.c.b16 %v4874, %v4871
        %v4971 = vpack.c.b16 %v4875, %v4872
        %v4972 = vpack.c.b16 %v4879, %v4876
        %v4973 = vpack.c.b16 %v4880, %v4877
        %v4974 = vpack.c.b16 %v4881, %v4878
        %v4975 = vpack.c.b16 %v4885, %v4882
        %v4976 = vpack.c.b16 %v4886, %v4883
        %v4977 = vpack.c.b16 %v4887, %v4884
        %v4978 = vpack.c.b16 %v4891, %v4888
        %v4979 = vpack.c.b16 %v4892, %v4889
        %v4980 = vpack.c.b16 %v4893, %v4890
        %v4981 = vpack.c.b16 %v4897, %v4894
        %v4982 = vpack.c.b16 %v4898, %v4895
        %v4983 = vpack.c.b16 %v4899, %v4896
        %v4984 = vpack.c.b16 %v4903, %v4900
        %v4985 = vpack.c.b16 %v4904, %v4901
        %v4986 = vpack.c.b16 %v4905, %v4902
        %v4987 = vpack.c.b16 %v4909, %v4906
        %v4988 = vpack.c.b16 %v4910, %v4907
        %v4989 = vpack.c.b16 %v4911, %v4908
        %v4990 = vpack.c.b16 %v4915, %v4912
        %v4991 = vpack.c.b16 %v4916, %v4913
        %v4992 = vpack.c.b16 %v4917, %v4914
        %v4993 = vpack.c.b16 %v4921, %v4918
        %v4994 = vpack.c.b16 %v4922, %v4919
        %v4995 = vpack.c.b16 %v4923, %v4920
        %v4996 = vpack.c.b16 %v4927, %v4924
        %v4997 = vpack.c.b16 %v4928, %v4925
        %v4998 = vpack.c.b16 %v4929, %v4926
        %v4999 = vpack.c.b16 %v4933, %v4930
        %v5000 = vpack.c.b16 %v4934, %v4931
        %v5001 = vpack.c.b16 %v4935, %v4932
        %v5002 = vpack.c.b16 %v4939, %v4936
        %v5003 = vpack.c.b16 %v4940, %v4937
        %v5004 = vpack.c.b16 %v4941, %v4938
        %v5005 = vpack.c.b16 %v4945, %v4942
        %v5006 = vpack.c.b16 %v4946, %v4943
        %v5007 = vpack.c.b16 %v4947, %v4944
        %v5008 = vpack.c.b16 %v4951, %v4948
        %v5009 = vpack.c.b16 %v4952, %v4949
        %v5010 = vpack.c.b16 %v4953, %v4950
        %v5011 = vpack.c.b16 %v4957, %v4954
        %v5012 = vpack.c.b16 %v4958, %v4955
        %v5013 = vpack.c.b16 %v4959, %v4956
        %v5014 = vpack.c.b16 %v4963, %v4960
        %v5015 = vpack.c.b16 %v4964, %v4961
        %v5016 = vpack.c.b16 %v4965, %v4962
        %v5017 = vpack.c.b16 %v4966, %v4966
        %v5018 = vpack.c.b16 %v4967, %v4967
        %v5019 = vpack.c.b16 %v4968, %v4968
        %vm5020 = vsmask.f32 7424
        %v5022 = vshrl.u32 %v4969, 16
        %v5024 = vshll.u32 %v4969, 16
        %v5026 = vrot.slane %v5024, 1
        %v5027 = vor.u32 %v5022, %v5026
        %v5029 = vshll.u32 %v4972, 16
        %v5031 = vrot.slane %v5029, 1
        %v5032 = vsel %vm5020, %v5027, %v5031
        %v5034 = vshrl.u32 %v4970, 16
        %v5036 = vshll.u32 %v4970, 16
        %v5038 = vrot.slane %v5036, 1
        %v5039 = vor.u32 %v5034, %v5038
        %v5041 = vshll.u32 %v4973, 16
        %v5043 = vrot.slane %v5041, 1
        %v5044 = vsel %vm5020, %v5039, %v5043
        %v5046 = vshrl.u32 %v4971, 16
        %v5048 = vshll.u32 %v4971, 16
        %v5050 = vrot.slane %v5048, 1
        %v5051 = vor.u32 %v5046, %v5050
        %v5053 = vshll.u32 %v4974, 16
        %v5055 = vrot.slane %v5053, 1
        %v5056 = vsel %vm5020, %v5051, %v5055
        %v5057 = vshrl.u32 %v4972, 16
        %v5059 = vor.u32 %v5057, %v5031
        %v5061 = vshll.u32 %v4975, 16
        %v5063 = vrot.slane %v5061, 1
        %v5064 = vsel %vm5020, %v5059, %v5063
        %v5065 = vshrl.u32 %v4973, 16
        %v5067 = vor.u32 %v5065, %v5043
        %v5069 = vshll.u32 %v4976, 16
        %v5071 = vrot.slane %v5069, 1
        %v5072 = vsel %vm5020, %v5067, %v5071
        %v5073 = vshrl.u32 %v4974, 16
        %v5075 = vor.u32 %v5073, %v5055
        %v5077 = vshll.u32 %v4977, 16
        %v5079 = vrot.slane %v5077, 1
        %v5080 = vsel %vm5020, %v5075, %v5079
        %v5081 = vshrl.u32 %v4975, 16
        %v5083 = vor.u32 %v5081, %v5063
        %v5085 = vshll.u32 %v4978, 16
        %v5087 = vrot.slane %v5085, 1
        %v5088 = vsel %vm5020, %v5083, %v5087
        %v5089 = vshrl.u32 %v4976, 16
        %v5091 = vor.u32 %v5089, %v5071
        %v5093 = vshll.u32 %v4979, 16
        %v5095 = vrot.slane %v5093, 1
        %v5096 = vsel %vm5020, %v5091, %v5095
        %v5097 = vshrl.u32 %v4977, 16
        %v5099 = vor.u32 %v5097, %v5079
        %v5101 = vshll.u32 %v4980, 16
        %v5103 = vrot.slane %v5101, 1
        %v5104 = vsel %vm5020, %v5099, %v5103
        %v5105 = vshrl.u32 %v4978, 16
        %v5107 = vor.u32 %v5105, %v5087
        %v5109 = vshll.u32 %v4981, 16
        %v5111 = vrot.slane %v5109, 1
        %v5112 = vsel %vm5020, %v5107, %v5111
        %v5113 = vshrl.u32 %v4979, 16
        %v5115 = vor.u32 %v5113, %v5095
        %v5117 = vshll.u32 %v4982, 16
        %v5119 = vrot.slane %v5117, 1
        %v5120 = vsel %vm5020, %v5115, %v5119
        %v5121 = vshrl.u32 %v4980, 16
        %v5123 = vor.u32 %v5121, %v5103
        %v5125 = vshll.u32 %v4983, 16
        %v5127 = vrot.slane %v5125, 1
        %v5128 = vsel %vm5020, %v5123, %v5127
        %v5129 = vshrl.u32 %v4981, 16
        %v5131 = vor.u32 %v5129, %v5111
        %v5133 = vshll.u32 %v4984, 16
        %v5135 = vrot.slane %v5133, 1
        %v5136 = vsel %vm5020, %v5131, %v5135
        %v5137 = vshrl.u32 %v4982, 16
        %v5139 = vor.u32 %v5137, %v5119
        %v5141 = vshll.u32 %v4985, 16
        %v5143 = vrot.slane %v5141, 1
        %v5144 = vsel %vm5020, %v5139, %v5143
        %v5145 = vshrl.u32 %v4983, 16
        %v5147 = vor.u32 %v5145, %v5127
        %v5149 = vshll.u32 %v4986, 16
        %v5151 = vrot.slane %v5149, 1
        %v5152 = vsel %vm5020, %v5147, %v5151
        %v5153 = vshrl.u32 %v4984, 16
        %v5155 = vor.u32 %v5153, %v5135
        %v5157 = vshll.u32 %v4987, 16
        %v5159 = vrot.slane %v5157, 1
        %v5160 = vsel %vm5020, %v5155, %v5159
        %v5161 = vshrl.u32 %v4985, 16
        %v5163 = vor.u32 %v5161, %v5143
        %v5165 = vshll.u32 %v4988, 16
        %v5167 = vrot.slane %v5165, 1
        %v5168 = vsel %vm5020, %v5163, %v5167
        %v5169 = vshrl.u32 %v4986, 16
        %v5171 = vor.u32 %v5169, %v5151
        %v5173 = vshll.u32 %v4989, 16
        %v5175 = vrot.slane %v5173, 1
        %v5176 = vsel %vm5020, %v5171, %v5175
        %v5177 = vshrl.u32 %v4987, 16
        %v5179 = vor.u32 %v5177, %v5159
        %v5181 = vshll.u32 %v4990, 16
        %v5183 = vrot.slane %v5181, 1
        %v5184 = vsel %vm5020, %v5179, %v5183
        %v5185 = vshrl.u32 %v4988, 16
        %v5187 = vor.u32 %v5185, %v5167
        %v5189 = vshll.u32 %v4991, 16
        %v5191 = vrot.slane %v5189, 1
        %v5192 = vsel %vm5020, %v5187, %v5191
        %v5193 = vshrl.u32 %v4989, 16
        %v5195 = vor.u32 %v5193, %v5175
        %v5197 = vshll.u32 %v4992, 16
        %v5199 = vrot.slane %v5197, 1
        %v5200 = vsel %vm5020, %v5195, %v5199
        %v5201 = vshrl.u32 %v4990, 16
        %v5203 = vor.u32 %v5201, %v5183
        %v5205 = vshll.u32 %v4993, 16
        %v5207 = vrot.slane %v5205, 1
        %v5208 = vsel %vm5020, %v5203, %v5207
        %v5209 = vshrl.u32 %v4991, 16
        %v5211 = vor.u32 %v5209, %v5191
        %v5213 = vshll.u32 %v4994, 16
        %v5215 = vrot.slane %v5213, 1
        %v5216 = vsel %vm5020, %v5211, %v5215
        %v5217 = vshrl.u32 %v4992, 16
        %v5219 = vor.u32 %v5217, %v5199
        %v5221 = vshll.u32 %v4995, 16
        %v5223 = vrot.slane %v5221, 1
        %v5224 = vsel %vm5020, %v5219, %v5223
        %v5225 = vshrl.u32 %v4993, 16
        %v5227 = vor.u32 %v5225, %v5207
        %v5229 = vshll.u32 %v4996, 16
        %v5231 = vrot.slane %v5229, 1
        %v5232 = vsel %vm5020, %v5227, %v5231
        %v5233 = vshrl.u32 %v4994, 16
        %v5235 = vor.u32 %v5233, %v5215
        %v5237 = vshll.u32 %v4997, 16
        %v5239 = vrot.slane %v5237, 1
        %v5240 = vsel %vm5020, %v5235, %v5239
        %v5241 = vshrl.u32 %v4995, 16
        %v5243 = vor.u32 %v5241, %v5223
        %v5245 = vshll.u32 %v4998, 16
        %v5247 = vrot.slane %v5245, 1
        %v5248 = vsel %vm5020, %v5243, %v5247
        %v5249 = vshrl.u32 %v4996, 16
        %v5251 = vor.u32 %v5249, %v5231
        %v5253 = vshll.u32 %v4999, 16
        %v5255 = vrot.slane %v5253, 1
        %v5256 = vsel %vm5020, %v5251, %v5255
        %v5257 = vshrl.u32 %v4997, 16
        %v5259 = vor.u32 %v5257, %v5239
        %v5261 = vshll.u32 %v5000, 16
        %v5263 = vrot.slane %v5261, 1
        %v5264 = vsel %vm5020, %v5259, %v5263
        %v5265 = vshrl.u32 %v4998, 16
        %v5267 = vor.u32 %v5265, %v5247
        %v5269 = vshll.u32 %v5001, 16
        %v5271 = vrot.slane %v5269, 1
        %v5272 = vsel %vm5020, %v5267, %v5271
        %v5273 = vshrl.u32 %v4999, 16
        %v5275 = vor.u32 %v5273, %v5255
        %v5277 = vshll.u32 %v5002, 16
        %v5279 = vrot.slane %v5277, 1
        %v5280 = vsel %vm5020, %v5275, %v5279
        %v5281 = vshrl.u32 %v5000, 16
        %v5283 = vor.u32 %v5281, %v5263
        %v5285 = vshll.u32 %v5003, 16
        %v5287 = vrot.slane %v5285, 1
        %v5288 = vsel %vm5020, %v5283, %v5287
        %v5289 = vshrl.u32 %v5001, 16
        %v5291 = vor.u32 %v5289, %v5271
        %v5293 = vshll.u32 %v5004, 16
        %v5295 = vrot.slane %v5293, 1
        %v5296 = vsel %vm5020, %v5291, %v5295
        %v5297 = vshrl.u32 %v5002, 16
        %v5299 = vor.u32 %v5297, %v5279
        %v5301 = vshll.u32 %v5005, 16
        %v5303 = vrot.slane %v5301, 1
        %v5304 = vsel %vm5020, %v5299, %v5303
        %v5305 = vshrl.u32 %v5003, 16
        %v5307 = vor.u32 %v5305, %v5287
        %v5309 = vshll.u32 %v5006, 16
        %v5311 = vrot.slane %v5309, 1
        %v5312 = vsel %vm5020, %v5307, %v5311
        %v5313 = vshrl.u32 %v5004, 16
        %v5315 = vor.u32 %v5313, %v5295
        %v5317 = vshll.u32 %v5007, 16
        %v5319 = vrot.slane %v5317, 1
        %v5320 = vsel %vm5020, %v5315, %v5319
        %v5321 = vshrl.u32 %v5005, 16
        %v5323 = vor.u32 %v5321, %v5303
        %v5325 = vshll.u32 %v5008, 16
        %v5327 = vrot.slane %v5325, 1
        %v5328 = vsel %vm5020, %v5323, %v5327
        %v5329 = vshrl.u32 %v5006, 16
        %v5331 = vor.u32 %v5329, %v5311
        %v5333 = vshll.u32 %v5009, 16
        %v5335 = vrot.slane %v5333, 1
        %v5336 = vsel %vm5020, %v5331, %v5335
        %v5337 = vshrl.u32 %v5007, 16
        %v5339 = vor.u32 %v5337, %v5319
        %v5341 = vshll.u32 %v5010, 16
        %v5343 = vrot.slane %v5341, 1
        %v5344 = vsel %vm5020, %v5339, %v5343
        %v5345 = vshrl.u32 %v5008, 16
        %v5347 = vor.u32 %v5345, %v5327
        %v5349 = vshll.u32 %v5011, 16
        %v5351 = vrot.slane %v5349, 1
        %v5352 = vsel %vm5020, %v5347, %v5351
        %v5353 = vshrl.u32 %v5009, 16
        %v5355 = vor.u32 %v5353, %v5335
        %v5357 = vshll.u32 %v5012, 16
        %v5359 = vrot.slane %v5357, 1
        %v5360 = vsel %vm5020, %v5355, %v5359
        %v5361 = vshrl.u32 %v5010, 16
        %v5363 = vor.u32 %v5361, %v5343
        %v5365 = vshll.u32 %v5013, 16
        %v5367 = vrot.slane %v5365, 1
        %v5368 = vsel %vm5020, %v5363, %v5367
        %v5369 = vshrl.u32 %v5011, 16
        %v5371 = vor.u32 %v5369, %v5351
        %v5373 = vshll.u32 %v5014, 16
        %v5375 = vrot.slane %v5373, 1
        %v5376 = vsel %vm5020, %v5371, %v5375
        %v5377 = vshrl.u32 %v5012, 16
        %v5379 = vor.u32 %v5377, %v5359
        %v5381 = vshll.u32 %v5015, 16
        %v5383 = vrot.slane %v5381, 1
        %v5384 = vsel %vm5020, %v5379, %v5383
        %v5385 = vshrl.u32 %v5013, 16
        %v5387 = vor.u32 %v5385, %v5367
        %v5389 = vshll.u32 %v5016, 16
        %v5391 = vrot.slane %v5389, 1
        %v5392 = vsel %vm5020, %v5387, %v5391
        %v5393 = vshrl.u32 %v5014, 16
        %v5395 = vor.u32 %v5393, %v5375
        %v5397 = vshll.u32 %v5017, 16
        %v5399 = vrot.slane %v5397, 1
        %v5400 = vsel %vm5020, %v5395, %v5399
        %v5401 = vshrl.u32 %v5015, 16
        %v5403 = vor.u32 %v5401, %v5383
        %v5405 = vshll.u32 %v5018, 16
        %v5407 = vrot.slane %v5405, 1
        %v5408 = vsel %vm5020, %v5403, %v5407
        %v5409 = vshrl.u32 %v5016, 16
        %v5411 = vor.u32 %v5409, %v5391
        %v5413 = vshll.u32 %v5019, 16
        %v5415 = vrot.slane %v5413, 1
        %v5416 = vsel %vm5020, %v5411, %v5415
        %v5513 = vunpack.c.l.b16 %v4756
        %v5514 = vunpack.c.l.b16 %v4757
        %v5515 = vunpack.c.l.b16 %v4758
        %v5516 = vunpack.c.l.b16 %v4759
        %v5517 = vunpack.c.l.b16 %v4760
        %v5518 = vunpack.c.l.b16 %v4761
        %v5519 = vunpack.c.l.b16 %v4762
        %v5520 = vunpack.c.l.b16 %v4763
        %v5521 = vunpack.c.l.b16 %v4764
        %v5522 = vunpack.c.l.b16 %v4765
        %v5523 = vunpack.c.l.b16 %v4766
        %v5524 = vunpack.c.l.b16 %v4767
        %v5525 = vunpack.c.l.b16 %v4768
        %v5526 = vunpack.c.l.b16 %v4769
        %v5527 = vunpack.c.l.b16 %v4770
        %v5528 = vunpack.c.l.b16 %v4771
        %v5529 = vunpack.c.l.b16 %v4772
        %v5530 = vunpack.c.l.b16 %v4773
        %v5531 = vunpack.c.l.b16 %v4774
        %v5532 = vunpack.c.l.b16 %v4775
        %v5533 = vunpack.c.l.b16 %v4776
        %v5534 = vunpack.c.l.b16 %v4777
        %v5535 = vunpack.c.l.b16 %v4778
        %v5536 = vunpack.c.l.b16 %v4779
        %v5537 = vunpack.c.l.b16 %v4780
        %v5538 = vunpack.c.l.b16 %v4781
        %v5539 = vunpack.c.l.b16 %v4782
        %v5540 = vunpack.c.l.b16 %v4783
        %v5541 = vunpack.c.l.b16 %v4784
        %v5542 = vunpack.c.l.b16 %v4785
        %v5543 = vunpack.c.l.b16 %v4786
        %v5544 = vunpack.c.l.b16 %v4787
        %v5545 = vunpack.c.l.b16 %v4788
        %v5546 = vunpack.c.l.b16 %v4789
        %v5547 = vunpack.c.l.b16 %v4790
        %v5548 = vunpack.c.l.b16 %v4791
        %v5549 = vunpack.c.l.b16 %v4792
        %v5550 = vunpack.c.l.b16 %v4793
        %v5551 = vunpack.c.l.b16 %v4794
        %v5552 = vunpack.c.l.b16 %v4795
        %v5553 = vunpack.c.l.b16 %v4796
        %v5554 = vunpack.c.l.b16 %v4797
        %v5555 = vunpack.c.l.b16 %v4798
        %v5556 = vunpack.c.l.b16 %v4799
        %v5557 = vunpack.c.l.b16 %v4800
        %v5558 = vunpack.c.l.b16 %v4801
        %v5559 = vunpack.c.l.b16 %v4802
        %v5560 = vunpack.c.l.b16 %v4803
        %v5561 = vpack.c.b16 %v5514, %v5513
        %v5562 = vpack.c.b16 %v5516, %v5515
        %v5563 = vpack.c.b16 %v5518, %v5517
        %v5564 = vpack.c.b16 %v5520, %v5519
        %v5565 = vpack.c.b16 %v5522, %v5521
        %v5566 = vpack.c.b16 %v5524, %v5523
        %v5567 = vpack.c.b16 %v5526, %v5525
        %v5568 = vpack.c.b16 %v5528, %v5527
        %v5569 = vpack.c.b16 %v5530, %v5529
        %v5570 = vpack.c.b16 %v5532, %v5531
        %v5571 = vpack.c.b16 %v5534, %v5533
        %v5572 = vpack.c.b16 %v5536, %v5535
        %v5573 = vpack.c.b16 %v5538, %v5537
        %v5574 = vpack.c.b16 %v5540, %v5539
        %v5575 = vpack.c.b16 %v5542, %v5541
        %v5576 = vpack.c.b16 %v5544, %v5543
        %v5577 = vpack.c.b16 %v5546, %v5545
        %v5578 = vpack.c.b16 %v5548, %v5547
        %v5579 = vpack.c.b16 %v5550, %v5549
        %v5580 = vpack.c.b16 %v5552, %v5551
        %v5581 = vpack.c.b16 %v5554, %v5553
        %v5582 = vpack.c.b16 %v5556, %v5555
        %v5583 = vpack.c.b16 %v5558, %v5557
        %v5584 = vpack.c.b16 %v5560, %v5559
        %5609 = vmatpush.bf16.msra.mxu0 %v5568
        %5610 = vmatpush.bf16.msra.mxu0 %v5567
        %5611 = vmatpush.bf16.msra.mxu0 %v5566
        %5612 = vmatpush.bf16.msra.mxu0 %v5565
        %5613 = vmatpush.bf16.msra.mxu0 %v5564
        %5614 = vmatpush.bf16.msra.mxu0 %v5563
        %5615 = vmatpush.bf16.msra.mxu0 %v5562
        %5616 = vmatpush.bf16.msra.mxu0 %v5561
        %5617 = vmatmul.bf16.gmra.mxu0 %v5032
        %v5618 = vpop.f32.mrf.mxu0
        %v5619 = vadd.f32 0.0, %v5618
        %v5620 = vpop.f32.mrf.mxu0
        %v5621 = vadd.f32 0.0, %v5620
        %5622 = vmatmul.bf16.gmra.mxu0 %v5064
        %v5623 = vpop.f32.mrf.mxu0
        %v5624 = vadd.f32 0.0, %v5623
        %v5625 = vpop.f32.mrf.mxu0
        %v5626 = vadd.f32 0.0, %v5625
        %5627 = vmatmul.bf16.gmra.mxu0 %v5088
        %v5628 = vpop.f32.mrf.mxu0
        %v5629 = vadd.f32 0.0, %v5628
        %v5630 = vpop.f32.mrf.mxu0
        %v5631 = vadd.f32 0.0, %v5630
        %5632 = vmatmul.bf16.gmra.mxu0 %v5112
        %v5633 = vpop.f32.mrf.mxu0
        %v5634 = vadd.f32 0.0, %v5633
        %v5635 = vpop.f32.mrf.mxu0
        %v5636 = vadd.f32 0.0, %v5635
        %5637 = vmatmul.bf16.gmra.mxu0 %v5136
        %v5638 = vpop.f32.mrf.mxu0
        %v5639 = vadd.f32 0.0, %v5638
        %v5640 = vpop.f32.mrf.mxu0
        %v5641 = vadd.f32 0.0, %v5640
        %5642 = vmatmul.bf16.gmra.mxu0 %v5160
        %v5643 = vpop.f32.mrf.mxu0
        %v5644 = vadd.f32 0.0, %v5643
        %v5645 = vpop.f32.mrf.mxu0
        %v5646 = vadd.f32 0.0, %v5645
        %5647 = vmatmul.bf16.gmra.mxu0 %v5184
        %v5648 = vpop.f32.mrf.mxu0
        %v5649 = vadd.f32 0.0, %v5648
        %v5650 = vpop.f32.mrf.mxu0
        %v5651 = vadd.f32 0.0, %v5650
        %5652 = vmatmul.bf16.gmra.mxu0 %v5208
        %v5653 = vpop.f32.mrf.mxu0
        %v5654 = vadd.f32 0.0, %v5653
        %v5655 = vpop.f32.mrf.mxu0
        %v5656 = vadd.f32 0.0, %v5655
        %5657 = vmatmul.bf16.gmra.mxu0 %v5232
        %v5658 = vpop.f32.mrf.mxu0
        %v5659 = vadd.f32 0.0, %v5658
        %v5660 = vpop.f32.mrf.mxu0
        %v5661 = vadd.f32 0.0, %v5660
        %5662 = vmatmul.bf16.gmra.mxu0 %v5256
        %v5663 = vpop.f32.mrf.mxu0
        %v5664 = vadd.f32 0.0, %v5663
        %v5665 = vpop.f32.mrf.mxu0
        %v5666 = vadd.f32 0.0, %v5665
        %5667 = vmatmul.bf16.gmra.mxu0 %v5280
        %v5668 = vpop.f32.mrf.mxu0
        %v5669 = vadd.f32 0.0, %v5668
        %v5670 = vpop.f32.mrf.mxu0
        %v5671 = vadd.f32 0.0, %v5670
        %5672 = vmatmul.bf16.gmra.mxu0 %v5304
        %v5673 = vpop.f32.mrf.mxu0
        %v5674 = vadd.f32 0.0, %v5673
        %v5675 = vpop.f32.mrf.mxu0
        %v5676 = vadd.f32 0.0, %v5675
        %5677 = vmatmul.bf16.gmra.mxu0 %v5328
        %v5678 = vpop.f32.mrf.mxu0
        %v5679 = vadd.f32 0.0, %v5678
        %v5680 = vpop.f32.mrf.mxu0
        %v5681 = vadd.f32 0.0, %v5680
        %5682 = vmatmul.bf16.gmra.mxu0 %v5352
        %v5683 = vpop.f32.mrf.mxu0
        %v5684 = vadd.f32 0.0, %v5683
        %v5685 = vpop.f32.mrf.mxu0
        %v5686 = vadd.f32 0.0, %v5685
        %5687 = vmatmul.bf16.gmra.mxu0 %v5376
        %v5688 = vpop.f32.mrf.mxu0
        %v5689 = vadd.f32 0.0, %v5688
        %v5690 = vpop.f32.mrf.mxu0
        %v5691 = vadd.f32 0.0, %v5690
        %5692 = vmatmul.bf16.gmra.mxu0 %v5400
        %v5693 = vpop.f32.mrf.mxu0
        %v5694 = vadd.f32 0.0, %v5693
        %v5695 = vpop.f32.mrf.mxu0
        %v5696 = vadd.f32 0.0, %v5695
        %5697 = vdwg.mxu0
        %5698 = vmatpush.bf16.msra.mxu0 %v5576
        %5699 = vmatpush.bf16.msra.mxu0 %v5575
        %5700 = vmatpush.bf16.msra.mxu0 %v5574
        %5701 = vmatpush.bf16.msra.mxu0 %v5573
        %5702 = vmatpush.bf16.msra.mxu0 %v5572
        %5703 = vmatpush.bf16.msra.mxu0 %v5571
        %5704 = vmatpush.bf16.msra.mxu0 %v5570
        %5705 = vmatpush.bf16.msra.mxu0 %v5569
        %5706 = vmatmul.bf16.gmra.mxu0 %v5044
        %v5707 = vpop.f32.mrf.mxu0
        %v5708 = vadd.f32 %v5619, %v5707
        %v5709 = vpop.f32.mrf.mxu0
        %v5710 = vadd.f32 %v5621, %v5709
        %5711 = vmatmul.bf16.gmra.mxu0 %v5072
        %v5712 = vpop.f32.mrf.mxu0
        %v5713 = vadd.f32 %v5624, %v5712
        %v5714 = vpop.f32.mrf.mxu0
        %v5715 = vadd.f32 %v5626, %v5714
        %5716 = vmatmul.bf16.gmra.mxu0 %v5096
        %v5717 = vpop.f32.mrf.mxu0
        %v5718 = vadd.f32 %v5629, %v5717
        %v5719 = vpop.f32.mrf.mxu0
        %v5720 = vadd.f32 %v5631, %v5719
        %5721 = vmatmul.bf16.gmra.mxu0 %v5120
        %v5722 = vpop.f32.mrf.mxu0
        %v5723 = vadd.f32 %v5634, %v5722
        %v5724 = vpop.f32.mrf.mxu0
        %v5725 = vadd.f32 %v5636, %v5724
        %5726 = vmatmul.bf16.gmra.mxu0 %v5144
        %v5727 = vpop.f32.mrf.mxu0
        %v5728 = vadd.f32 %v5639, %v5727
        %v5729 = vpop.f32.mrf.mxu0
        %v5730 = vadd.f32 %v5641, %v5729
        %5731 = vmatmul.bf16.gmra.mxu0 %v5168
        %v5732 = vpop.f32.mrf.mxu0
        %v5733 = vadd.f32 %v5644, %v5732
        %v5734 = vpop.f32.mrf.mxu0
        %v5735 = vadd.f32 %v5646, %v5734
        %5736 = vmatmul.bf16.gmra.mxu0 %v5192
        %v5737 = vpop.f32.mrf.mxu0
        %v5738 = vadd.f32 %v5649, %v5737
        %v5739 = vpop.f32.mrf.mxu0
        %v5740 = vadd.f32 %v5651, %v5739
        %5741 = vmatmul.bf16.gmra.mxu0 %v5216
        %v5742 = vpop.f32.mrf.mxu0
        %v5743 = vadd.f32 %v5654, %v5742
        %v5744 = vpop.f32.mrf.mxu0
        %v5745 = vadd.f32 %v5656, %v5744
        %5746 = vmatmul.bf16.gmra.mxu0 %v5240
        %v5747 = vpop.f32.mrf.mxu0
        %v5748 = vadd.f32 %v5659, %v5747
        %v5749 = vpop.f32.mrf.mxu0
        %v5750 = vadd.f32 %v5661, %v5749
        %5751 = vmatmul.bf16.gmra.mxu0 %v5264
        %v5752 = vpop.f32.mrf.mxu0
        %v5753 = vadd.f32 %v5664, %v5752
        %v5754 = vpop.f32.mrf.mxu0
        %v5755 = vadd.f32 %v5666, %v5754
        %5756 = vmatmul.bf16.gmra.mxu0 %v5288
        %v5757 = vpop.f32.mrf.mxu0
        %v5758 = vadd.f32 %v5669, %v5757
        %v5759 = vpop.f32.mrf.mxu0
        %v5760 = vadd.f32 %v5671, %v5759
        %5761 = vmatmul.bf16.gmra.mxu0 %v5312
        %v5762 = vpop.f32.mrf.mxu0
        %v5763 = vadd.f32 %v5674, %v5762
        %v5764 = vpop.f32.mrf.mxu0
        %v5765 = vadd.f32 %v5676, %v5764
        %5766 = vmatmul.bf16.gmra.mxu0 %v5336
        %v5767 = vpop.f32.mrf.mxu0
        %v5768 = vadd.f32 %v5679, %v5767
        %v5769 = vpop.f32.mrf.mxu0
        %v5770 = vadd.f32 %v5681, %v5769
        %5771 = vmatmul.bf16.gmra.mxu0 %v5360
        %v5772 = vpop.f32.mrf.mxu0
        %v5773 = vadd.f32 %v5684, %v5772
        %v5774 = vpop.f32.mrf.mxu0
        %v5775 = vadd.f32 %v5686, %v5774
        %5776 = vmatmul.bf16.gmra.mxu0 %v5384
        %v5777 = vpop.f32.mrf.mxu0
        %v5778 = vadd.f32 %v5689, %v5777
        %v5779 = vpop.f32.mrf.mxu0
        %v5780 = vadd.f32 %v5691, %v5779
        %5781 = vmatmul.bf16.gmra.mxu0 %v5408
        %v5782 = vpop.f32.mrf.mxu0
        %v5783 = vadd.f32 %v5694, %v5782
        %v5784 = vpop.f32.mrf.mxu0
        %v5785 = vadd.f32 %v5696, %v5784
        %5786 = vdwg.mxu0
        %5787 = vmatpush.bf16.msra.mxu0 %v5584
        %5788 = vmatpush.bf16.msra.mxu0 %v5583
        %5789 = vmatpush.bf16.msra.mxu0 %v5582
        %5790 = vmatpush.bf16.msra.mxu0 %v5581
        %5791 = vmatpush.bf16.msra.mxu0 %v5580
        %5792 = vmatpush.bf16.msra.mxu0 %v5579
        %5793 = vmatpush.bf16.msra.mxu0 %v5578
        %5794 = vmatpush.bf16.msra.mxu0 %v5577
        %5795 = vmatmul.bf16.gmra.mxu0 %v5056
        %v5796 = vpop.f32.mrf.mxu0
        %v5797 = vadd.f32 %v5708, %v5796
        %v5798 = vpop.f32.mrf.mxu0
        %v5799 = vadd.f32 %v5710, %v5798
        %5800 = vmatmul.bf16.gmra.mxu0 %v5080
        %v5801 = vpop.f32.mrf.mxu0
        %v5802 = vadd.f32 %v5713, %v5801
        %v5803 = vpop.f32.mrf.mxu0
        %v5804 = vadd.f32 %v5715, %v5803
        %5805 = vmatmul.bf16.gmra.mxu0 %v5104
        %v5806 = vpop.f32.mrf.mxu0
        %v5807 = vadd.f32 %v5718, %v5806
        %v5808 = vpop.f32.mrf.mxu0
        %v5809 = vadd.f32 %v5720, %v5808
        %5810 = vmatmul.bf16.gmra.mxu0 %v5128
        %v5811 = vpop.f32.mrf.mxu0
        %v5812 = vadd.f32 %v5723, %v5811
        %v5813 = vpop.f32.mrf.mxu0
        %v5814 = vadd.f32 %v5725, %v5813
        %5815 = vmatmul.bf16.gmra.mxu0 %v5152
        %v5816 = vpop.f32.mrf.mxu0
        %v5817 = vadd.f32 %v5728, %v5816
        %v5818 = vpop.f32.mrf.mxu0
        %v5819 = vadd.f32 %v5730, %v5818
        %5820 = vmatmul.bf16.gmra.mxu0 %v5176
        %v5821 = vpop.f32.mrf.mxu0
        %v5822 = vadd.f32 %v5733, %v5821
        %v5823 = vpop.f32.mrf.mxu0
        %v5824 = vadd.f32 %v5735, %v5823
        %5825 = vmatmul.bf16.gmra.mxu0 %v5200
        %v5826 = vpop.f32.mrf.mxu0
        %v5827 = vadd.f32 %v5738, %v5826
        %v5828 = vpop.f32.mrf.mxu0
        %v5829 = vadd.f32 %v5740, %v5828
        %5830 = vmatmul.bf16.gmra.mxu0 %v5224
        %v5831 = vpop.f32.mrf.mxu0
        %v5832 = vadd.f32 %v5743, %v5831
        %v5833 = vpop.f32.mrf.mxu0
        %v5834 = vadd.f32 %v5745, %v5833
        %5835 = vmatmul.bf16.gmra.mxu0 %v5248
        %v5836 = vpop.f32.mrf.mxu0
        %v5837 = vadd.f32 %v5748, %v5836
        %v5838 = vpop.f32.mrf.mxu0
        %v5839 = vadd.f32 %v5750, %v5838
        %5840 = vmatmul.bf16.gmra.mxu0 %v5272
        %v5841 = vpop.f32.mrf.mxu0
        %v5842 = vadd.f32 %v5753, %v5841
        %v5843 = vpop.f32.mrf.mxu0
        %v5844 = vadd.f32 %v5755, %v5843
        %5845 = vmatmul.bf16.gmra.mxu0 %v5296
        %v5846 = vpop.f32.mrf.mxu0
        %v5847 = vadd.f32 %v5758, %v5846
        %v5848 = vpop.f32.mrf.mxu0
        %v5849 = vadd.f32 %v5760, %v5848
        %5850 = vmatmul.bf16.gmra.mxu0 %v5320
        %v5851 = vpop.f32.mrf.mxu0
        %v5852 = vadd.f32 %v5763, %v5851
        %v5853 = vpop.f32.mrf.mxu0
        %v5854 = vadd.f32 %v5765, %v5853
        %5855 = vmatmul.bf16.gmra.mxu0 %v5344
        %v5856 = vpop.f32.mrf.mxu0
        %v5857 = vadd.f32 %v5768, %v5856
        %v5858 = vpop.f32.mrf.mxu0
        %v5859 = vadd.f32 %v5770, %v5858
        %5860 = vmatmul.bf16.gmra.mxu0 %v5368
        %v5861 = vpop.f32.mrf.mxu0
        %v5862 = vadd.f32 %v5773, %v5861
        %v5863 = vpop.f32.mrf.mxu0
        %v5864 = vadd.f32 %v5775, %v5863
        %5865 = vmatmul.bf16.gmra.mxu0 %v5392
        %v5866 = vpop.f32.mrf.mxu0
        %v5867 = vadd.f32 %v5778, %v5866
        %v5868 = vpop.f32.mrf.mxu0
        %v5869 = vadd.f32 %v5780, %v5868
        %5870 = vmatmul.bf16.gmra.mxu0 %v5416
        %v5871 = vpop.f32.mrf.mxu0
        %v5872 = vadd.f32 %v5783, %v5871
        %v5873 = vpop.f32.mrf.mxu0
        %v5874 = vadd.f32 %v5785, %v5873
        %5875 = vdwg.mxu0
        %v5876 = vadd.f32 %v3895, %v5797
        %v5877 = vadd.f32 %v3897, %v5799
        %v5878 = vadd.f32 %v3900, %v5802
        %v5879 = vadd.f32 %v3902, %v5804
        %v5880 = vadd.f32 %v3905, %v5807
        %v5881 = vadd.f32 %v3907, %v5809
        %v5882 = vadd.f32 %v3910, %v5812
        %v5883 = vadd.f32 %v3912, %v5814
        %v5884 = vadd.f32 %v3915, %v5817
        %v5885 = vadd.f32 %v3917, %v5819
        %v5886 = vadd.f32 %v3920, %v5822
        %v5887 = vadd.f32 %v3922, %v5824
        %v5888 = vadd.f32 %v3925, %v5827
        %v5889 = vadd.f32 %v3927, %v5829
        %v5890 = vadd.f32 %v3930, %v5832
        %v5891 = vadd.f32 %v3932, %v5834
        %v5892 = vadd.f32 %v3935, %v5837
        %v5893 = vadd.f32 %v3937, %v5839
        %v5894 = vadd.f32 %v3940, %v5842
        %v5895 = vadd.f32 %v3942, %v5844
        %v5896 = vadd.f32 %v3945, %v5847
        %v5897 = vadd.f32 %v3947, %v5849
        %v5898 = vadd.f32 %v3950, %v5852
        %v5899 = vadd.f32 %v3952, %v5854
        %v5900 = vadd.f32 %v3955, %v5857
        %v5901 = vadd.f32 %v3957, %v5859
        %v5902 = vadd.f32 %v3960, %v5862
        %v5903 = vadd.f32 %v3962, %v5864
        %v5904 = vadd.f32 %v3965, %v5867
        %v5905 = vadd.f32 %v3967, %v5869
        %v5906 = vadd.f32 %v3970, %v5872
        %v5907 = vadd.f32 %v3972, %v5874
        %v5908 = vld [vmem:[%s7] sm:$0x1]
        %v5910 = vperm.slane %v5908, 0
        %v5912 = vadd.f32 %v5876, %v5910
        %v5913 = vadd.f32 %v5877, %v5910
        %v5914 = vadd.f32 %v5878, %v5910
        %v5915 = vadd.f32 %v5879, %v5910
        %v5916 = vadd.f32 %v5880, %v5910
        %v5917 = vadd.f32 %v5881, %v5910
        %v5918 = vadd.f32 %v5882, %v5910
        %v5919 = vadd.f32 %v5883, %v5910
        %v5920 = vadd.f32 %v5884, %v5910
        %v5921 = vadd.f32 %v5885, %v5910
        %v5922 = vadd.f32 %v5886, %v5910
        %v5923 = vadd.f32 %v5887, %v5910
        %v5924 = vadd.f32 %v5888, %v5910
        %v5925 = vadd.f32 %v5889, %v5910
        %v5926 = vadd.f32 %v5890, %v5910
        %v5927 = vadd.f32 %v5891, %v5910
        %v5928 = vadd.f32 %v5892, %v5910
        %v5929 = vadd.f32 %v5893, %v5910
        %v5930 = vadd.f32 %v5894, %v5910
        %v5931 = vadd.f32 %v5895, %v5910
        %v5932 = vadd.f32 %v5896, %v5910
        %v5933 = vadd.f32 %v5897, %v5910
        %v5934 = vadd.f32 %v5898, %v5910
        %v5935 = vadd.f32 %v5899, %v5910
        %v5936 = vadd.f32 %v5900, %v5910
        %v5937 = vadd.f32 %v5901, %v5910
        %v5938 = vadd.f32 %v5902, %v5910
        %v5939 = vadd.f32 %v5903, %v5910
        %v5940 = vadd.f32 %v5904, %v5910
        %v5941 = vadd.f32 %v5905, %v5910
        %v5942 = vadd.f32 %v5906, %v5910
        %v5943 = vadd.f32 %v5907, %v5910
        %v5944 = vmax.f32 %v5912, 0.0
        %v5945 = vmax.f32 %v5913, 0.0
        %v5946 = vmax.f32 %v5914, 0.0
        %v5947 = vmax.f32 %v5915, 0.0
        %v5948 = vmax.f32 %v5916, 0.0
        %v5949 = vmax.f32 %v5917, 0.0
        %v5950 = vmax.f32 %v5918, 0.0
        %v5951 = vmax.f32 %v5919, 0.0
        %v5952 = vmax.f32 %v5920, 0.0
        %v5953 = vmax.f32 %v5921, 0.0
        %v5954 = vmax.f32 %v5922, 0.0
        %v5955 = vmax.f32 %v5923, 0.0
        %v5956 = vmax.f32 %v5924, 0.0
        %v5957 = vmax.f32 %v5925, 0.0
        %v5958 = vmax.f32 %v5926, 0.0
        %v5959 = vmax.f32 %v5927, 0.0
        %v5960 = vmax.f32 %v5928, 0.0
        %v5961 = vmax.f32 %v5929, 0.0
        %v5962 = vmax.f32 %v5930, 0.0
        %v5963 = vmax.f32 %v5931, 0.0
        %v5964 = vmax.f32 %v5932, 0.0
        %v5965 = vmax.f32 %v5933, 0.0
        %v5966 = vmax.f32 %v5934, 0.0
        %v5967 = vmax.f32 %v5935, 0.0
        %v5968 = vmax.f32 %v5936, 0.0
        %v5969 = vmax.f32 %v5937, 0.0
        %v5970 = vmax.f32 %v5938, 0.0
        %v5971 = vmax.f32 %v5939, 0.0
        %v5972 = vmax.f32 %v5940, 0.0
        %v5973 = vmax.f32 %v5941, 0.0
        %v5974 = vmax.f32 %v5942, 0.0
        %v5975 = vmax.f32 %v5943, 0.0
        %v5976 = vpack.c.bf16 %v5945, %v5944
        %v5977 = vpack.c.bf16 %v5947, %v5946
        %v5978 = vpack.c.bf16 %v5949, %v5948
        %v5979 = vpack.c.bf16 %v5951, %v5950
        %v5980 = vpack.c.bf16 %v5953, %v5952
        %v5981 = vpack.c.bf16 %v5955, %v5954
        %v5982 = vpack.c.bf16 %v5957, %v5956
        %v5983 = vpack.c.bf16 %v5959, %v5958
        %v5984 = vpack.c.bf16 %v5961, %v5960
        %v5985 = vpack.c.bf16 %v5963, %v5962
        %v5986 = vpack.c.bf16 %v5965, %v5964
        %v5987 = vpack.c.bf16 %v5967, %v5966
        %v5988 = vpack.c.bf16 %v5969, %v5968
        %v5989 = vpack.c.bf16 %v5971, %v5970
        %v5990 = vpack.c.bf16 %v5973, %v5972
        %v5991 = vpack.c.bf16 %v5975, %v5974
        %v5992 = vld [vmem:[%s3] sm:$0xf]
        %v5993 = vld [vmem:[%s3 + $0x4] sm:$0xf]
        %v5994 = vld [vmem:[%s3 + $0x8] sm:$0xf]
        %v5995 = vld [vmem:[%s3 + $0xc] sm:$0xf]
        %v5996 = vld [vmem:[%s3 + $0x10] sm:$0xf]
        %v5997 = vld [vmem:[%s3 + $0x14] sm:$0xf]
        %v5998 = vld [vmem:[%s3 + $0x18] sm:$0xf]
        %v5999 = vld [vmem:[%s3 + $0x1c] sm:$0xf]
        %v6000 = vld [vmem:[%s3 + $0x20] sm:$0xf]
        %v6001 = vld [vmem:[%s3 + $0x24] sm:$0xf]
        %v6002 = vld [vmem:[%s3 + $0x28] sm:$0xf]
        %v6003 = vld [vmem:[%s3 + $0x2c] sm:$0xf]
        %v6004 = vld [vmem:[%s3 + $0x30] sm:$0xf]
        %v6005 = vld [vmem:[%s3 + $0x34] sm:$0xf]
        %v6006 = vld [vmem:[%s3 + $0x38] sm:$0xf]
        %v6007 = vld [vmem:[%s3 + $0x3c] sm:$0xf]
        %v6008 = vld [vmem:[%s303] sm:$0xff]
        %v6009 = vld [vmem:[%s303 + $0x8] sm:$0xff]
        %v6010 = vld [vmem:[%s303 + $0x10] sm:$0xff]
        %v6011 = vld [vmem:[%s303 + $0x18] sm:$0xff]
        %v6012 = vld [vmem:[%s303 + $0x20] sm:$0xff]
        %v6013 = vld [vmem:[%s303 + $0x28] sm:$0xff]
        %v6014 = vld [vmem:[%s303 + $0x30] sm:$0xff]
        %v6015 = vld [vmem:[%s303 + $0x38] sm:$0xff]
        %v6016 = vld [vmem:[%s303 + $0x40] sm:$0xff]
        %v6017 = vld [vmem:[%s303 + $0x48] sm:$0xff]
        %v6018 = vld [vmem:[%s303 + $0x50] sm:$0xff]
        %v6019 = vld [vmem:[%s303 + $0x58] sm:$0xff]
        %v6020 = vld [vmem:[%s303 + $0x60] sm:$0xff]
        %v6021 = vld [vmem:[%s303 + $0x68] sm:$0xff]
        %v6022 = vld [vmem:[%s303 + $0x70] sm:$0xff]
        %v6023 = vld [vmem:[%s303 + $0x78] sm:$0xff]
        %v6024 = vld [vmem:[%s303 + $0x80] sm:$0xff]
        %v6025 = vld [vmem:[%s303 + $0x88] sm:$0xff]
        %v6026 = vld [vmem:[%s303 + $0x90] sm:$0xff]
        %v6027 = vld [vmem:[%s303 + $0x98] sm:$0xff]
        %v6028 = vld [vmem:[%s303 + $0xa0] sm:$0xff]
        %v6029 = vld [vmem:[%s303 + $0xa8] sm:$0xff]
        %v6030 = vld [vmem:[%s303 + $0xb0] sm:$0xff]
        %v6031 = vld [vmem:[%s303 + $0xb8] sm:$0xff]
        %v6032 = vld [vmem:[%s303 + $0xc0] sm:$0xff]
        %v6033 = vld [vmem:[%s303 + $0xc8] sm:$0xff]
        %v6034 = vld [vmem:[%s303 + $0xd0] sm:$0xff]
        %v6035 = vld [vmem:[%s303 + $0xd8] sm:$0xff]
        %v6036 = vld [vmem:[%s303 + $0xe0] sm:$0xff]
        %v6037 = vld [vmem:[%s303 + $0xe8] sm:$0xff]
        %v6038 = vld [vmem:[%s303 + $0xf0] sm:$0xff]
        %v6039 = vld [vmem:[%s303 + $0xf8] sm:$0xff]
        %v6056 = vunpack.c.l.b16 %v5992
        %v6057 = vunpack.c.l.b16 %v5993
        %v6058 = vunpack.c.l.b16 %v5994
        %v6059 = vunpack.c.l.b16 %v5995
        %v6060 = vunpack.c.l.b16 %v5996
        %v6061 = vunpack.c.l.b16 %v5997
        %v6062 = vunpack.c.l.b16 %v5998
        %v6063 = vunpack.c.l.b16 %v5999
        %v6064 = vunpack.c.l.b16 %v6000
        %v6065 = vunpack.c.l.b16 %v6001
        %v6066 = vunpack.c.l.b16 %v6002
        %v6067 = vunpack.c.l.b16 %v6003
        %v6068 = vunpack.c.l.b16 %v6004
        %v6069 = vunpack.c.l.b16 %v6005
        %v6070 = vunpack.c.l.b16 %v6006
        %v6071 = vunpack.c.l.b16 %v6007
        %v6072 = vpack.c.b16 %v6057, %v6056
        %v6073 = vpack.c.b16 %v6059, %v6058
        %v6074 = vpack.c.b16 %v6061, %v6060
        %v6075 = vpack.c.b16 %v6063, %v6062
        %v6076 = vpack.c.b16 %v6065, %v6064
        %v6077 = vpack.c.b16 %v6067, %v6066
        %v6078 = vpack.c.b16 %v6069, %v6068
        %v6079 = vpack.c.b16 %v6071, %v6070
        %6088 = vmatpush.bf16.msra.mxu0 %v6079
        %6089 = vmatpush.bf16.msra.mxu0 %v6078
        %6090 = vmatpush.bf16.msra.mxu0 %v6077
        %6091 = vmatpush.bf16.msra.mxu0 %v6076
        %6092 = vmatpush.bf16.msra.mxu0 %v6075
        %6093 = vmatpush.bf16.msra.mxu0 %v6074
        %6094 = vmatpush.bf16.msra.mxu0 %v6073
        %6095 = vmatpush.bf16.msra.mxu0 %v6072
        %6096 = vmatmul.bf16.gmra.mxu0 %v5976
        %v6097 = vpop.f32.mrf.mxu0
        %v6098 = vadd.f32 %v6008, %v6097
        %v6099 = vpop.f32.mrf.mxu0
        %v6100 = vadd.f32 %v6009, %v6099
        %6101 = vmatmul.bf16.gmra.mxu0 %v5977
        %v6102 = vpop.f32.mrf.mxu0
        %v6103 = vadd.f32 %v6010, %v6102
        %v6104 = vpop.f32.mrf.mxu0
        %v6105 = vadd.f32 %v6011, %v6104
        %6106 = vmatmul.bf16.gmra.mxu0 %v5978
        %v6107 = vpop.f32.mrf.mxu0
        %v6108 = vadd.f32 %v6012, %v6107
        %v6109 = vpop.f32.mrf.mxu0
        %v6110 = vadd.f32 %v6013, %v6109
        %6111 = vmatmul.bf16.gmra.mxu0 %v5979
        %v6112 = vpop.f32.mrf.mxu0
        %v6113 = vadd.f32 %v6014, %v6112
        %v6114 = vpop.f32.mrf.mxu0
        %v6115 = vadd.f32 %v6015, %v6114
        %6116 = vmatmul.bf16.gmra.mxu0 %v5980
        %v6117 = vpop.f32.mrf.mxu0
        %v6118 = vadd.f32 %v6016, %v6117
        %v6119 = vpop.f32.mrf.mxu0
        %v6120 = vadd.f32 %v6017, %v6119
        %6121 = vmatmul.bf16.gmra.mxu0 %v5981
        %v6122 = vpop.f32.mrf.mxu0
        %v6123 = vadd.f32 %v6018, %v6122
        %v6124 = vpop.f32.mrf.mxu0
        %v6125 = vadd.f32 %v6019, %v6124
        %6126 = vmatmul.bf16.gmra.mxu0 %v5982
        %v6127 = vpop.f32.mrf.mxu0
        %v6128 = vadd.f32 %v6020, %v6127
        %v6129 = vpop.f32.mrf.mxu0
        %v6130 = vadd.f32 %v6021, %v6129
        %6131 = vmatmul.bf16.gmra.mxu0 %v5983
        %v6132 = vpop.f32.mrf.mxu0
        %v6133 = vadd.f32 %v6022, %v6132
        %v6134 = vpop.f32.mrf.mxu0
        %v6135 = vadd.f32 %v6023, %v6134
        %6136 = vmatmul.bf16.gmra.mxu0 %v5984
        %v6137 = vpop.f32.mrf.mxu0
        %v6138 = vadd.f32 %v6024, %v6137
        %v6139 = vpop.f32.mrf.mxu0
        %v6140 = vadd.f32 %v6025, %v6139
        %6141 = vmatmul.bf16.gmra.mxu0 %v5985
        %v6142 = vpop.f32.mrf.mxu0
        %v6143 = vadd.f32 %v6026, %v6142
        %v6144 = vpop.f32.mrf.mxu0
        %v6145 = vadd.f32 %v6027, %v6144
        %6146 = vmatmul.bf16.gmra.mxu0 %v5986
        %v6147 = vpop.f32.mrf.mxu0
        %v6148 = vadd.f32 %v6028, %v6147
        %v6149 = vpop.f32.mrf.mxu0
        %v6150 = vadd.f32 %v6029, %v6149
        %6151 = vmatmul.bf16.gmra.mxu0 %v5987
        %v6152 = vpop.f32.mrf.mxu0
        %v6153 = vadd.f32 %v6030, %v6152
        %v6154 = vpop.f32.mrf.mxu0
        %v6155 = vadd.f32 %v6031, %v6154
        %6156 = vmatmul.bf16.gmra.mxu0 %v5988
        %v6157 = vpop.f32.mrf.mxu0
        %v6158 = vadd.f32 %v6032, %v6157
        %v6159 = vpop.f32.mrf.mxu0
        %v6160 = vadd.f32 %v6033, %v6159
        %6161 = vmatmul.bf16.gmra.mxu0 %v5989
        %v6162 = vpop.f32.mrf.mxu0
        %v6163 = vadd.f32 %v6034, %v6162
        %v6164 = vpop.f32.mrf.mxu0
        %v6165 = vadd.f32 %v6035, %v6164
        %6166 = vmatmul.bf16.gmra.mxu0 %v5990
        %v6167 = vpop.f32.mrf.mxu0
        %v6168 = vadd.f32 %v6036, %v6167
        %v6169 = vpop.f32.mrf.mxu0
        %v6170 = vadd.f32 %v6037, %v6169
        %6171 = vmatmul.bf16.gmra.mxu0 %v5991
        %v6172 = vpop.f32.mrf.mxu0
        %v6173 = vadd.f32 %v6038, %v6172
        %v6174 = vpop.f32.mrf.mxu0
        %v6175 = vadd.f32 %v6039, %v6174
        %6176 = vdwg.mxu0
        %6177 = vst [vmem:[%s298] sm:$0xff] %v6098
        %6178 = vst [vmem:[%s298 + $0x8] sm:$0xff] %v6100
        %6179 = vst [vmem:[%s298 + $0x10] sm:$0xff] %v6103
        %6180 = vst [vmem:[%s298 + $0x18] sm:$0xff] %v6105
        %6181 = vst [vmem:[%s298 + $0x20] sm:$0xff] %v6108
        %6182 = vst [vmem:[%s298 + $0x28] sm:$0xff] %v6110
        %6183 = vst [vmem:[%s298 + $0x30] sm:$0xff] %v6113
        %6184 = vst [vmem:[%s298 + $0x38] sm:$0xff] %v6115
        %6185 = vst [vmem:[%s298 + $0x40] sm:$0xff] %v6118
        %6186 = vst [vmem:[%s298 + $0x48] sm:$0xff] %v6120
        %6187 = vst [vmem:[%s298 + $0x50] sm:$0xff] %v6123
        %6188 = vst [vmem:[%s298 + $0x58] sm:$0xff] %v6125
        %6189 = vst [vmem:[%s298 + $0x60] sm:$0xff] %v6128
        %6190 = vst [vmem:[%s298 + $0x68] sm:$0xff] %v6130
        %6191 = vst [vmem:[%s298 + $0x70] sm:$0xff] %v6133
        %6192 = vst [vmem:[%s298 + $0x78] sm:$0xff] %v6135
        %6193 = vst [vmem:[%s298 + $0x80] sm:$0xff] %v6138
        %6194 = vst [vmem:[%s298 + $0x88] sm:$0xff] %v6140
        %6195 = vst [vmem:[%s298 + $0x90] sm:$0xff] %v6143
        %6196 = vst [vmem:[%s298 + $0x98] sm:$0xff] %v6145
        %6197 = vst [vmem:[%s298 + $0xa0] sm:$0xff] %v6148
        %6198 = vst [vmem:[%s298 + $0xa8] sm:$0xff] %v6150
        %6199 = vst [vmem:[%s298 + $0xb0] sm:$0xff] %v6153
        %6200 = vst [vmem:[%s298 + $0xb8] sm:$0xff] %v6155
        %6201 = vst [vmem:[%s298 + $0xc0] sm:$0xff] %v6158
        %6202 = vst [vmem:[%s298 + $0xc8] sm:$0xff] %v6160
        %6203 = vst [vmem:[%s298 + $0xd0] sm:$0xff] %v6163
        %6204 = vst [vmem:[%s298 + $0xd8] sm:$0xff] %v6165
        %6205 = vst [vmem:[%s298 + $0xe0] sm:$0xff] %v6168
        %6206 = vst [vmem:[%s298 + $0xe8] sm:$0xff] %v6170
        %6207 = vst [vmem:[%s298 + $0xf0] sm:$0xff] %v6173
        %6208 = vst [vmem:[%s298 + $0xf8] sm:$0xff] %v6175
        %s6209 = sand.u32 %s203, 1
        %s6210 = scalar_lea.sflag [#allocation4], %s6209
        %s6211 = sand.u32 %s203, 1
        %s6212 = smul.addr %s6211, 256
        %s6213 = scalar_lea.vmem [#allocation3], %s6212
        // Predicated region
        $region53: #{bottleneck_pallas_nhwc.1} parent=51 // pred_check
          %p6214 = pneg %p213
        $region54: #{bottleneck_pallas_nhwc.1} parent=51 // pred_check_branch
          %6216 = sbr.rel (%p6214) target = $region56
        $region55: #{bottleneck_pallas_nhwc.1} parent=51 // pred_region
          %6218 = vsyncadd %s6210, 0
          %s6219 = smul.addr %s22, 32
          %s6220 = smul.addr %s6219, 8
          %s6221 = scalar_lea.hbm %s8, %s6220
          %s6222 = sshll.u32 %s6213, 4
          %s6223 = int_to_ptr.vmem [resolvable:$true] %s6222
          %s6224 = sshll.u32 %s6221, 4
          %s6225 = int_to_ptr.hbm [resolvable:$true] %s6224
          %6230 = dma.vmem_to_hbm [thread:$0]  %s6223, 4096, %s6225, %s6210, 128, 128, 8
        $region56: #{bottleneck_pallas_nhwc.1} parent=51 // pred_fallthru
          _
      $region52: #{bottleneck_pallas_nhwc.1} parent=5 // pred_fallthru
        _
      %p6231 = scmp.le.s32.totalorder 2, %s17
      // Predicated region
      $region57: #{bottleneck_pallas_nhwc.1} parent=5 // pred_check
        %p6232 = pneg %p6231
      $region58: #{bottleneck_pallas_nhwc.1} parent=5 // pred_check_branch
        %6234 = sbr.rel (%p6232) target = $region60
      $region59: #{bottleneck_pallas_nhwc.1} parent=5 // pred_region
        %s6235 = ssub.s32 %s17, 2
        // Predicated region
        $region61: #{bottleneck_pallas_nhwc.1} parent=59 // pred_check
          %p6236 = pneg %p219
        $region62: #{bottleneck_pallas_nhwc.1} parent=59 // pred_check_branch
          %6238 = sbr.rel (%p6236) target = $region64
        $region63: #{bottleneck_pallas_nhwc.1} parent=59 // pred_region
          %s6239 = sand.u32 %s204, 1
          %s6240 = scalar_lea.sflag [#allocation4], %s6239
          %s6241 = sand.u32 %s204, 1
          %s6242 = smul.addr %s6241, 256
          %s6243 = scalar_lea.vmem [#allocation3], %s6242
          %6245 = dma.done %s6240, 4096
        $region64: #{bottleneck_pallas_nhwc.1} parent=59 // pred_fallthru
          _
      $region60: #{bottleneck_pallas_nhwc.1} parent=5 // pred_fallthru
        _
    $region6: #{bottleneck_pallas_nhwc.1} parent=1 // loop_footer
      %s21 = sadd.s32 1, %s17
    $region7: #{bottleneck_pallas_nhwc.1} parent=1 // loop_footer_branch
      %16 = sbr.rel target = $region3
    $region8: #{bottleneck_pallas_nhwc.1} parent=1 // loop_exit
      _
    %6246 = vsyncpa [#allocation4], 1
    %s6247 = scalar_lea.sflag [#allocation4], 1
    %6248 = vsyncpa %s6247, 1

</llo_original>
